<compile_context>
chip_gen: v7x
topology: tpu7x:2x2x1
jax: 0.10.0
libtpu: 0.0.40
codegen_flags: <defaults>
</compile_context>

<pallas_src>
import functools

import jax
import jax.numpy as jnp
from jax.experimental import pallas as pl
from jax.experimental.pallas import tpu as pltpu


def _cdiv(a, b):
    return -(-a // b)


# ----------------------------- Pallas kernel --------------------------------
def _conv_tap_kernel(x_ref, w_ref, b_ref, o_ref, *, kh, kw, th, wo):
    """Fused KHxKW stride-1 conv + bias + ReLU on one (TH x Wo) output row tile.

    x_ref: (1, TH+kh-1, Wz, Cz)  bf16 haloed input rows (streamed per grid step)
    w_ref: (kh*kw, Cz, Cout)     bf16 weights (VMEM-resident, constant index)
    b_ref: (1, Cout)             f32 bias     (VMEM-resident)
    o_ref: (1, TH, Wo, Cout)     stage output (bf16 inter-stage / f32 final)
    """
    x = x_ref[0]                                   # (TH_in, Wz, Cz)
    cz = x.shape[-1]
    cout = o_ref.shape[-1]

    acc = jnp.zeros((th * wo, cout), jnp.float32)  # f32 accumulation over taps
    for ky in range(kh):
        for kx in range(kw):
            xt = x[ky:ky + th, kx:kx + wo, :].reshape(th * wo, cz)
            acc = acc + jnp.dot(xt, w_ref[ky * kw + kx],
                                preferred_element_type=jnp.float32)

    y = jnp.maximum(acc + b_ref[...], 0.0)         # bias + ReLU at finalize
    o_ref[0] = y.reshape(th, wo, cout).astype(o_ref.dtype)


# ------------------------------ stage wrapper --------------------------------
def conv3x3_bias_relu(x_nhwc, w_oihw, bias, stride, out_dtype, *, target_rows=512):
    """3x3 conv (pad=1, stride 1 or 2) + bias + ReLU as one fused Pallas kernel."""
    B, H, W, cin = x_nhwc.shape
    cout = w_oihw.shape[0]
    Ho = (H - 1) // stride + 1
    Wo = (W - 1) // stride + 1

    # Output-row tile: per-tile matmul has M = TH*Wo rows (~target_rows).
    TH = max(1, min(Ho, _cdiv(target_rows, Wo)))
    n_t = _cdiv(Ho, TH)
    Ho_pad = n_t * TH

    # PyTorch (Cout,Cin,kh,kw) -> (kh,kw,Cin,Cout), matching NHWC tap order.
    wt = jnp.transpose(w_oihw, (2, 3, 1, 0))

    if stride == 1:
        kh = kw = 3
        Hz, Wz, Cz = Ho_pad + 2, W + 2, cin
        z = jnp.pad(x_nhwc, ((0, 0), (1, Hz - H - 1), (1, 1), (0, 0)))
        w_taps = wt.reshape(kh * kw, Cz, cout)
    elif stride == 2:
        # Space-to-depth: stride-2 3x3 conv == stride-1 2x2 conv over 4*Cin
        # channels with zero-padded weight taps (dy=3 / dx=3 taps are zero).
        kh = kw = 2
        Hz, Wz, Cz = Ho_pad + 1, Wo + 1, 4 * cin
        Hp, Wp = 2 * Hz, 2 * Wz
        xp = jnp.pad(x_nhwc, ((0, 0), (1, Hp - H - 1), (1, Wp - W - 1), (0, 0)))
        z = xp.reshape(B, Hz, 2, Wz, 2, cin).transpose(0, 1, 3, 2, 4, 5)
        z = z.reshape(B, Hz, Wz, Cz)
        wp = jnp.pad(wt, ((0, 1), (0, 1), (0, 0), (0, 0)))       # (4,4,Cin,Cout)
        w_taps = wp.reshape(2, 2, 2, 2, cin, cout).transpose(0, 2, 1, 3, 4, 5)
        w_taps = w_taps.reshape(kh * kw, Cz, cout)
    else:
        raise ValueError("only stride 1 or 2 supported")

    TH_in = TH + kh - 1
    z = z.astype(jnp.bfloat16)
    w_taps = w_taps.astype(jnp.bfloat16)
    b2d = bias.reshape(1, cout).astype(jnp.float32)

    # Haloed row tiles -> non-overlapping blocks for the BlockSpec pipeline.
    # Only kh-1 halo rows per TH rows are duplicated (vs 9x for im2col).
    if n_t == 1:
        z_blk = z.reshape(B, TH_in, Wz, Cz)
    else:
        rows = (jnp.arange(n_t)[:, None] * TH + jnp.arange(TH_in)[None, :]).reshape(-1)
        z_blk = jnp.take(z, rows, axis=1).reshape(B * n_t, TH_in, Wz, Cz)

    kernel = functools.partial(_conv_tap_kernel, kh=kh, kw=kw, th=TH, wo=Wo)

    out = pl.pallas_call(
        kernel,
        out_shape=jax.ShapeDtypeStruct((B * n_t, TH, Wo, cout), out_dtype),
        grid_spec=pltpu.PrefetchScalarGridSpec(
            num_scalar_prefetch=0,
            grid=(B * n_t,),                      # parallel axis, >=2 blocks -> v7x dual TC
            in_specs=[
                pl.BlockSpec((1, TH_in, Wz, Cz), lambda i: (i, 0, 0, 0)),  # streamed rows
                pl.BlockSpec((kh * kw, Cz, cout), lambda i: (0, 0, 0)),    # resident weight
                pl.BlockSpec((1, cout), lambda i: (0, 0)),                 # resident bias
            ],
            out_specs=pl.BlockSpec((1, TH, Wo, cout), lambda i: (i, 0, 0, 0)),
        ),
        compiler_params=pltpu.CompilerParams(
            dimension_semantics=("parallel",),
            vmem_limit_bytes=32 * 1024 * 1024),
    )(z_blk, w_taps, b2d)

    return out.reshape(B, Ho_pad, Wo, cout)[:, :Ho]


# --------------------------- BackboneV1 (synthetic) ---------------------------
def init_backbone_params(key, in_channels, stage_channels):
    params = []
    cin = in_channels
    for cout in stage_channels:
        key, kw_, kb_ = jax.random.split(key, 3)
        w = jax.random.normal(kw_, (cout, cin, 3, 3), jnp.float32) * 0.05
        b = jax.random.normal(kb_, (cout,), jnp.float32) * 0.01
        params.append((w, b))
        cin = cout
    return params


def backbone_v1_forward(x_nchw, params, strides=(2, 2, 2, 1)):
    """Mirrors BackboneV1.forward: layer1->layer2->layer3->layer4."""
    x = jnp.transpose(x_nchw, (0, 2, 3, 1)).astype(jnp.bfloat16)   # NCHW -> NHWC
    n = len(params)
    for idx, ((w, b), s) in enumerate(zip(params, strides)):
        out_dt = jnp.float32 if idx == n - 1 else jnp.bfloat16     # bf16 inter-stage
        x = conv3x3_bias_relu(x, w, b, s, out_dtype=out_dt)
    return jnp.transpose(x, (0, 3, 1, 2))                          # NHWC -> NCHW


# --------------------------- reference (pure JAX) ----------------------------
def _reference_forward(x_nchw, params, strides=(2, 2, 2, 1)):
    # Matches the kernel's numerics: bf16 operands, f32 accumulation,
    # bf16 inter-stage activations, f32 final stage.
    x = jnp.transpose(x_nchw, (0, 2, 3, 1)).astype(jnp.bfloat16)
    n = len(params)
    for idx, ((w, b), s) in enumerate(zip(params, strides)):
        w_hwio = jnp.transpose(w, (2, 3, 1, 0)).astype(jnp.bfloat16)
        y = jax.lax.conv_general_dilated(
            x, w_hwio, window_strides=(s, s), padding=((1, 1), (1, 1)),
            dimension_numbers=("NHWC", "HWIO", "NHWC"),
            preferred_element_type=jnp.float32)
        y = jnp.maximum(y + b.astype(jnp.float32), 0.0)
        x = y.astype(jnp.float32 if idx == n - 1 else jnp.bfloat16)
    return jnp.transpose(x, (0, 3, 1, 2)).astype(jnp.float32)


if __name__ == "__main__":
    key = jax.random.PRNGKey(0)
    k_x, k_p = jax.random.split(key)

    B, C, H, W = 2, 4, 16, 16
    x = jax.random.normal(k_x, (B, C, H, W), jnp.float32)

    stage_channels = (8, 16, 32, 64)   # small synthetic encoder widths
    params = init_backbone_params(k_p, C, stage_channels)

    fwd = jax.jit(backbone_v1_forward)
    out = jax.block_until_ready(fwd(x, params))

    ref = _reference_forward(x, params)
    assert out.shape == (B, stage_channels[-1], H // 8, W // 8), out.shape
    max_err = float(jnp.max(jnp.abs(out - ref)))
    assert jnp.allclose(out, ref, rtol=2e-2, atol=2e-2), max_err

    print("KERNEL_OK")
</pallas_src>

<mosaic_0001>
module attributes {stable_mosaic.version = 11 : i64} {
  func.func @_conv_tap_kernel(%arg0: i32, %arg1: memref<1x9x9x16xbf16, #tpu.memory_space<vmem>>, %arg2: memref<4x16x8xbf16, #tpu.memory_space<vmem>>, %arg3: memref<1x8xf32, #tpu.memory_space<vmem>>, %arg4: memref<1x8x8x8xbf16, #tpu.memory_space<vmem>>) attributes {dimension_semantics = [#tpu.dimension_semantics<parallel>], iteration_bounds = array<i64: 2>, scalar_prefetch = 0 : i64, scratch_operands = 0 : i64, tpu.core_type = #tpu.core_type<tc>, window_params = [{transform_indices = @transform_0, window_bounds = array<i64: 1, 9, 9, 16>}, {pipeline_mode = #tpu.pipeline_mode<synchronous>, transform_indices = @transform_1, window_bounds = array<i64: 4, 16, 8>}, {pipeline_mode = #tpu.pipeline_mode<synchronous>, transform_indices = @transform_2, window_bounds = array<i64: 1, 8>}, {transform_indices = @transform_3, window_bounds = array<i64: 1, 8, 8, 8>}]} {
    %c0 = arith.constant 0 : index
    %c0_0 = arith.constant 0 : index
    %c0_1 = arith.constant 0 : index
    %c0_2 = arith.constant 0 : index
    %0 = vector.load %arg1[%c0, %c0_0, %c0_1, %c0_2] : memref<1x9x9x16xbf16, #tpu.memory_space<vmem>>, vector<1x9x9x16xbf16>
    %1 = vector.shape_cast %0 : vector<1x9x9x16xbf16> to vector<9x9x16xbf16>
    %cst = arith.constant 0.000000e+00 : f32
    %2 = vector.broadcast %cst : f32 to vector<64x8xf32>
    %3 = vector.extract_strided_slice %1 {offsets = [0, 0, 0], sizes = [8, 8, 16], strides = [1, 1, 1]} : vector<9x9x16xbf16> to vector<8x8x16xbf16>
    %4 = vector.shape_cast %3 : vector<8x8x16xbf16> to vector<64x16xbf16>
    %c0_3 = arith.constant 0 : index
    %c0_4 = arith.constant 0 : index
    %c0_5 = arith.constant 0 : index
    %5 = vector.load %arg2[%c0_3, %c0_4, %c0_5] : memref<4x16x8xbf16, #tpu.memory_space<vmem>>, vector<1x16x8xbf16>
    %6 = vector.shape_cast %5 : vector<1x16x8xbf16> to vector<16x8xbf16>
    %cst_6 = arith.constant dense<0.000000e+00> : vector<64x8xf32>
    %7 = tpu.matmul %4, %6, %cst_6 {dimension_numbers = #tpu.dot_dimension_numbers<[1], [0], [0], [1], [0, 0, 1, 1], [], []>} : vector<64x16xbf16>, vector<16x8xbf16>, vector<64x8xf32> -> vector<64x8xf32>
    %8 = arith.addf %2, %7 : vector<64x8xf32>
    %9 = vector.extract_strided_slice %1 {offsets = [0, 1, 0], sizes = [8, 8, 16], strides = [1, 1, 1]} : vector<9x9x16xbf16> to vector<8x8x16xbf16>
    %10 = vector.shape_cast %9 : vector<8x8x16xbf16> to vector<64x16xbf16>
    %c1 = arith.constant 1 : index
    %c0_7 = arith.constant 0 : index
    %c0_8 = arith.constant 0 : index
    %11 = vector.load %arg2[%c1, %c0_7, %c0_8] : memref<4x16x8xbf16, #tpu.memory_space<vmem>>, vector<1x16x8xbf16>
    %12 = vector.shape_cast %11 : vector<1x16x8xbf16> to vector<16x8xbf16>
    %cst_9 = arith.constant dense<0.000000e+00> : vector<64x8xf32>
    %13 = tpu.matmul %10, %12, %cst_9 {dimension_numbers = #tpu.dot_dimension_numbers<[1], [0], [0], [1], [0, 0, 1, 1], [], []>} : vector<64x16xbf16>, vector<16x8xbf16>, vector<64x8xf32> -> vector<64x8xf32>
    %14 = arith.addf %8, %13 : vector<64x8xf32>
    %15 = vector.extract_strided_slice %1 {offsets = [1, 0, 0], sizes = [8, 8, 16], strides = [1, 1, 1]} : vector<9x9x16xbf16> to vector<8x8x16xbf16>
    %16 = vector.shape_cast %15 : vector<8x8x16xbf16> to vector<64x16xbf16>
    %c2 = arith.constant 2 : index
    %c0_10 = arith.constant 0 : index
    %c0_11 = arith.constant 0 : index
    %17 = vector.load %arg2[%c2, %c0_10, %c0_11] : memref<4x16x8xbf16, #tpu.memory_space<vmem>>, vector<1x16x8xbf16>
    %18 = vector.shape_cast %17 : vector<1x16x8xbf16> to vector<16x8xbf16>
    %cst_12 = arith.constant dense<0.000000e+00> : vector<64x8xf32>
    %19 = tpu.matmul %16, %18, %cst_12 {dimension_numbers = #tpu.dot_dimension_numbers<[1], [0], [0], [1], [0, 0, 1, 1], [], []>} : vector<64x16xbf16>, vector<16x8xbf16>, vector<64x8xf32> -> vector<64x8xf32>
    %20 = arith.addf %14, %19 : vector<64x8xf32>
    %21 = vector.extract_strided_slice %1 {offsets = [1, 1, 0], sizes = [8, 8, 16], strides = [1, 1, 1]} : vector<9x9x16xbf16> to vector<8x8x16xbf16>
    %22 = vector.shape_cast %21 : vector<8x8x16xbf16> to vector<64x16xbf16>
    %c3 = arith.constant 3 : index
    %c0_13 = arith.constant 0 : index
    %c0_14 = arith.constant 0 : index
    %23 = vector.load %arg2[%c3, %c0_13, %c0_14] : memref<4x16x8xbf16, #tpu.memory_space<vmem>>, vector<1x16x8xbf16>
    %24 = vector.shape_cast %23 : vector<1x16x8xbf16> to vector<16x8xbf16>
    %cst_15 = arith.constant dense<0.000000e+00> : vector<64x8xf32>
    %25 = tpu.matmul %22, %24, %cst_15 {dimension_numbers = #tpu.dot_dimension_numbers<[1], [0], [0], [1], [0, 0, 1, 1], [], []>} : vector<64x16xbf16>, vector<16x8xbf16>, vector<64x8xf32> -> vector<64x8xf32>
    %26 = arith.addf %20, %25 : vector<64x8xf32>
    %c0_16 = arith.constant 0 : index
    %c0_17 = arith.constant 0 : index
    %27 = vector.load %arg3[%c0_16, %c0_17] : memref<1x8xf32, #tpu.memory_space<vmem>>, vector<1x8xf32>
    %28 = vector.broadcast %27 : vector<1x8xf32> to vector<64x8xf32>
    %29 = arith.addf %26, %28 : vector<64x8xf32>
    %cst_18 = arith.constant 0.000000e+00 : f32
    %30 = vector.broadcast %cst_18 : f32 to vector<64x8xf32>
    %31 = arith.maximumf %29, %30 : vector<64x8xf32>
    %32 = vector.shape_cast %31 : vector<64x8xf32> to vector<8x8x8xf32>
    %33 = arith.truncf %32 : vector<8x8x8xf32> to vector<8x8x8xbf16>
    %c0_19 = arith.constant 0 : index
    %c0_20 = arith.constant 0 : index
    %c0_21 = arith.constant 0 : index
    %c0_22 = arith.constant 0 : index
    %34 = vector.load %arg4[%c0_19, %c0_20, %c0_21, %c0_22] : memref<1x8x8x8xbf16, #tpu.memory_space<vmem>>, vector<1x8x8x8xbf16>
    %35 = vector.shape_cast %34 : vector<1x8x8x8xbf16> to vector<8x8x8xbf16>
    %36 = vector.shape_cast %33 : vector<8x8x8xbf16> to vector<1x8x8x8xbf16>
    tpu.vector_store %arg4[%c0_19, %c0_20, %c0_21, %c0_22], %36 {strides = array<i32>} : memref<1x8x8x8xbf16, #tpu.memory_space<vmem>>, vector<1x8x8x8xbf16>,
    return
  }
  func.func @transform_0(%arg0: i32) -> (i32, i32, i32, i32) {
    %c0_i32 = arith.constant 0 : i32
    %c0_i32_0 = arith.constant 0 : i32
    %c0_i32_1 = arith.constant 0 : i32
    %c0_i32_2 = arith.constant 0 : i32
    return %arg0, %c0_i32, %c0_i32_0, %c0_i32_1 : i32, i32, i32, i32
  }
  func.func @transform_1(%arg0: i32) -> (i32, i32, i32) {
    %c0_i32 = arith.constant 0 : i32
    %c0_i32_0 = arith.constant 0 : i32
    %c0_i32_1 = arith.constant 0 : i32
    %c0_i32_2 = arith.constant 0 : i32
    return %c0_i32, %c0_i32_0, %c0_i32_1 : i32, i32, i32
  }
  func.func @transform_2(%arg0: i32) -> (i32, i32) {
    %c0_i32 = arith.constant 0 : i32
    %c0_i32_0 = arith.constant 0 : i32
    %c0_i32_1 = arith.constant 0 : i32
    return %c0_i32, %c0_i32_0 : i32, i32
  }
  func.func @transform_3(%arg0: i32) -> (i32, i32, i32, i32) {
    %c0_i32 = arith.constant 0 : i32
    %c0_i32_0 = arith.constant 0 : i32
    %c0_i32_1 = arith.constant 0 : i32
    %c0_i32_2 = arith.constant 0 : i32
    return %arg0, %c0_i32, %c0_i32_0, %c0_i32_1 : i32, i32, i32, i32
  }
}

module attributes {stable_mosaic.version = 11 : i64} {
  func.func @_conv_tap_kernel(%arg0: i32, %arg1: memref<1x5x5x32xbf16, #tpu.memory_space<vmem>>, %arg2: memref<4x32x16xbf16, #tpu.memory_space<vmem>>, %arg3: memref<1x16xf32, #tpu.memory_space<vmem>>, %arg4: memref<1x4x4x16xbf16, #tpu.memory_space<vmem>>) attributes {dimension_semantics = [#tpu.dimension_semantics<parallel>], iteration_bounds = array<i64: 2>, scalar_prefetch = 0 : i64, scratch_operands = 0 : i64, tpu.core_type = #tpu.core_type<tc>, window_params = [{transform_indices = @transform_0, window_bounds = array<i64: 1, 5, 5, 32>}, {pipeline_mode = #tpu.pipeline_mode<synchronous>, transform_indices = @transform_1, window_bounds = array<i64: 4, 32, 16>}, {pipeline_mode = #tpu.pipeline_mode<synchronous>, transform_indices = @transform_2, window_bounds = array<i64: 1, 16>}, {transform_indices = @transform_3, window_bounds = array<i64: 1, 4, 4, 16>}]} {
    %c0 = arith.constant 0 : index
    %c0_0 = arith.constant 0 : index
    %c0_1 = arith.constant 0 : index
    %c0_2 = arith.constant 0 : index
    %0 = vector.load %arg1[%c0, %c0_0, %c0_1, %c0_2] : memref<1x5x5x32xbf16, #tpu.memory_space<vmem>>, vector<1x5x5x32xbf16>
    %1 = vector.shape_cast %0 : vector<1x5x5x32xbf16> to vector<5x5x32xbf16>
    %cst = arith.constant 0.000000e+00 : f32
    %2 = vector.broadcast %cst : f32 to vector<16x16xf32>
    %3 = vector.extract_strided_slice %1 {offsets = [0, 0, 0], sizes = [4, 4, 32], strides = [1, 1, 1]} : vector<5x5x32xbf16> to vector<4x4x32xbf16>
    %4 = vector.shape_cast %3 : vector<4x4x32xbf16> to vector<16x32xbf16>
    %c0_3 = arith.constant 0 : index
    %c0_4 = arith.constant 0 : index
    %c0_5 = arith.constant 0 : index
    %5 = vector.load %arg2[%c0_3, %c0_4, %c0_5] : memref<4x32x16xbf16, #tpu.memory_space<vmem>>, vector<1x32x16xbf16>
    %6 = vector.shape_cast %5 : vector<1x32x16xbf16> to vector<32x16xbf16>
    %cst_6 = arith.constant dense<0.000000e+00> : vector<16x16xf32>
    %7 = tpu.matmul %4, %6, %cst_6 {dimension_numbers = #tpu.dot_dimension_numbers<[1], [0], [0], [1], [0, 0, 1, 1], [], []>} : vector<16x32xbf16>, vector<32x16xbf16>, vector<16x16xf32> -> vector<16x16xf32>
    %8 = arith.addf %2, %7 : vector<16x16xf32>
    %9 = vector.extract_strided_slice %1 {offsets = [0, 1, 0], sizes = [4, 4, 32], strides = [1, 1, 1]} : vector<5x5x32xbf16> to vector<4x4x32xbf16>
    %10 = vector.shape_cast %9 : vector<4x4x32xbf16> to vector<16x32xbf16>
    %c1 = arith.constant 1 : index
    %c0_7 = arith.constant 0 : index
    %c0_8 = arith.constant 0 : index
    %11 = vector.load %arg2[%c1, %c0_7, %c0_8] : memref<4x32x16xbf16, #tpu.memory_space<vmem>>, vector<1x32x16xbf16>
    %12 = vector.shape_cast %11 : vector<1x32x16xbf16> to vector<32x16xbf16>
    %cst_9 = arith.constant dense<0.000000e+00> : vector<16x16xf32>
    %13 = tpu.matmul %10, %12, %cst_9 {dimension_numbers = #tpu.dot_dimension_numbers<[1], [0], [0], [1], [0, 0, 1, 1], [], []>} : vector<16x32xbf16>, vector<32x16xbf16>, vector<16x16xf32> -> vector<16x16xf32>
    %14 = arith.addf %8, %13 : vector<16x16xf32>
    %15 = vector.extract_strided_slice %1 {offsets = [1, 0, 0], sizes = [4, 4, 32], strides = [1, 1, 1]} : vector<5x5x32xbf16> to vector<4x4x32xbf16>
    %16 = vector.shape_cast %15 : vector<4x4x32xbf16> to vector<16x32xbf16>
    %c2 = arith.constant 2 : index
    %c0_10 = arith.constant 0 : index
    %c0_11 = arith.constant 0 : index
    %17 = vector.load %arg2[%c2, %c0_10, %c0_11] : memref<4x32x16xbf16, #tpu.memory_space<vmem>>, vector<1x32x16xbf16>
    %18 = vector.shape_cast %17 : vector<1x32x16xbf16> to vector<32x16xbf16>
    %cst_12 = arith.constant dense<0.000000e+00> : vector<16x16xf32>
    %19 = tpu.matmul %16, %18, %cst_12 {dimension_numbers = #tpu.dot_dimension_numbers<[1], [0], [0], [1], [0, 0, 1, 1], [], []>} : vector<16x32xbf16>, vector<32x16xbf16>, vector<16x16xf32> -> vector<16x16xf32>
    %20 = arith.addf %14, %19 : vector<16x16xf32>
    %21 = vector.extract_strided_slice %1 {offsets = [1, 1, 0], sizes = [4, 4, 32], strides = [1, 1, 1]} : vector<5x5x32xbf16> to vector<4x4x32xbf16>
    %22 = vector.shape_cast %21 : vector<4x4x32xbf16> to vector<16x32xbf16>
    %c3 = arith.constant 3 : index
    %c0_13 = arith.constant 0 : index
    %c0_14 = arith.constant 0 : index
    %23 = vector.load %arg2[%c3, %c0_13, %c0_14] : memref<4x32x16xbf16, #tpu.memory_space<vmem>>, vector<1x32x16xbf16>
    %24 = vector.shape_cast %23 : vector<1x32x16xbf16> to vector<32x16xbf16>
    %cst_15 = arith.constant dense<0.000000e+00> : vector<16x16xf32>
    %25 = tpu.matmul %22, %24, %cst_15 {dimension_numbers = #tpu.dot_dimension_numbers<[1], [0], [0], [1], [0, 0, 1, 1], [], []>} : vector<16x32xbf16>, vector<32x16xbf16>, vector<16x16xf32> -> vector<16x16xf32>
    %26 = arith.addf %20, %25 : vector<16x16xf32>
    %c0_16 = arith.constant 0 : index
    %c0_17 = arith.constant 0 : index
    %27 = vector.load %arg3[%c0_16, %c0_17] : memref<1x16xf32, #tpu.memory_space<vmem>>, vector<1x16xf32>
    %28 = vector.broadcast %27 : vector<1x16xf32> to vector<16x16xf32>
    %29 = arith.addf %26, %28 : vector<16x16xf32>
    %cst_18 = arith.constant 0.000000e+00 : f32
    %30 = vector.broadcast %cst_18 : f32 to vector<16x16xf32>
    %31 = arith.maximumf %29, %30 : vector<16x16xf32>
    %32 = vector.shape_cast %31 : vector<16x16xf32> to vector<4x4x16xf32>
    %33 = arith.truncf %32 : vector<4x4x16xf32> to vector<4x4x16xbf16>
    %c0_19 = arith.constant 0 : index
    %c0_20 = arith.constant 0 : index
    %c0_21 = arith.constant 0 : index
    %c0_22 = arith.constant 0 : index
    %34 = vector.load %arg4[%c0_19, %c0_20, %c0_21, %c0_22] : memref<1x4x4x16xbf16, #tpu.memory_space<vmem>>, vector<1x4x4x16xbf16>
    %35 = vector.shape_cast %34 : vector<1x4x4x16xbf16> to vector<4x4x16xbf16>
    %36 = vector.shape_cast %33 : vector<4x4x16xbf16> to vector<1x4x4x16xbf16>
    tpu.vector_store %arg4[%c0_19, %c0_20, %c0_21, %c0_22], %36 {strides = array<i32>} : memref<1x4x4x16xbf16, #tpu.memory_space<vmem>>, vector<1x4x4x16xbf16>,
    return
  }
  func.func @transform_0(%arg0: i32) -> (i32, i32, i32, i32) {
    %c0_i32 = arith.constant 0 : i32
    %c0_i32_0 = arith.constant 0 : i32
    %c0_i32_1 = arith.constant 0 : i32
    %c0_i32_2 = arith.constant 0 : i32
    return %arg0, %c0_i32, %c0_i32_0, %c0_i32_1 : i32, i32, i32, i32
  }
  func.func @transform_1(%arg0: i32) -> (i32, i32, i32) {
    %c0_i32 = arith.constant 0 : i32
    %c0_i32_0 = arith.constant 0 : i32
    %c0_i32_1 = arith.constant 0 : i32
    %c0_i32_2 = arith.constant 0 : i32
    return %c0_i32, %c0_i32_0, %c0_i32_1 : i32, i32, i32
  }
  func.func @transform_2(%arg0: i32) -> (i32, i32) {
    %c0_i32 = arith.constant 0 : i32
    %c0_i32_0 = arith.constant 0 : i32
    %c0_i32_1 = arith.constant 0 : i32
    return %c0_i32, %c0_i32_0 : i32, i32
  }
  func.func @transform_3(%arg0: i32) -> (i32, i32, i32, i32) {
    %c0_i32 = arith.constant 0 : i32
    %c0_i32_0 = arith.constant 0 : i32
    %c0_i32_1 = arith.constant 0 : i32
    %c0_i32_2 = arith.constant 0 : i32
    return %arg0, %c0_i32, %c0_i32_0, %c0_i32_1 : i32, i32, i32, i32
  }
}

module attributes {stable_mosaic.version = 11 : i64} {
  func.func @_conv_tap_kernel(%arg0: i32, %arg1: memref<1x3x3x64xbf16, #tpu.memory_space<vmem>>, %arg2: memref<4x64x32xbf16, #tpu.memory_space<vmem>>, %arg3: memref<1x32xf32, #tpu.memory_space<vmem>>, %arg4: memref<1x2x2x32xbf16, #tpu.memory_space<vmem>>) attributes {dimension_semantics = [#tpu.dimension_semantics<parallel>], iteration_bounds = array<i64: 2>, scalar_prefetch = 0 : i64, scratch_operands = 0 : i64, tpu.core_type = #tpu.core_type<tc>, window_params = [{transform_indices = @transform_0, window_bounds = array<i64: 1, 3, 3, 64>}, {pipeline_mode = #tpu.pipeline_mode<synchronous>, transform_indices = @transform_1, window_bounds = array<i64: 4, 64, 32>}, {pipeline_mode = #tpu.pipeline_mode<synchronous>, transform_indices = @transform_2, window_bounds = array<i64: 1, 32>}, {transform_indices = @transform_3, window_bounds = array<i64: 1, 2, 2, 32>}]} {
    %c0 = arith.constant 0 : index
    %c0_0 = arith.constant 0 : index
    %c0_1 = arith.constant 0 : index
    %c0_2 = arith.constant 0 : index
    %0 = vector.load %arg1[%c0, %c0_0, %c0_1, %c0_2] : memref<1x3x3x64xbf16, #tpu.memory_space<vmem>>, vector<1x3x3x64xbf16>
    %1 = vector.shape_cast %0 : vector<1x3x3x64xbf16> to vector<3x3x64xbf16>
    %cst = arith.constant 0.000000e+00 : f32
    %2 = vector.broadcast %cst : f32 to vector<4x32xf32>
    %3 = vector.extract_strided_slice %1 {offsets = [0, 0, 0], sizes = [2, 2, 64], strides = [1, 1, 1]} : vector<3x3x64xbf16> to vector<2x2x64xbf16>
    %4 = vector.shape_cast %3 : vector<2x2x64xbf16> to vector<4x64xbf16>
    %c0_3 = arith.constant 0 : index
    %c0_4 = arith.constant 0 : index
    %c0_5 = arith.constant 0 : index
    %5 = vector.load %arg2[%c0_3, %c0_4, %c0_5] : memref<4x64x32xbf16, #tpu.memory_space<vmem>>, vector<1x64x32xbf16>
    %6 = vector.shape_cast %5 : vector<1x64x32xbf16> to vector<64x32xbf16>
    %cst_6 = arith.constant dense<0.000000e+00> : vector<4x32xf32>
    %7 = tpu.matmul %4, %6, %cst_6 {dimension_numbers = #tpu.dot_dimension_numbers<[1], [0], [0], [1], [0, 0, 1, 1], [], []>} : vector<4x64xbf16>, vector<64x32xbf16>, vector<4x32xf32> -> vector<4x32xf32>
    %8 = arith.addf %2, %7 : vector<4x32xf32>
    %9 = vector.extract_strided_slice %1 {offsets = [0, 1, 0], sizes = [2, 2, 64], strides = [1, 1, 1]} : vector<3x3x64xbf16> to vector<2x2x64xbf16>
    %10 = vector.shape_cast %9 : vector<2x2x64xbf16> to vector<4x64xbf16>
    %c1 = arith.constant 1 : index
    %c0_7 = arith.constant 0 : index
    %c0_8 = arith.constant 0 : index
    %11 = vector.load %arg2[%c1, %c0_7, %c0_8] : memref<4x64x32xbf16, #tpu.memory_space<vmem>>, vector<1x64x32xbf16>
    %12 = vector.shape_cast %11 : vector<1x64x32xbf16> to vector<64x32xbf16>
    %cst_9 = arith.constant dense<0.000000e+00> : vector<4x32xf32>
    %13 = tpu.matmul %10, %12, %cst_9 {dimension_numbers = #tpu.dot_dimension_numbers<[1], [0], [0], [1], [0, 0, 1, 1], [], []>} : vector<4x64xbf16>, vector<64x32xbf16>, vector<4x32xf32> -> vector<4x32xf32>
    %14 = arith.addf %8, %13 : vector<4x32xf32>
    %15 = vector.extract_strided_slice %1 {offsets = [1, 0, 0], sizes = [2, 2, 64], strides = [1, 1, 1]} : vector<3x3x64xbf16> to vector<2x2x64xbf16>
    %16 = vector.shape_cast %15 : vector<2x2x64xbf16> to vector<4x64xbf16>
    %c2 = arith.constant 2 : index
    %c0_10 = arith.constant 0 : index
    %c0_11 = arith.constant 0 : index
    %17 = vector.load %arg2[%c2, %c0_10, %c0_11] : memref<4x64x32xbf16, #tpu.memory_space<vmem>>, vector<1x64x32xbf16>
    %18 = vector.shape_cast %17 : vector<1x64x32xbf16> to vector<64x32xbf16>
    %cst_12 = arith.constant dense<0.000000e+00> : vector<4x32xf32>
    %19 = tpu.matmul %16, %18, %cst_12 {dimension_numbers = #tpu.dot_dimension_numbers<[1], [0], [0], [1], [0, 0, 1, 1], [], []>} : vector<4x64xbf16>, vector<64x32xbf16>, vector<4x32xf32> -> vector<4x32xf32>
    %20 = arith.addf %14, %19 : vector<4x32xf32>
    %21 = vector.extract_strided_slice %1 {offsets = [1, 1, 0], sizes = [2, 2, 64], strides = [1, 1, 1]} : vector<3x3x64xbf16> to vector<2x2x64xbf16>
    %22 = vector.shape_cast %21 : vector<2x2x64xbf16> to vector<4x64xbf16>
    %c3 = arith.constant 3 : index
    %c0_13 = arith.constant 0 : index
    %c0_14 = arith.constant 0 : index
    %23 = vector.load %arg2[%c3, %c0_13, %c0_14] : memref<4x64x32xbf16, #tpu.memory_space<vmem>>, vector<1x64x32xbf16>
    %24 = vector.shape_cast %23 : vector<1x64x32xbf16> to vector<64x32xbf16>
    %cst_15 = arith.constant dense<0.000000e+00> : vector<4x32xf32>
    %25 = tpu.matmul %22, %24, %cst_15 {dimension_numbers = #tpu.dot_dimension_numbers<[1], [0], [0], [1], [0, 0, 1, 1], [], []>} : vector<4x64xbf16>, vector<64x32xbf16>, vector<4x32xf32> -> vector<4x32xf32>
    %26 = arith.addf %20, %25 : vector<4x32xf32>
    %c0_16 = arith.constant 0 : index
    %c0_17 = arith.constant 0 : index
    %27 = vector.load %arg3[%c0_16, %c0_17] : memref<1x32xf32, #tpu.memory_space<vmem>>, vector<1x32xf32>
    %28 = vector.broadcast %27 : vector<1x32xf32> to vector<4x32xf32>
    %29 = arith.addf %26, %28 : vector<4x32xf32>
    %cst_18 = arith.constant 0.000000e+00 : f32
    %30 = vector.broadcast %cst_18 : f32 to vector<4x32xf32>
    %31 = arith.maximumf %29, %30 : vector<4x32xf32>
    %32 = vector.shape_cast %31 : vector<4x32xf32> to vector<2x2x32xf32>
    %33 = arith.truncf %32 : vector<2x2x32xf32> to vector<2x2x32xbf16>
    %c0_19 = arith.constant 0 : index
    %c0_20 = arith.constant 0 : index
    %c0_21 = arith.constant 0 : index
    %c0_22 = arith.constant 0 : index
    %34 = vector.load %arg4[%c0_19, %c0_20, %c0_21, %c0_22] : memref<1x2x2x32xbf16, #tpu.memory_space<vmem>>, vector<1x2x2x32xbf16>
    %35 = vector.shape_cast %34 : vector<1x2x2x32xbf16> to vector<2x2x32xbf16>
    %36 = vector.shape_cast %33 : vector<2x2x32xbf16> to vector<1x2x2x32xbf16>
    tpu.vector_store %arg4[%c0_19, %c0_20, %c0_21, %c0_22], %36 {strides = array<i32>} : memref<1x2x2x32xbf16, #tpu.memory_space<vmem>>, vector<1x2x2x32xbf16>,
    return
  }
  func.func @transform_0(%arg0: i32) -> (i32, i32, i32, i32) {
    %c0_i32 = arith.constant 0 : i32
    %c0_i32_0 = arith.constant 0 : i32
    %c0_i32_1 = arith.constant 0 : i32
    %c0_i32_2 = arith.constant 0 : i32
    return %arg0, %c0_i32, %c0_i32_0, %c0_i32_1 : i32, i32, i32, i32
  }
  func.func @transform_1(%arg0: i32) -> (i32, i32, i32) {
    %c0_i32 = arith.constant 0 : i32
    %c0_i32_0 = arith.constant 0 : i32
    %c0_i32_1 = arith.constant 0 : i32
    %c0_i32_2 = arith.constant 0 : i32
    return %c0_i32, %c0_i32_0, %c0_i32_1 : i32, i32, i32
  }
  func.func @transform_2(%arg0: i32) -> (i32, i32) {
    %c0_i32 = arith.constant 0 : i32
    %c0_i32_0 = arith.constant 0 : i32
    %c0_i32_1 = arith.constant 0 : i32
    return %c0_i32, %c0_i32_0 : i32, i32
  }
  func.func @transform_3(%arg0: i32) -> (i32, i32, i32, i32) {
    %c0_i32 = arith.constant 0 : i32
    %c0_i32_0 = arith.constant 0 : i32
    %c0_i32_1 = arith.constant 0 : i32
    %c0_i32_2 = arith.constant 0 : i32
    return %arg0, %c0_i32, %c0_i32_0, %c0_i32_1 : i32, i32, i32, i32
  }
}

module attributes {stable_mosaic.version = 11 : i64} {
  func.func @_conv_tap_kernel(%arg0: i32, %arg1: memref<1x4x4x32xbf16, #tpu.memory_space<vmem>>, %arg2: memref<9x32x64xbf16, #tpu.memory_space<vmem>>, %arg3: memref<1x64xf32, #tpu.memory_space<vmem>>, %arg4: memref<1x2x2x64xf32, #tpu.memory_space<vmem>>) attributes {dimension_semantics = [#tpu.dimension_semantics<parallel>], iteration_bounds = array<i64: 2>, scalar_prefetch = 0 : i64, scratch_operands = 0 : i64, tpu.core_type = #tpu.core_type<tc>, window_params = [{transform_indices = @transform_0, window_bounds = array<i64: 1, 4, 4, 32>}, {pipeline_mode = #tpu.pipeline_mode<synchronous>, transform_indices = @transform_1, window_bounds = array<i64: 9, 32, 64>}, {pipeline_mode = #tpu.pipeline_mode<synchronous>, transform_indices = @transform_2, window_bounds = array<i64: 1, 64>}, {transform_indices = @transform_3, window_bounds = array<i64: 1, 2, 2, 64>}]} {
    %c0 = arith.constant 0 : index
    %c0_0 = arith.constant 0 : index
    %c0_1 = arith.constant 0 : index
    %c0_2 = arith.constant 0 : index
    %0 = vector.load %arg1[%c0, %c0_0, %c0_1, %c0_2] : memref<1x4x4x32xbf16, #tpu.memory_space<vmem>>, vector<1x4x4x32xbf16>
    %1 = vector.shape_cast %0 : vector<1x4x4x32xbf16> to vector<4x4x32xbf16>
    %cst = arith.constant 0.000000e+00 : f32
    %2 = vector.broadcast %cst : f32 to vector<4x64xf32>
    %3 = vector.extract_strided_slice %1 {offsets = [0, 0, 0], sizes = [2, 2, 32], strides = [1, 1, 1]} : vector<4x4x32xbf16> to vector<2x2x32xbf16>
    %4 = vector.shape_cast %3 : vector<2x2x32xbf16> to vector<4x32xbf16>
    %c0_3 = arith.constant 0 : index
    %c0_4 = arith.constant 0 : index
    %c0_5 = arith.constant 0 : index
    %5 = vector.load %arg2[%c0_3, %c0_4, %c0_5] : memref<9x32x64xbf16, #tpu.memory_space<vmem>>, vector<1x32x64xbf16>
    %6 = vector.shape_cast %5 : vector<1x32x64xbf16> to vector<32x64xbf16>
    %cst_6 = arith.constant dense<0.000000e+00> : vector<4x64xf32>
    %7 = tpu.matmul %4, %6, %cst_6 {dimension_numbers = #tpu.dot_dimension_numbers<[1], [0], [0], [1], [0, 0, 1, 1], [], []>} : vector<4x32xbf16>, vector<32x64xbf16>, vector<4x64xf32> -> vector<4x64xf32>
    %8 = arith.addf %2, %7 : vector<4x64xf32>
    %9 = vector.extract_strided_slice %1 {offsets = [0, 1, 0], sizes = [2, 2, 32], strides = [1, 1, 1]} : vector<4x4x32xbf16> to vector<2x2x32xbf16>
    %10 = vector.shape_cast %9 : vector<2x2x32xbf16> to vector<4x32xbf16>
    %c1 = arith.constant 1 : index
    %c0_7 = arith.constant 0 : index
    %c0_8 = arith.constant 0 : index
    %11 = vector.load %arg2[%c1, %c0_7, %c0_8] : memref<9x32x64xbf16, #tpu.memory_space<vmem>>, vector<1x32x64xbf16>
    %12 = vector.shape_cast %11 : vector<1x32x64xbf16> to vector<32x64xbf16>
    %cst_9 = arith.constant dense<0.000000e+00> : vector<4x64xf32>
    %13 = tpu.matmul %10, %12, %cst_9 {dimension_numbers = #tpu.dot_dimension_numbers<[1], [0], [0], [1], [0, 0, 1, 1], [], []>} : vector<4x32xbf16>, vector<32x64xbf16>, vector<4x64xf32> -> vector<4x64xf32>
    %14 = arith.addf %8, %13 : vector<4x64xf32>
    %15 = vector.extract_strided_slice %1 {offsets = [0, 2, 0], sizes = [2, 2, 32], strides = [1, 1, 1]} : vector<4x4x32xbf16> to vector<2x2x32xbf16>
    %16 = vector.shape_cast %15 : vector<2x2x32xbf16> to vector<4x32xbf16>
    %c2 = arith.constant 2 : index
    %c0_10 = arith.constant 0 : index
    %c0_11 = arith.constant 0 : index
    %17 = vector.load %arg2[%c2, %c0_10, %c0_11] : memref<9x32x64xbf16, #tpu.memory_space<vmem>>, vector<1x32x64xbf16>
    %18 = vector.shape_cast %17 : vector<1x32x64xbf16> to vector<32x64xbf16>
    %cst_12 = arith.constant dense<0.000000e+00> : vector<4x64xf32>
    %19 = tpu.matmul %16, %18, %cst_12 {dimension_numbers = #tpu.dot_dimension_numbers<[1], [0], [0], [1], [0, 0, 1, 1], [], []>} : vector<4x32xbf16>, vector<32x64xbf16>, vector<4x64xf32> -> vector<4x64xf32>
    %20 = arith.addf %14, %19 : vector<4x64xf32>
    %21 = vector.extract_strided_slice %1 {offsets = [1, 0, 0], sizes = [2, 2, 32], strides = [1, 1, 1]} : vector<4x4x32xbf16> to vector<2x2x32xbf16>
    %22 = vector.shape_cast %21 : vector<2x2x32xbf16> to vector<4x32xbf16>
    %c3 = arith.constant 3 : index
    %c0_13 = arith.constant 0 : index
    %c0_14 = arith.constant 0 : index
    %23 = vector.load %arg2[%c3, %c0_13, %c0_14] : memref<9x32x64xbf16, #tpu.memory_space<vmem>>, vector<1x32x64xbf16>
    %24 = vector.shape_cast %23 : vector<1x32x64xbf16> to vector<32x64xbf16>
    %cst_15 = arith.constant dense<0.000000e+00> : vector<4x64xf32>
    %25 = tpu.matmul %22, %24, %cst_15 {dimension_numbers = #tpu.dot_dimension_numbers<[1], [0], [0], [1], [0, 0, 1, 1], [], []>} : vector<4x32xbf16>, vector<32x64xbf16>, vector<4x64xf32> -> vector<4x64xf32>
    %26 = arith.addf %20, %25 : vector<4x64xf32>
    %27 = vector.extract_strided_slice %1 {offsets = [1, 1, 0], sizes = [2, 2, 32], strides = [1, 1, 1]} : vector<4x4x32xbf16> to vector<2x2x32xbf16>
    %28 = vector.shape_cast %27 : vector<2x2x32xbf16> to vector<4x32xbf16>
    %c4 = arith.constant 4 : index
    %c0_16 = arith.constant 0 : index
    %c0_17 = arith.constant 0 : index
    %29 = vector.load %arg2[%c4, %c0_16, %c0_17] : memref<9x32x64xbf16, #tpu.memory_space<vmem>>, vector<1x32x64xbf16>
    %30 = vector.shape_cast %29 : vector<1x32x64xbf16> to vector<32x64xbf16>
    %cst_18 = arith.constant dense<0.000000e+00> : vector<4x64xf32>
    %31 = tpu.matmul %28, %30, %cst_18 {dimension_numbers = #tpu.dot_dimension_numbers<[1], [0], [0], [1], [0, 0, 1, 1], [], []>} : vector<4x32xbf16>, vector<32x64xbf16>, vector<4x64xf32> -> vector<4x64xf32>
    %32 = arith.addf %26, %31 : vector<4x64xf32>
    %33 = vector.extract_strided_slice %1 {offsets = [1, 2, 0], sizes = [2, 2, 32], strides = [1, 1, 1]} : vector<4x4x32xbf16> to vector<2x2x32xbf16>
    %34 = vector.shape_cast %33 : vector<2x2x32xbf16> to vector<4x32xbf16>
    %c5 = arith.constant 5 : index
    %c0_19 = arith.constant 0 : index
    %c0_20 = arith.constant 0 : index
    %35 = vector.load %arg2[%c5, %c0_19, %c0_20] : memref<9x32x64xbf16, #tpu.memory_space<vmem>>, vector<1x32x64xbf16>
    %36 = vector.shape_cast %35 : vector<1x32x64xbf16> to vector<32x64xbf16>
    %cst_21 = arith.constant dense<0.000000e+00> : vector<4x64xf32>
    %37 = tpu.matmul %34, %36, %cst_21 {dimension_numbers = #tpu.dot_dimension_numbers<[1], [0], [0], [1], [0, 0, 1, 1], [], []>} : vector<4x32xbf16>, vector<32x64xbf16>, vector<4x64xf32> -> vector<4x64xf32>
    %38 = arith.addf %32, %37 : vector<4x64xf32>
    %39 = vector.extract_strided_slice %1 {offsets = [2, 0, 0], sizes = [2, 2, 32], strides = [1, 1, 1]} : vector<4x4x32xbf16> to vector<2x2x32xbf16>
    %40 = vector.shape_cast %39 : vector<2x2x32xbf16> to vector<4x32xbf16>
    %c6 = arith.constant 6 : index
    %c0_22 = arith.constant 0 : index
    %c0_23 = arith.constant 0 : index
    %41 = vector.load %arg2[%c6, %c0_22, %c0_23] : memref<9x32x64xbf16, #tpu.memory_space<vmem>>, vector<1x32x64xbf16>
    %42 = vector.shape_cast %41 : vector<1x32x64xbf16> to vector<32x64xbf16>
    %cst_24 = arith.constant dense<0.000000e+00> : vector<4x64xf32>
    %43 = tpu.matmul %40, %42, %cst_24 {dimension_numbers = #tpu.dot_dimension_numbers<[1], [0], [0], [1], [0, 0, 1, 1], [], []>} : vector<4x32xbf16>, vector<32x64xbf16>, vector<4x64xf32> -> vector<4x64xf32>
    %44 = arith.addf %38, %43 : vector<4x64xf32>
    %45 = vector.extract_strided_slice %1 {offsets = [2, 1, 0], sizes = [2, 2, 32], strides = [1, 1, 1]} : vector<4x4x32xbf16> to vector<2x2x32xbf16>
    %46 = vector.shape_cast %45 : vector<2x2x32xbf16> to vector<4x32xbf16>
    %c7 = arith.constant 7 : index
    %c0_25 = arith.constant 0 : index
    %c0_26 = arith.constant 0 : index
    %47 = vector.load %arg2[%c7, %c0_25, %c0_26] : memref<9x32x64xbf16, #tpu.memory_space<vmem>>, vector<1x32x64xbf16>
    %48 = vector.shape_cast %47 : vector<1x32x64xbf16> to vector<32x64xbf16>
    %cst_27 = arith.constant dense<0.000000e+00> : vector<4x64xf32>
    %49 = tpu.matmul %46, %48, %cst_27 {dimension_numbers = #tpu.dot_dimension_numbers<[1], [0], [0], [1], [0, 0, 1, 1], [], []>} : vector<4x32xbf16>, vector<32x64xbf16>, vector<4x64xf32> -> vector<4x64xf32>
    %50 = arith.addf %44, %49 : vector<4x64xf32>
    %51 = vector.extract_strided_slice %1 {offsets = [2, 2, 0], sizes = [2, 2, 32], strides = [1, 1, 1]} : vector<4x4x32xbf16> to vector<2x2x32xbf16>
    %52 = vector.shape_cast %51 : vector<2x2x32xbf16> to vector<4x32xbf16>
    %c8 = arith.constant 8 : index
    %c0_28 = arith.constant 0 : index
    %c0_29 = arith.constant 0 : index
    %53 = vector.load %arg2[%c8, %c0_28, %c0_29] : memref<9x32x64xbf16, #tpu.memory_space<vmem>>, vector<1x32x64xbf16>
    %54 = vector.shape_cast %53 : vector<1x32x64xbf16> to vector<32x64xbf16>
    %cst_30 = arith.constant dense<0.000000e+00> : vector<4x64xf32>
    %55 = tpu.matmul %52, %54, %cst_30 {dimension_numbers = #tpu.dot_dimension_numbers<[1], [0], [0], [1], [0, 0, 1, 1], [], []>} : vector<4x32xbf16>, vector<32x64xbf16>, vector<4x64xf32> -> vector<4x64xf32>
    %56 = arith.addf %50, %55 : vector<4x64xf32>
    %c0_31 = arith.constant 0 : index
    %c0_32 = arith.constant 0 : index
    %57 = vector.load %arg3[%c0_31, %c0_32] : memref<1x64xf32, #tpu.memory_space<vmem>>, vector<1x64xf32>
    %58 = vector.broadcast %57 : vector<1x64xf32> to vector<4x64xf32>
    %59 = arith.addf %56, %58 : vector<4x64xf32>
    %cst_33 = arith.constant 0.000000e+00 : f32
    %60 = vector.broadcast %cst_33 : f32 to vector<4x64xf32>
    %61 = arith.maximumf %59, %60 : vector<4x64xf32>
    %62 = vector.shape_cast %61 : vector<4x64xf32> to vector<2x2x64xf32>
    %c0_34 = arith.constant 0 : index
    %c0_35 = arith.constant 0 : index
    %c0_36 = arith.constant 0 : index
    %c0_37 = arith.constant 0 : index
    %63 = vector.load %arg4[%c0_34, %c0_35, %c0_36, %c0_37] : memref<1x2x2x64xf32, #tpu.memory_space<vmem>>, vector<1x2x2x64xf32>
    %64 = vector.shape_cast %63 : vector<1x2x2x64xf32> to vector<2x2x64xf32>
    %65 = vector.shape_cast %62 : vector<2x2x64xf32> to vector<1x2x2x64xf32>
    tpu.vector_store %arg4[%c0_34, %c0_35, %c0_36, %c0_37], %65 {strides = array<i32>} : memref<1x2x2x64xf32, #tpu.memory_space<vmem>>, vector<1x2x2x64xf32>,
    return
  }
  func.func @transform_0(%arg0: i32) -> (i32, i32, i32, i32) {
    %c0_i32 = arith.constant 0 : i32
    %c0_i32_0 = arith.constant 0 : i32
    %c0_i32_1 = arith.constant 0 : i32
    %c0_i32_2 = arith.constant 0 : i32
    return %arg0, %c0_i32, %c0_i32_0, %c0_i32_1 : i32, i32, i32, i32
  }
  func.func @transform_1(%arg0: i32) -> (i32, i32, i32) {
    %c0_i32 = arith.constant 0 : i32
    %c0_i32_0 = arith.constant 0 : i32
    %c0_i32_1 = arith.constant 0 : i32
    %c0_i32_2 = arith.constant 0 : i32
    return %c0_i32, %c0_i32_0, %c0_i32_1 : i32, i32, i32
  }
  func.func @transform_2(%arg0: i32) -> (i32, i32) {
    %c0_i32 = arith.constant 0 : i32
    %c0_i32_0 = arith.constant 0 : i32
    %c0_i32_1 = arith.constant 0 : i32
    return %c0_i32, %c0_i32_0 : i32, i32
  }
  func.func @transform_3(%arg0: i32) -> (i32, i32, i32, i32) {
    %c0_i32 = arith.constant 0 : i32
    %c0_i32_0 = arith.constant 0 : i32
    %c0_i32_1 = arith.constant 0 : i32
    %c0_i32_2 = arith.constant 0 : i32
    return %arg0, %c0_i32, %c0_i32_0, %c0_i32_1 : i32, i32, i32, i32
  }
}

</mosaic_0001>

<llo_original>
// kernel: backbone_v1_forward.4
$region0: #{backbone_v1_forward.4}
  #allocation0 [shape = 'u32[]', space=smem, size = 0x4, offset = 0x4, fixed_abs, tag = 'smem constant byte address 0x4 - core index']
  #allocation1 [shape = 'u32[144,128]{1,0:T(1,128)}', space=vmem, size = 0x12000, scoped, tag = 'internal scratch']
  %s0 = inlined_call_operand.vmem [shape: bf16[2,9,9,16], index: 0, kind: input, shape index: {}]
  %s1 = inlined_call_operand.vmem [shape: bf16[4,16,8], index: 1, kind: input, shape index: {}]
  %s2 = inlined_call_operand.vmem [shape: f32[1,8], index: 2, kind: input, shape index: {}]
  %s3 = inlined_call_operand.vmem [shape: bf16[2,8,8,8], index: 3, kind: output, shape index: {}]
  %s4 = sld [smem:[#allocation0]]
  $region45: #{backbone_v1_forward.4} parent=0
    _
  %s6 = ssub.s32 1, %s4
  %s7 = scalar_select 0, %s6, %s4
  loop: start=0, step=1, limit=4
  $region2: #{backbone_v1_forward.4} parent=0 // loop_pre_header
    _
  $region3: #{backbone_v1_forward.4} parent=0 // loop_header
    %s9 = sphi 0, %s13
    %p10 = scmp.ge.s32.totalorder %s9, 4
    %s19 = sphi 0, %s21
    %s22 = sphi 0, %s19
    %s23 = sphi 0, %s22
    %s39 = sphi 0, %s23
    %s43 = sphi 0, %s43
    %s45 = sphi 0, %s43
    %s46 = sphi 0, %s45
    %s60 = sphi 0, %s46
    %s64 = sphi 0, %s64
    %s66 = sphi 0, %s64
    %s67 = sphi 0, %s66
    %s81 = sphi 0, %s67
    %s87 = sphi 0, %s89
    %s90 = sphi 0, %s87
    %s91 = sphi 0, %s90
    %s107 = sphi 0, %s91
  $region4: #{backbone_v1_forward.4} parent=0 // loop_header_branch
    %12 = sbr.rel (%p10) target = $region8
  $region5: #{backbone_v1_forward.4} parent=0 // loop_body
    %s14 = ssub.s32 %s9, 1
    %s15 = ssub.s32 %s9, 2
    %s16 = sadd.s32 %s9, 1
    %s17 = ssub.s32 %s9, %s16
    %p18 = scmp.eq.s32.totalorder %s17, 0
    %s20 = sadd.s32 %s19, 1
    %s21 = scalar_select %p18, %s19, %s20
    %p24 = pneg %p18
    %p25 = scmp.eq.s32.totalorder %s9, 1
    %p26 = por %p24, %p25
    %p27 = scmp.ne.s32.totalorder %s19, %s22
    %p28 = scmp.eq.s32.totalorder %s9, 0
    %p29 = por %p27, %p28
    %p30 = scmp.ne.s32.totalorder %s19, %s22
    %p31 = scmp.eq.s32.totalorder %s14, 1
    %p32 = por %p30, %p31
    %p33 = scmp.ne.s32.totalorder %s22, %s23
    %p34 = scmp.eq.s32.totalorder %s14, 0
    %p35 = por %p33, %p34
    %p36 = scmp.ne.s32.totalorder %s22, %s23
    %p37 = scmp.eq.s32.totalorder %s15, 1
    %p38 = por %p36, %p37
    %p40 = scmp.ne.s32.totalorder %s23, %s39
    %p41 = scmp.eq.s32.totalorder %s15, 0
    %p42 = por %p40, %p41
    %s44 = sadd.s32 %s43, 1
    %p47 = scmp.eq.s32.totalorder %s9, 1
    %p48 = scmp.ne.s32.totalorder %s43, %s45
    %p49 = scmp.eq.s32.totalorder %s9, 0
    %p50 = por %p48, %p49
    %p51 = scmp.ne.s32.totalorder %s43, %s45
    %p52 = scmp.eq.s32.totalorder %s14, 1
    %p53 = por %p51, %p52
    %p54 = scmp.ne.s32.totalorder %s45, %s46
    %p55 = scmp.eq.s32.totalorder %s14, 0
    %p56 = por %p54, %p55
    %p57 = scmp.ne.s32.totalorder %s45, %s46
    %p58 = scmp.eq.s32.totalorder %s15, 1
    %p59 = por %p57, %p58
    %p61 = scmp.ne.s32.totalorder %s46, %s60
    %p62 = scmp.eq.s32.totalorder %s15, 0
    %p63 = por %p61, %p62
    %s65 = sadd.s32 %s64, 1
    %p68 = scmp.eq.s32.totalorder %s9, 1
    %p69 = scmp.ne.s32.totalorder %s64, %s66
    %p70 = scmp.eq.s32.totalorder %s9, 0
    %p71 = por %p69, %p70
    %p72 = scmp.ne.s32.totalorder %s64, %s66
    %p73 = scmp.eq.s32.totalorder %s14, 1
    %p74 = por %p72, %p73
    %p75 = scmp.ne.s32.totalorder %s66, %s67
    %p76 = scmp.eq.s32.totalorder %s14, 0
    %p77 = por %p75, %p76
    %p78 = scmp.ne.s32.totalorder %s66, %s67
    %p79 = scmp.eq.s32.totalorder %s15, 1
    %p80 = por %p78, %p79
    %p82 = scmp.ne.s32.totalorder %s67, %s81
    %p83 = scmp.eq.s32.totalorder %s15, 0
    %p84 = por %p82, %p83
    %s85 = ssub.s32 %s9, %s16
    %p86 = scmp.eq.s32.totalorder %s85, 0
    %s88 = sadd.s32 %s87, 1
    %s89 = scalar_select %p86, %s87, %s88
    %p92 = pneg %p86
    %p93 = scmp.eq.s32.totalorder %s9, 1
    %p94 = por %p92, %p93
    %p95 = scmp.ne.s32.totalorder %s87, %s90
    %p96 = scmp.eq.s32.totalorder %s9, 0
    %p97 = por %p95, %p96
    %p98 = scmp.ne.s32.totalorder %s87, %s90
    %p99 = scmp.eq.s32.totalorder %s14, 1
    %p100 = por %p98, %p99
    %p101 = scmp.ne.s32.totalorder %s90, %s91
    %p102 = scmp.eq.s32.totalorder %s14, 0
    %p103 = por %p101, %p102
    %p104 = scmp.ne.s32.totalorder %s90, %s91
    %p105 = scmp.eq.s32.totalorder %s15, 1
    %p106 = por %p104, %p105
    %p108 = scmp.ne.s32.totalorder %s91, %s107
    %p109 = scmp.eq.s32.totalorder %s15, 0
    %p110 = por %p108, %p109
    %p111 = scmp.le.s32.totalorder 1, %s9
    %p112 = scmp.lt.s32.totalorder %s9, 3
    %p113 = pnand %p111, %p112
    %p114 = pneg %p113
    // Predicated region
    $region9: #{backbone_v1_forward.4} parent=5 // pred_check
      _
    $region10: #{backbone_v1_forward.4} parent=5 // pred_check_branch
      %116 = sbr.rel (%p113) target = $region12
    $region11: #{backbone_v1_forward.4} parent=5 // pred_region
      %s117 = ssub.s32 %s9, 1
      // Predicated region
      $region13: #{backbone_v1_forward.4} parent=11 // pred_check
        %p118 = pneg %p56
      $region14: #{backbone_v1_forward.4} parent=11 // pred_check_branch
        %120 = sbr.rel (%p118) target = $region16
      $region15: #{backbone_v1_forward.4} parent=11 // pred_region
        _
      $region16: #{backbone_v1_forward.4} parent=11 // pred_fallthru
        _
      // Predicated region
      $region17: #{backbone_v1_forward.4} parent=11 // pred_check
        %p121 = pneg %p77
      $region18: #{backbone_v1_forward.4} parent=11 // pred_check_branch
        %123 = sbr.rel (%p121) target = $region20
      $region19: #{backbone_v1_forward.4} parent=11 // pred_region
        _
      $region20: #{backbone_v1_forward.4} parent=11 // pred_fallthru
        _
    $region12: #{backbone_v1_forward.4} parent=5 // pred_fallthru
      _
    %p124 = scmp.lt.s32.totalorder %s9, 2
    // Predicated region
    $region21: #{backbone_v1_forward.4} parent=5 // pred_check
      %p125 = pneg %p124
    $region22: #{backbone_v1_forward.4} parent=5 // pred_check_branch
      %127 = sbr.rel (%p125) target = $region24
    $region23: #{backbone_v1_forward.4} parent=5 // pred_region
      // Predicated region
      $region25: #{backbone_v1_forward.4} parent=23 // pred_check
        %p128 = pneg %p29
      $region26: #{backbone_v1_forward.4} parent=23 // pred_check_branch
        %130 = sbr.rel (%p128) target = $region28
      $region27: #{backbone_v1_forward.4} parent=23 // pred_region
        %p131 = scmp.lt.s32.totalorder %s9, 1
        %s132 = scalar_select %p131, %s9, 1
        %s133 = smul.addr %s132, 18
        %s134 = smul.addr %s133, 4
        %s135 = scalar_lea.vmem %s0, %s134
      $region28: #{backbone_v1_forward.4} parent=23 // pred_fallthru
        _
    $region24: #{backbone_v1_forward.4} parent=5 // pred_fallthru
      _
    %p136 = scmp.le.s32.totalorder 1, %s9
    %p137 = scmp.lt.s32.totalorder %s9, 3
    %p138 = pnand %p136, %p137
    %p139 = pneg %p138
    // Predicated region
    $region29: #{backbone_v1_forward.4} parent=5 // pred_check
      _
    $region30: #{backbone_v1_forward.4} parent=5 // pred_check_branch
      %141 = sbr.rel (%p138) target = $region32
    $region31: #{backbone_v1_forward.4} parent=5 // pred_region
      %s142 = ssub.s32 %s9, 1
      %p143 = scmp.lt.s32.totalorder %s14, 1
      %s144 = scalar_select %p143, %s14, 1
      %s145 = smul.addr %s144, 18
      %s146 = smul.addr %s145, 4
      %s147 = scalar_lea.vmem %s0, %s146
      %p148 = pneg %p35
      %p149 = pneg %p32
      %p150 = pneg %p56
      %p151 = pneg %p53
      %p152 = pneg %p77
      %p153 = pneg %p74
      %p154 = pneg %p103
      %p155 = pneg %p100
      %p156 = scmp.lt.s32.totalorder %s14, 1
      %s157 = scalar_select %p156, %s14, 1
      %s158 = smul.addr %s157, 8
      %s159 = smul.addr %s158, 4
      %s160 = scalar_lea.vmem %s3, %s159
      %p161 = scmp.lt.s32.totalorder %s14, 1
      %s162 = scalar_select %p161, %s14, 1
      %s163 = smul.addr %s162, 18
      %s164 = smul.addr %s163, 4
      %s165 = scalar_lea.vmem %s0, %s164
      %p166 = scmp.lt.s32.totalorder %s14, 1
      %s167 = scalar_select %p166, %s14, 1
      %s168 = smul.addr %s167, 8
      %s169 = smul.addr %s168, 4
      %s170 = scalar_lea.vmem %s3, %s169
      %v172 = vld [vmem:[%s165] sm:$0xf]
      %v173 = vld [vmem:[%s165 + $0x4] sm:$0x1]
      %v174 = vld [vmem:[%s165 + $0x8] sm:$0xf]
      %v175 = vld [vmem:[%s165 + $0xc] sm:$0x1]
      %v176 = vld [vmem:[%s165 + $0x10] sm:$0xf]
      %v177 = vld [vmem:[%s165 + $0x14] sm:$0x1]
      %v178 = vld [vmem:[%s165 + $0x18] sm:$0xf]
      %v179 = vld [vmem:[%s165 + $0x1c] sm:$0x1]
      %v180 = vld [vmem:[%s165 + $0x20] sm:$0xf]
      %v181 = vld [vmem:[%s165 + $0x24] sm:$0x1]
      %v182 = vld [vmem:[%s165 + $0x28] sm:$0xf]
      %v183 = vld [vmem:[%s165 + $0x2c] sm:$0x1]
      %v184 = vld [vmem:[%s165 + $0x30] sm:$0xf]
      %v185 = vld [vmem:[%s165 + $0x34] sm:$0x1]
      %v186 = vld [vmem:[%s165 + $0x38] sm:$0xf]
      %v187 = vld [vmem:[%s165 + $0x3c] sm:$0x1]
      %v188 = vld [vmem:[%s165 + $0x40] sm:$0xf]
      %v189 = vld [vmem:[%s165 + $0x44] sm:$0x1]
      %v190 = vld [vmem:[%s1] sm:$0xf]
      %v191 = vld [vmem:[%s1 + $0x4] sm:$0xf]
      %vm192 = vsmask.f32 3328
      %vm193 = vsmask.f32 7440
      %vm194 = vmor %vm192, %vm193
      %v196 = vshrl.u32 %v172, 16
      %v198 = vrot.slane %v196, 4
      %v199 = vshll.u32 %v172, 16
      %v201 = vrot.slane %v199, 5
      %v202 = vor.u32 %v198, %v201
      %v203 = vrot.slane %v202, 4
      %v205 = vshll.u32 %v173, 16
      %v207 = vrot.slane %v205, 5
      %v208 = vsel %vm194, %v203, %v207
      %v210 = vshrl.u32 %v174, 16
      %v212 = vrot.slane %v210, 4
      %v213 = vshll.u32 %v174, 16
      %v215 = vrot.slane %v213, 5
      %v216 = vor.u32 %v212, %v215
      %v217 = vrot.slane %v216, 4
      %v219 = vshll.u32 %v175, 16
      %v221 = vrot.slane %v219, 5
      %v222 = vsel %vm194, %v217, %v221
      %v224 = vshrl.u32 %v176, 16
      %v226 = vrot.slane %v224, 4
      %v227 = vshll.u32 %v176, 16
      %v229 = vrot.slane %v227, 5
      %v230 = vor.u32 %v226, %v229
      %v231 = vrot.slane %v230, 4
      %v233 = vshll.u32 %v177, 16
      %v235 = vrot.slane %v233, 5
      %v236 = vsel %vm194, %v231, %v235
      %v238 = vshrl.u32 %v178, 16
      %v240 = vrot.slane %v238, 4
      %v241 = vshll.u32 %v178, 16
      %v243 = vrot.slane %v241, 5
      %v244 = vor.u32 %v240, %v243
      %v245 = vrot.slane %v244, 4
      %v247 = vshll.u32 %v179, 16
      %v249 = vrot.slane %v247, 5
      %v250 = vsel %vm194, %v245, %v249
      %v252 = vshrl.u32 %v180, 16
      %v254 = vrot.slane %v252, 4
      %v255 = vshll.u32 %v180, 16
      %v257 = vrot.slane %v255, 5
      %v258 = vor.u32 %v254, %v257
      %v259 = vrot.slane %v258, 4
      %v261 = vshll.u32 %v181, 16
      %v263 = vrot.slane %v261, 5
      %v264 = vsel %vm194, %v259, %v263
      %v266 = vshrl.u32 %v182, 16
      %v268 = vrot.slane %v266, 4
      %v269 = vshll.u32 %v182, 16
      %v271 = vrot.slane %v269, 5
      %v272 = vor.u32 %v268, %v271
      %v273 = vrot.slane %v272, 4
      %v275 = vshll.u32 %v183, 16
      %v277 = vrot.slane %v275, 5
      %v278 = vsel %vm194, %v273, %v277
      %v280 = vshrl.u32 %v184, 16
      %v282 = vrot.slane %v280, 4
      %v283 = vshll.u32 %v184, 16
      %v285 = vrot.slane %v283, 5
      %v286 = vor.u32 %v282, %v285
      %v287 = vrot.slane %v286, 4
      %v289 = vshll.u32 %v185, 16
      %v291 = vrot.slane %v289, 5
      %v292 = vsel %vm194, %v287, %v291
      %v294 = vshrl.u32 %v186, 16
      %v296 = vrot.slane %v294, 4
      %v297 = vshll.u32 %v186, 16
      %v299 = vrot.slane %v297, 5
      %v300 = vor.u32 %v296, %v299
      %v301 = vrot.slane %v300, 4
      %v303 = vshll.u32 %v187, 16
      %v305 = vrot.slane %v303, 5
      %v306 = vsel %vm194, %v301, %v305
      %s307 = scalar_lea.vmem %s1, 8
      %v308 = vld [vmem:[%s307] sm:$0xf]
      %v309 = vld [vmem:[%s307 + $0x4] sm:$0xf]
      %v310 = vunpack.c.l.b16 %v208
      %v311 = vunpack.c.l.b16 %v222
      %v312 = vunpack.c.l.b16 %v236
      %v313 = vunpack.c.l.b16 %v250
      %v314 = vunpack.c.l.b16 %v264
      %v315 = vunpack.c.l.b16 %v278
      %v316 = vunpack.c.l.b16 %v292
      %v317 = vunpack.c.l.b16 %v306
      %v318 = vpack.c.b16 %v311, %v310
      %v319 = vpack.c.b16 %v313, %v312
      %v320 = vpack.c.b16 %v315, %v314
      %v321 = vpack.c.b16 %v317, %v316
      %v324 = vunpack.c.l.b16 %v308
      %v325 = vunpack.c.l.b16 %v309
      %v326 = vpack.c.b16 %v325, %v324
      %vm328 = vcmask 130048
      %v330 = vsel %vm328, %v318, 0
      %v333 = vsel %vm328, %v319, 0
      %v336 = vsel %vm328, %v320, 0
      %v339 = vsel %vm328, %v321, 0
      %341 = vmatprep.subr.bf16.mxu0 0
      %342 = vmatpush1.bf16.msra.mxu0 %v326
      %343 = vmatprep.subr.bf16.mxu0 0
      %344 = vmatpush1.bf16.msra.mxu0 0
      %345 = vmatprep.subr.bf16.mxu0 0
      %346 = vmatpush1.bf16.msra.mxu0 0
      %347 = vmatprep.subr.bf16.mxu0 0
      %348 = vmatpush1.bf16.msra.mxu0 0
      %349 = vmatprep.subr.bf16.mxu0 0
      %350 = vmatpush1.bf16.msra.mxu0 0
      %351 = vmatprep.subr.bf16.mxu0 0
      %352 = vmatpush1.bf16.msra.mxu0 0
      %353 = vmatprep.subr.bf16.mxu0 0
      %354 = vmatpush1.bf16.msra.mxu0 0
      %355 = vmatprep.subr.bf16.mxu0 0
      %356 = vmatpush1.bf16.msra.mxu0 0
      %357 = vmatprep.subr.bf16.mxu0 0
      %358 = vmatpush1.bf16.msra.mxu0 0
      %359 = vmatprep.subr.bf16.mxu0 0
      %360 = vmatpush1.bf16.msra.mxu0 0
      %361 = vmatprep.subr.bf16.mxu0 0
      %362 = vmatpush1.bf16.msra.mxu0 0
      %363 = vmatprep.subr.bf16.mxu0 0
      %364 = vmatpush1.bf16.msra.mxu0 0
      %365 = vmatprep.subr.bf16.mxu0 0
      %366 = vmatpush1.bf16.msra.mxu0 0
      %367 = vmatprep.subr.bf16.mxu0 0
      %368 = vmatpush1.bf16.msra.mxu0 0
      %369 = vmatprep.subr.bf16.mxu0 0
      %370 = vmatpush1.bf16.msra.mxu0 0
      %371 = vmatprep.subr.bf16.mxu0 0
      %372 = vmatpush1.bf16.msra.mxu0 0
      %373 = vmatprep.mubr.bf16.mxu0 0
      %374 = vmatmul.mubr.bf16.gmra.mrb[0].mxu0 %v330
      %v375 = vpop.f32.mrb[0].mxu0
      %v376 = vadd.f32 0.0, %v375
      %v377 = vpop.f32.mrb[0].mxu0
      %v378 = vpop.f32.mrb[0].mxu0
      %v379 = vadd.f32 0.0, %v378
      %v380 = vpop.f32.mrb[0].mxu0
      %381 = vmatprep.mubr.bf16.mxu0 0
      %382 = vmatmul.mubr.bf16.gmra.mrb[0].mxu0 %v333
      %v383 = vpop.f32.mrb[0].mxu0
      %v384 = vadd.f32 0.0, %v383
      %v385 = vpop.f32.mrb[0].mxu0
      %v386 = vpop.f32.mrb[0].mxu0
      %v387 = vadd.f32 0.0, %v386
      %v388 = vpop.f32.mrb[0].mxu0
      %389 = vmatprep.mubr.bf16.mxu0 0
      %390 = vmatmul.mubr.bf16.gmra.mrb[0].mxu0 %v336
      %v391 = vpop.f32.mrb[0].mxu0
      %v392 = vadd.f32 0.0, %v391
      %v393 = vpop.f32.mrb[0].mxu0
      %v394 = vpop.f32.mrb[0].mxu0
      %v395 = vadd.f32 0.0, %v394
      %v396 = vpop.f32.mrb[0].mxu0
      %397 = vmatprep.mubr.bf16.mxu0 0
      %398 = vmatmul.mubr.bf16.gmra.mrb[0].mxu0 %v339
      %v399 = vpop.f32.mrb[0].mxu0
      %v400 = vadd.f32 0.0, %v399
      %v401 = vpop.f32.mrb[0].mxu0
      %v402 = vpop.f32.mrb[0].mxu0
      %v403 = vadd.f32 0.0, %v402
      %v404 = vpop.f32.mrb[0].mxu0
      %405 = vdwg.mxu0
      %v414 = vunpack.c.l.b16 %v172
      %v415 = vunpack.c.l.b16 %v174
      %v416 = vunpack.c.l.b16 %v176
      %v417 = vunpack.c.l.b16 %v178
      %v418 = vunpack.c.l.b16 %v180
      %v419 = vunpack.c.l.b16 %v182
      %v420 = vunpack.c.l.b16 %v184
      %v421 = vunpack.c.l.b16 %v186
      %v422 = vpack.c.b16 %v415, %v414
      %v423 = vpack.c.b16 %v417, %v416
      %v424 = vpack.c.b16 %v419, %v418
      %v425 = vpack.c.b16 %v421, %v420
      %v428 = vunpack.c.l.b16 %v190
      %v429 = vunpack.c.l.b16 %v191
      %v430 = vpack.c.b16 %v429, %v428
      %v433 = vsel %vm328, %v422, 0
      %v436 = vsel %vm328, %v423, 0
      %v439 = vsel %vm328, %v424, 0
      %v442 = vsel %vm328, %v425, 0
      %444 = vmatprep.subr.bf16.mxu0 0
      %445 = vmatpush1.bf16.msra.mxu0 %v430
      %446 = vmatprep.subr.bf16.mxu0 0
      %447 = vmatpush1.bf16.msra.mxu0 0
      %448 = vmatprep.subr.bf16.mxu0 0
      %449 = vmatpush1.bf16.msra.mxu0 0
      %450 = vmatprep.subr.bf16.mxu0 0
      %451 = vmatpush1.bf16.msra.mxu0 0
      %452 = vmatprep.subr.bf16.mxu0 0
      %453 = vmatpush1.bf16.msra.mxu0 0
      %454 = vmatprep.subr.bf16.mxu0 0
      %455 = vmatpush1.bf16.msra.mxu0 0
      %456 = vmatprep.subr.bf16.mxu0 0
      %457 = vmatpush1.bf16.msra.mxu0 0
      %458 = vmatprep.subr.bf16.mxu0 0
      %459 = vmatpush1.bf16.msra.mxu0 0
      %460 = vmatprep.subr.bf16.mxu0 0
      %461 = vmatpush1.bf16.msra.mxu0 0
      %462 = vmatprep.subr.bf16.mxu0 0
      %463 = vmatpush1.bf16.msra.mxu0 0
      %464 = vmatprep.subr.bf16.mxu0 0
      %465 = vmatpush1.bf16.msra.mxu0 0
      %466 = vmatprep.subr.bf16.mxu0 0
      %467 = vmatpush1.bf16.msra.mxu0 0
      %468 = vmatprep.subr.bf16.mxu0 0
      %469 = vmatpush1.bf16.msra.mxu0 0
      %470 = vmatprep.subr.bf16.mxu0 0
      %471 = vmatpush1.bf16.msra.mxu0 0
      %472 = vmatprep.subr.bf16.mxu0 0
      %473 = vmatpush1.bf16.msra.mxu0 0
      %474 = vmatprep.subr.bf16.mxu0 0
      %475 = vmatpush1.bf16.msra.mxu0 0
      %476 = vmatprep.mubr.bf16.mxu0 0
      %477 = vmatmul.mubr.bf16.gmra.mrb[0].mxu0 %v433
      %v478 = vpop.f32.mrb[0].mxu0
      %v479 = vadd.f32 %v376, %v478
      %v480 = vpop.f32.mrb[0].mxu0
      %v481 = vpop.f32.mrb[0].mxu0
      %v482 = vadd.f32 %v379, %v481
      %v483 = vpop.f32.mrb[0].mxu0
      %484 = vmatprep.mubr.bf16.mxu0 0
      %485 = vmatmul.mubr.bf16.gmra.mrb[0].mxu0 %v436
      %v486 = vpop.f32.mrb[0].mxu0
      %v487 = vadd.f32 %v384, %v486
      %v488 = vpop.f32.mrb[0].mxu0
      %v489 = vpop.f32.mrb[0].mxu0
      %v490 = vadd.f32 %v387, %v489
      %v491 = vpop.f32.mrb[0].mxu0
      %492 = vmatprep.mubr.bf16.mxu0 0
      %493 = vmatmul.mubr.bf16.gmra.mrb[0].mxu0 %v439
      %v494 = vpop.f32.mrb[0].mxu0
      %v495 = vadd.f32 %v392, %v494
      %v496 = vpop.f32.mrb[0].mxu0
      %v497 = vpop.f32.mrb[0].mxu0
      %v498 = vadd.f32 %v395, %v497
      %v499 = vpop.f32.mrb[0].mxu0
      %500 = vmatprep.mubr.bf16.mxu0 0
      %501 = vmatmul.mubr.bf16.gmra.mrb[0].mxu0 %v442
      %v502 = vpop.f32.mrb[0].mxu0
      %v503 = vadd.f32 %v400, %v502
      %v504 = vpop.f32.mrb[0].mxu0
      %v505 = vpop.f32.mrb[0].mxu0
      %v506 = vadd.f32 %v403, %v505
      %v507 = vpop.f32.mrb[0].mxu0
      %508 = vdwg.mxu0
      %s509 = scalar_lea.vmem %s1, 16
      %v510 = vld [vmem:[%s509] sm:$0xf]
      %v511 = vld [vmem:[%s509 + $0x4] sm:$0xf]
      %v513 = vunpack.c.l.b16 %v188
      %v514 = vpack.c.b16 %v416, %v415
      %v515 = vpack.c.b16 %v418, %v417
      %v516 = vpack.c.b16 %v420, %v419
      %v517 = vpack.c.b16 %v513, %v421
      %v520 = vunpack.c.l.b16 %v510
      %v521 = vunpack.c.l.b16 %v511
      %v522 = vpack.c.b16 %v521, %v520
      %v525 = vsel %vm328, %v514, 0
      %v528 = vsel %vm328, %v515, 0
      %v531 = vsel %vm328, %v516, 0
      %v534 = vsel %vm328, %v517, 0
      %536 = vmatprep.subr.bf16.mxu0 0
      %537 = vmatpush1.bf16.msra.mxu0 %v522
      %538 = vmatprep.subr.bf16.mxu0 0
      %539 = vmatpush1.bf16.msra.mxu0 0
      %540 = vmatprep.subr.bf16.mxu0 0
      %541 = vmatpush1.bf16.msra.mxu0 0
      %542 = vmatprep.subr.bf16.mxu0 0
      %543 = vmatpush1.bf16.msra.mxu0 0
      %544 = vmatprep.subr.bf16.mxu0 0
      %545 = vmatpush1.bf16.msra.mxu0 0
      %546 = vmatprep.subr.bf16.mxu0 0
      %547 = vmatpush1.bf16.msra.mxu0 0
      %548 = vmatprep.subr.bf16.mxu0 0
      %549 = vmatpush1.bf16.msra.mxu0 0
      %550 = vmatprep.subr.bf16.mxu0 0
      %551 = vmatpush1.bf16.msra.mxu0 0
      %552 = vmatprep.subr.bf16.mxu0 0
      %553 = vmatpush1.bf16.msra.mxu0 0
      %554 = vmatprep.subr.bf16.mxu0 0
      %555 = vmatpush1.bf16.msra.mxu0 0
      %556 = vmatprep.subr.bf16.mxu0 0
      %557 = vmatpush1.bf16.msra.mxu0 0
      %558 = vmatprep.subr.bf16.mxu0 0
      %559 = vmatpush1.bf16.msra.mxu0 0
      %560 = vmatprep.subr.bf16.mxu0 0
      %561 = vmatpush1.bf16.msra.mxu0 0
      %562 = vmatprep.subr.bf16.mxu0 0
      %563 = vmatpush1.bf16.msra.mxu0 0
      %564 = vmatprep.subr.bf16.mxu0 0
      %565 = vmatpush1.bf16.msra.mxu0 0
      %566 = vmatprep.subr.bf16.mxu0 0
      %567 = vmatpush1.bf16.msra.mxu0 0
      %568 = vmatprep.mubr.bf16.mxu0 0
      %569 = vmatmul.mubr.bf16.gmra.mrb[0].mxu0 %v525
      %v570 = vpop.f32.mrb[0].mxu0
      %v571 = vadd.f32 0.0, %v570
      %v572 = vpop.f32.mrb[0].mxu0
      %v573 = vpop.f32.mrb[0].mxu0
      %v574 = vadd.f32 0.0, %v573
      %v575 = vpop.f32.mrb[0].mxu0
      %576 = vmatprep.mubr.bf16.mxu0 0
      %577 = vmatmul.mubr.bf16.gmra.mrb[0].mxu0 %v528
      %v578 = vpop.f32.mrb[0].mxu0
      %v579 = vadd.f32 0.0, %v578
      %v580 = vpop.f32.mrb[0].mxu0
      %v581 = vpop.f32.mrb[0].mxu0
      %v582 = vadd.f32 0.0, %v581
      %v583 = vpop.f32.mrb[0].mxu0
      %584 = vmatprep.mubr.bf16.mxu0 0
      %585 = vmatmul.mubr.bf16.gmra.mrb[0].mxu0 %v531
      %v586 = vpop.f32.mrb[0].mxu0
      %v587 = vadd.f32 0.0, %v586
      %v588 = vpop.f32.mrb[0].mxu0
      %v589 = vpop.f32.mrb[0].mxu0
      %v590 = vadd.f32 0.0, %v589
      %v591 = vpop.f32.mrb[0].mxu0
      %592 = vmatprep.mubr.bf16.mxu0 0
      %593 = vmatmul.mubr.bf16.gmra.mrb[0].mxu0 %v534
      %v594 = vpop.f32.mrb[0].mxu0
      %v595 = vadd.f32 0.0, %v594
      %v596 = vpop.f32.mrb[0].mxu0
      %v597 = vpop.f32.mrb[0].mxu0
      %v598 = vadd.f32 0.0, %v597
      %v599 = vpop.f32.mrb[0].mxu0
      %600 = vdwg.mxu0
      %v601 = vadd.f32 %v479, %v571
      %v602 = vadd.f32 %v482, %v574
      %v603 = vadd.f32 %v487, %v579
      %v604 = vadd.f32 %v490, %v582
      %v605 = vadd.f32 %v495, %v587
      %v606 = vadd.f32 %v498, %v590
      %v607 = vadd.f32 %v503, %v595
      %v608 = vadd.f32 %v506, %v598
      %v610 = vshrl.u32 %v188, 16
      %v612 = vrot.slane %v610, 4
      %v613 = vshll.u32 %v188, 16
      %v615 = vrot.slane %v613, 5
      %v616 = vor.u32 %v612, %v615
      %v617 = vrot.slane %v616, 4
      %v619 = vshll.u32 %v189, 16
      %v621 = vrot.slane %v619, 5
      %v622 = vsel %vm194, %v617, %v621
      %s623 = scalar_lea.vmem %s1, 24
      %v624 = vld [vmem:[%s623] sm:$0xf]
      %v625 = vld [vmem:[%s623 + $0x4] sm:$0xf]
      %v626 = vunpack.c.l.b16 %v622
      %v627 = vpack.c.b16 %v312, %v311
      %v628 = vpack.c.b16 %v314, %v313
      %v629 = vpack.c.b16 %v316, %v315
      %v630 = vpack.c.b16 %v626, %v317
      %v633 = vunpack.c.l.b16 %v624
      %v634 = vunpack.c.l.b16 %v625
      %v635 = vpack.c.b16 %v634, %v633
      %v638 = vsel %vm328, %v627, 0
      %v641 = vsel %vm328, %v628, 0
      %v644 = vsel %vm328, %v629, 0
      %v647 = vsel %vm328, %v630, 0
      %649 = vmatprep.subr.bf16.mxu0 0
      %650 = vmatpush1.bf16.msra.mxu0 %v635
      %651 = vmatprep.subr.bf16.mxu0 0
      %652 = vmatpush1.bf16.msra.mxu0 0
      %653 = vmatprep.subr.bf16.mxu0 0
      %654 = vmatpush1.bf16.msra.mxu0 0
      %655 = vmatprep.subr.bf16.mxu0 0
      %656 = vmatpush1.bf16.msra.mxu0 0
      %657 = vmatprep.subr.bf16.mxu0 0
      %658 = vmatpush1.bf16.msra.mxu0 0
      %659 = vmatprep.subr.bf16.mxu0 0
      %660 = vmatpush1.bf16.msra.mxu0 0
      %661 = vmatprep.subr.bf16.mxu0 0
      %662 = vmatpush1.bf16.msra.mxu0 0
      %663 = vmatprep.subr.bf16.mxu0 0
      %664 = vmatpush1.bf16.msra.mxu0 0
      %665 = vmatprep.subr.bf16.mxu0 0
      %666 = vmatpush1.bf16.msra.mxu0 0
      %667 = vmatprep.subr.bf16.mxu0 0
      %668 = vmatpush1.bf16.msra.mxu0 0
      %669 = vmatprep.subr.bf16.mxu0 0
      %670 = vmatpush1.bf16.msra.mxu0 0
      %671 = vmatprep.subr.bf16.mxu0 0
      %672 = vmatpush1.bf16.msra.mxu0 0
      %673 = vmatprep.subr.bf16.mxu0 0
      %674 = vmatpush1.bf16.msra.mxu0 0
      %675 = vmatprep.subr.bf16.mxu0 0
      %676 = vmatpush1.bf16.msra.mxu0 0
      %677 = vmatprep.subr.bf16.mxu0 0
      %678 = vmatpush1.bf16.msra.mxu0 0
      %679 = vmatprep.subr.bf16.mxu0 0
      %680 = vmatpush1.bf16.msra.mxu0 0
      %681 = vmatprep.mubr.bf16.mxu0 0
      %682 = vmatmul.mubr.bf16.gmra.mrb[0].mxu0 %v638
      %v683 = vpop.f32.mrb[0].mxu0
      %v684 = vadd.f32 0.0, %v683
      %v685 = vpop.f32.mrb[0].mxu0
      %v686 = vpop.f32.mrb[0].mxu0
      %v687 = vadd.f32 0.0, %v686
      %v688 = vpop.f32.mrb[0].mxu0
      %689 = vmatprep.mubr.bf16.mxu0 0
      %690 = vmatmul.mubr.bf16.gmra.mrb[0].mxu0 %v641
      %v691 = vpop.f32.mrb[0].mxu0
      %v692 = vadd.f32 0.0, %v691
      %v693 = vpop.f32.mrb[0].mxu0
      %v694 = vpop.f32.mrb[0].mxu0
      %v695 = vadd.f32 0.0, %v694
      %v696 = vpop.f32.mrb[0].mxu0
      %697 = vmatprep.mubr.bf16.mxu0 0
      %698 = vmatmul.mubr.bf16.gmra.mrb[0].mxu0 %v644
      %v699 = vpop.f32.mrb[0].mxu0
      %v700 = vadd.f32 0.0, %v699
      %v701 = vpop.f32.mrb[0].mxu0
      %v702 = vpop.f32.mrb[0].mxu0
      %v703 = vadd.f32 0.0, %v702
      %v704 = vpop.f32.mrb[0].mxu0
      %705 = vmatprep.mubr.bf16.mxu0 0
      %706 = vmatmul.mubr.bf16.gmra.mrb[0].mxu0 %v647
      %v707 = vpop.f32.mrb[0].mxu0
      %v708 = vadd.f32 0.0, %v707
      %v709 = vpop.f32.mrb[0].mxu0
      %v710 = vpop.f32.mrb[0].mxu0
      %v711 = vadd.f32 0.0, %v710
      %v712 = vpop.f32.mrb[0].mxu0
      %713 = vdwg.mxu0
      %v714 = vadd.f32 %v601, %v684
      %v715 = vadd.f32 %v602, %v687
      %v716 = vadd.f32 %v603, %v692
      %v717 = vadd.f32 %v604, %v695
      %v718 = vadd.f32 %v605, %v700
      %v719 = vadd.f32 %v606, %v703
      %v720 = vadd.f32 %v607, %v708
      %v721 = vadd.f32 %v608, %v711
      %v722 = vld [vmem:[%s2] sm:$0x1]
      %v724 = vlaneseq
      %v725 = vshrl.u32 %v724, 7
      %v726 = vsub.s32 0, %v725
      %v727 = vrot.slane %v722, %v726
      %v729 = vadd.f32 %v714, %v727
      %v730 = vadd.f32 %v715, %v727
      %v731 = vadd.f32 %v716, %v727
      %v732 = vadd.f32 %v717, %v727
      %v733 = vadd.f32 %v718, %v727
      %v734 = vadd.f32 %v719, %v727
      %v735 = vadd.f32 %v720, %v727
      %v736 = vadd.f32 %v721, %v727
      %v737 = vmax.f32 %v729, 0.0
      %v738 = vmax.f32 %v730, 0.0
      %v739 = vmax.f32 %v731, 0.0
      %v740 = vmax.f32 %v732, 0.0
      %v741 = vmax.f32 %v733, 0.0
      %v742 = vmax.f32 %v734, 0.0
      %v743 = vmax.f32 %v735, 0.0
      %v744 = vmax.f32 %v736, 0.0
      %v745 = vpack.c.bf16 %v737, %v737
      %v746 = vpack.c.bf16 %v738, %v738
      %v747 = vpack.c.bf16 %v739, %v739
      %v748 = vpack.c.bf16 %v740, %v740
      %v749 = vpack.c.bf16 %v741, %v741
      %v750 = vpack.c.bf16 %v742, %v742
      %v751 = vpack.c.bf16 %v743, %v743
      %v752 = vpack.c.bf16 %v744, %v744
      %vm753 = vcmask 60416
      %754 = vst.msk [vmem:[%s170] sm:$0xf] %vm753, %v745
      %755 = vst.msk [vmem:[%s170 + $0x4] sm:$0xf] %vm753, %v746
      %756 = vst.msk [vmem:[%s170 + $0x8] sm:$0xf] %vm753, %v747
      %757 = vst.msk [vmem:[%s170 + $0xc] sm:$0xf] %vm753, %v748
      %758 = vst.msk [vmem:[%s170 + $0x10] sm:$0xf] %vm753, %v749
      %759 = vst.msk [vmem:[%s170 + $0x14] sm:$0xf] %vm753, %v750
      %760 = vst.msk [vmem:[%s170 + $0x18] sm:$0xf] %vm753, %v751
      %761 = vst.msk [vmem:[%s170 + $0x1c] sm:$0xf] %vm753, %v752
      %p762 = scmp.lt.s32.totalorder %s14, 1
      %s763 = scalar_select %p762, %s14, 1
      %s764 = smul.addr %s763, 8
      %s765 = smul.addr %s764, 4
      %s766 = scalar_lea.vmem %s3, %s765
      // Predicated region
      $region33: #{backbone_v1_forward.4} parent=31 // pred_check
        %p767 = pneg %p100
      $region34: #{backbone_v1_forward.4} parent=31 // pred_check_branch
        %769 = sbr.rel (%p767) target = $region36
      $region35: #{backbone_v1_forward.4} parent=31 // pred_region
        _
      $region36: #{backbone_v1_forward.4} parent=31 // pred_fallthru
        _
    $region32: #{backbone_v1_forward.4} parent=5 // pred_fallthru
      _
    %p770 = scmp.le.s32.totalorder 2, %s9
    // Predicated region
    $region37: #{backbone_v1_forward.4} parent=5 // pred_check
      %p771 = pneg %p770
    $region38: #{backbone_v1_forward.4} parent=5 // pred_check_branch
      %773 = sbr.rel (%p771) target = $region40
    $region39: #{backbone_v1_forward.4} parent=5 // pred_region
      %s774 = ssub.s32 %s9, 2
      // Predicated region
      $region41: #{backbone_v1_forward.4} parent=39 // pred_check
        %p775 = pneg %p106
      $region42: #{backbone_v1_forward.4} parent=39 // pred_check_branch
        %777 = sbr.rel (%p775) target = $region44
      $region43: #{backbone_v1_forward.4} parent=39 // pred_region
        %p778 = scmp.lt.s32.totalorder %s15, 1
        %s779 = scalar_select %p778, %s15, 1
        %s780 = smul.addr %s779, 8
        %s781 = smul.addr %s780, 4
        %s782 = scalar_lea.vmem %s3, %s781
      $region44: #{backbone_v1_forward.4} parent=39 // pred_fallthru
        _
    $region40: #{backbone_v1_forward.4} parent=5 // pred_fallthru
      _
  $region6: #{backbone_v1_forward.4} parent=0 // loop_footer
    %s13 = sadd.s32 1, %s9
  $region7: #{backbone_v1_forward.4} parent=0 // loop_footer_branch
    %8 = sbr.rel target = $region3
  $region8: #{backbone_v1_forward.4} parent=0 // loop_exit
    _

// kernel: backbone_v1_forward.5
$region0: #{backbone_v1_forward.5}
  #allocation0 [shape = 'u32[]', space=smem, size = 0x4, offset = 0x4, fixed_abs, tag = 'smem constant byte address 0x4 - core index']
  #allocation1 [shape = 'u32[144,128]{1,0:T(1,128)}', space=vmem, size = 0x12000, scoped, tag = 'internal scratch']
  %s0 = inlined_call_operand.vmem [shape: bf16[2,5,5,32], index: 0, kind: input, shape index: {}]
  %s1 = inlined_call_operand.vmem [shape: bf16[4,32,16], index: 1, kind: input, shape index: {}]
  %s2 = inlined_call_operand.vmem [shape: f32[1,16], index: 2, kind: input, shape index: {}]
  %s3 = inlined_call_operand.vmem [shape: bf16[2,4,4,16], index: 3, kind: output, shape index: {}]
  %s4 = sld [smem:[#allocation0]]
  $region45: #{backbone_v1_forward.5} parent=0
    _
  %s6 = ssub.s32 1, %s4
  %s7 = scalar_select 0, %s6, %s4
  loop: start=0, step=1, limit=4
  $region2: #{backbone_v1_forward.5} parent=0 // loop_pre_header
    _
  $region3: #{backbone_v1_forward.5} parent=0 // loop_header
    %s9 = sphi 0, %s13
    %p10 = scmp.ge.s32.totalorder %s9, 4
    %s19 = sphi 0, %s21
    %s22 = sphi 0, %s19
    %s23 = sphi 0, %s22
    %s39 = sphi 0, %s23
    %s43 = sphi 0, %s43
    %s45 = sphi 0, %s43
    %s46 = sphi 0, %s45
    %s60 = sphi 0, %s46
    %s64 = sphi 0, %s64
    %s66 = sphi 0, %s64
    %s67 = sphi 0, %s66
    %s81 = sphi 0, %s67
    %s87 = sphi 0, %s89
    %s90 = sphi 0, %s87
    %s91 = sphi 0, %s90
    %s107 = sphi 0, %s91
  $region4: #{backbone_v1_forward.5} parent=0 // loop_header_branch
    %12 = sbr.rel (%p10) target = $region8
  $region5: #{backbone_v1_forward.5} parent=0 // loop_body
    %s14 = ssub.s32 %s9, 1
    %s15 = ssub.s32 %s9, 2
    %s16 = sadd.s32 %s9, 1
    %s17 = ssub.s32 %s9, %s16
    %p18 = scmp.eq.s32.totalorder %s17, 0
    %s20 = sadd.s32 %s19, 1
    %s21 = scalar_select %p18, %s19, %s20
    %p24 = pneg %p18
    %p25 = scmp.eq.s32.totalorder %s9, 1
    %p26 = por %p24, %p25
    %p27 = scmp.ne.s32.totalorder %s19, %s22
    %p28 = scmp.eq.s32.totalorder %s9, 0
    %p29 = por %p27, %p28
    %p30 = scmp.ne.s32.totalorder %s19, %s22
    %p31 = scmp.eq.s32.totalorder %s14, 1
    %p32 = por %p30, %p31
    %p33 = scmp.ne.s32.totalorder %s22, %s23
    %p34 = scmp.eq.s32.totalorder %s14, 0
    %p35 = por %p33, %p34
    %p36 = scmp.ne.s32.totalorder %s22, %s23
    %p37 = scmp.eq.s32.totalorder %s15, 1
    %p38 = por %p36, %p37
    %p40 = scmp.ne.s32.totalorder %s23, %s39
    %p41 = scmp.eq.s32.totalorder %s15, 0
    %p42 = por %p40, %p41
    %s44 = sadd.s32 %s43, 1
    %p47 = scmp.eq.s32.totalorder %s9, 1
    %p48 = scmp.ne.s32.totalorder %s43, %s45
    %p49 = scmp.eq.s32.totalorder %s9, 0
    %p50 = por %p48, %p49
    %p51 = scmp.ne.s32.totalorder %s43, %s45
    %p52 = scmp.eq.s32.totalorder %s14, 1
    %p53 = por %p51, %p52
    %p54 = scmp.ne.s32.totalorder %s45, %s46
    %p55 = scmp.eq.s32.totalorder %s14, 0
    %p56 = por %p54, %p55
    %p57 = scmp.ne.s32.totalorder %s45, %s46
    %p58 = scmp.eq.s32.totalorder %s15, 1
    %p59 = por %p57, %p58
    %p61 = scmp.ne.s32.totalorder %s46, %s60
    %p62 = scmp.eq.s32.totalorder %s15, 0
    %p63 = por %p61, %p62
    %s65 = sadd.s32 %s64, 1
    %p68 = scmp.eq.s32.totalorder %s9, 1
    %p69 = scmp.ne.s32.totalorder %s64, %s66
    %p70 = scmp.eq.s32.totalorder %s9, 0
    %p71 = por %p69, %p70
    %p72 = scmp.ne.s32.totalorder %s64, %s66
    %p73 = scmp.eq.s32.totalorder %s14, 1
    %p74 = por %p72, %p73
    %p75 = scmp.ne.s32.totalorder %s66, %s67
    %p76 = scmp.eq.s32.totalorder %s14, 0
    %p77 = por %p75, %p76
    %p78 = scmp.ne.s32.totalorder %s66, %s67
    %p79 = scmp.eq.s32.totalorder %s15, 1
    %p80 = por %p78, %p79
    %p82 = scmp.ne.s32.totalorder %s67, %s81
    %p83 = scmp.eq.s32.totalorder %s15, 0
    %p84 = por %p82, %p83
    %s85 = ssub.s32 %s9, %s16
    %p86 = scmp.eq.s32.totalorder %s85, 0
    %s88 = sadd.s32 %s87, 1
    %s89 = scalar_select %p86, %s87, %s88
    %p92 = pneg %p86
    %p93 = scmp.eq.s32.totalorder %s9, 1
    %p94 = por %p92, %p93
    %p95 = scmp.ne.s32.totalorder %s87, %s90
    %p96 = scmp.eq.s32.totalorder %s9, 0
    %p97 = por %p95, %p96
    %p98 = scmp.ne.s32.totalorder %s87, %s90
    %p99 = scmp.eq.s32.totalorder %s14, 1
    %p100 = por %p98, %p99
    %p101 = scmp.ne.s32.totalorder %s90, %s91
    %p102 = scmp.eq.s32.totalorder %s14, 0
    %p103 = por %p101, %p102
    %p104 = scmp.ne.s32.totalorder %s90, %s91
    %p105 = scmp.eq.s32.totalorder %s15, 1
    %p106 = por %p104, %p105
    %p108 = scmp.ne.s32.totalorder %s91, %s107
    %p109 = scmp.eq.s32.totalorder %s15, 0
    %p110 = por %p108, %p109
    %p111 = scmp.le.s32.totalorder 1, %s9
    %p112 = scmp.lt.s32.totalorder %s9, 3
    %p113 = pnand %p111, %p112
    %p114 = pneg %p113
    // Predicated region
    $region9: #{backbone_v1_forward.5} parent=5 // pred_check
      _
    $region10: #{backbone_v1_forward.5} parent=5 // pred_check_branch
      %116 = sbr.rel (%p113) target = $region12
    $region11: #{backbone_v1_forward.5} parent=5 // pred_region
      %s117 = ssub.s32 %s9, 1
      // Predicated region
      $region13: #{backbone_v1_forward.5} parent=11 // pred_check
        %p118 = pneg %p56
      $region14: #{backbone_v1_forward.5} parent=11 // pred_check_branch
        %120 = sbr.rel (%p118) target = $region16
      $region15: #{backbone_v1_forward.5} parent=11 // pred_region
        _
      $region16: #{backbone_v1_forward.5} parent=11 // pred_fallthru
        _
      // Predicated region
      $region17: #{backbone_v1_forward.5} parent=11 // pred_check
        %p121 = pneg %p77
      $region18: #{backbone_v1_forward.5} parent=11 // pred_check_branch
        %123 = sbr.rel (%p121) target = $region20
      $region19: #{backbone_v1_forward.5} parent=11 // pred_region
        _
      $region20: #{backbone_v1_forward.5} parent=11 // pred_fallthru
        _
    $region12: #{backbone_v1_forward.5} parent=5 // pred_fallthru
      _
    %p124 = scmp.lt.s32.totalorder %s9, 2
    // Predicated region
    $region21: #{backbone_v1_forward.5} parent=5 // pred_check
      %p125 = pneg %p124
    $region22: #{backbone_v1_forward.5} parent=5 // pred_check_branch
      %127 = sbr.rel (%p125) target = $region24
    $region23: #{backbone_v1_forward.5} parent=5 // pred_region
      // Predicated region
      $region25: #{backbone_v1_forward.5} parent=23 // pred_check
        %p128 = pneg %p29
      $region26: #{backbone_v1_forward.5} parent=23 // pred_check_branch
        %130 = sbr.rel (%p128) target = $region28
      $region27: #{backbone_v1_forward.5} parent=23 // pred_region
        %p131 = scmp.lt.s32.totalorder %s9, 1
        %s132 = scalar_select %p131, %s9, 1
        %s133 = smul.addr %s132, 5
        %s134 = smul.addr %s133, 4
        %s135 = scalar_lea.vmem %s0, %s134
      $region28: #{backbone_v1_forward.5} parent=23 // pred_fallthru
        _
    $region24: #{backbone_v1_forward.5} parent=5 // pred_fallthru
      _
    %p136 = scmp.le.s32.totalorder 1, %s9
    %p137 = scmp.lt.s32.totalorder %s9, 3
    %p138 = pnand %p136, %p137
    %p139 = pneg %p138
    // Predicated region
    $region29: #{backbone_v1_forward.5} parent=5 // pred_check
      _
    $region30: #{backbone_v1_forward.5} parent=5 // pred_check_branch
      %141 = sbr.rel (%p138) target = $region32
    $region31: #{backbone_v1_forward.5} parent=5 // pred_region
      %s142 = ssub.s32 %s9, 1
      %p143 = scmp.lt.s32.totalorder %s14, 1
      %s144 = scalar_select %p143, %s14, 1
      %s145 = smul.addr %s144, 5
      %s146 = smul.addr %s145, 4
      %s147 = scalar_lea.vmem %s0, %s146
      %p148 = pneg %p35
      %p149 = pneg %p32
      %p150 = pneg %p56
      %p151 = pneg %p53
      %p152 = pneg %p77
      %p153 = pneg %p74
      %p154 = pneg %p103
      %p155 = pneg %p100
      %p156 = scmp.lt.s32.totalorder %s14, 1
      %s157 = scalar_select %p156, %s14, 1
      %s158 = smul.addr %s157, 4
      %s159 = smul.addr %s158, 2
      %s160 = scalar_lea.vmem %s3, %s159
      %p161 = scmp.lt.s32.totalorder %s14, 1
      %s162 = scalar_select %p161, %s14, 1
      %s163 = smul.addr %s162, 5
      %s164 = smul.addr %s163, 4
      %s165 = scalar_lea.vmem %s0, %s164
      %p166 = scmp.lt.s32.totalorder %s14, 1
      %s167 = scalar_select %p166, %s14, 1
      %s168 = smul.addr %s167, 4
      %s169 = smul.addr %s168, 2
      %s170 = scalar_lea.vmem %s3, %s169
      %v172 = vld [vmem:[%s165] sm:$0x7]
      %v173 = vld [vmem:[%s165 + $0x4] sm:$0x7]
      %v174 = vld [vmem:[%s165 + $0x8] sm:$0x7]
      %v175 = vld [vmem:[%s165 + $0xc] sm:$0x7]
      %v176 = vld [vmem:[%s165 + $0x10] sm:$0x7]
      %v177 = vld [vmem:[%s1] sm:$0xf]
      %v178 = vld [vmem:[%s1 + $0x4] sm:$0xf]
      %v179 = vld [vmem:[%s1 + $0x8] sm:$0xf]
      %v180 = vld [vmem:[%s1 + $0xc] sm:$0xf]
      %v186 = vunpack.c.l.s4 1983009808
      %v187 = vunpack.c.0.s8 %v186
      %v188 = vlaneseq
      %v189 = vshrl.u32 %v188, 7
      %v190 = vsub.s32 %v187, %v189
      %v191 = vrot.slane %v172, %v190
      %v192 = vcombine.high %v191, %v191
      %v194 = vunpack.c.l.s4 1983009808
      %v195 = vunpack.c.0.s8 %v194
      %v196 = vlaneseq
      %v197 = vshrl.u32 %v196, 7
      %v198 = vsub.s32 %v195, %v197
      %v199 = vrot.slane %v173, %v198
      %v200 = vcombine.high %v199, %v199
      %v202 = vunpack.c.l.s4 1983009808
      %v203 = vunpack.c.0.s8 %v202
      %v204 = vlaneseq
      %v205 = vshrl.u32 %v204, 7
      %v206 = vsub.s32 %v203, %v205
      %v207 = vrot.slane %v174, %v206
      %v208 = vcombine.high %v207, %v207
      %v210 = vunpack.c.l.s4 1983009808
      %v211 = vunpack.c.0.s8 %v210
      %v212 = vlaneseq
      %v213 = vshrl.u32 %v212, 7
      %v214 = vsub.s32 %v211, %v213
      %v215 = vrot.slane %v175, %v214
      %v216 = vcombine.high %v215, %v215
      %vm217 = vsmask.f32 1280
      %vm218 = vsmask.f32 3336
      %vm219 = vmor %vm217, %vm218
      %vm220 = vsmask.f32 5392
      %vm221 = vmor %vm219, %vm220
      %vm222 = vsmask.f32 7448
      %vm223 = vmor %vm221, %vm222
      %v225 = vshrl.u32 %v191, 16
      %v227 = vrot.slane %v225, 6
      %v228 = vshll.u32 %v191, 16
      %v230 = vrot.slane %v228, 7
      %v231 = vor.u32 %v227, %v230
      %v232 = vrot.slane %v231, 2
      %v234 = vshll.u32 %v192, 16
      %v236 = vrot.slane %v234, 7
      %v237 = vsel %vm223, %v232, %v236
      %v239 = vshrl.u32 %v199, 16
      %v241 = vrot.slane %v239, 6
      %v242 = vshll.u32 %v199, 16
      %v244 = vrot.slane %v242, 7
      %v245 = vor.u32 %v241, %v244
      %v246 = vrot.slane %v245, 2
      %v248 = vshll.u32 %v200, 16
      %v250 = vrot.slane %v248, 7
      %v251 = vsel %vm223, %v246, %v250
      %v253 = vshrl.u32 %v207, 16
      %v255 = vrot.slane %v253, 6
      %v256 = vshll.u32 %v207, 16
      %v258 = vrot.slane %v256, 7
      %v259 = vor.u32 %v255, %v258
      %v260 = vrot.slane %v259, 2
      %v262 = vshll.u32 %v208, 16
      %v264 = vrot.slane %v262, 7
      %v265 = vsel %vm223, %v260, %v264
      %v267 = vshrl.u32 %v215, 16
      %v269 = vrot.slane %v267, 6
      %v270 = vshll.u32 %v215, 16
      %v272 = vrot.slane %v270, 7
      %v273 = vor.u32 %v269, %v272
      %v274 = vrot.slane %v273, 2
      %v276 = vshll.u32 %v216, 16
      %v278 = vrot.slane %v276, 7
      %v279 = vsel %vm223, %v274, %v278
      %s280 = scalar_lea.vmem %s1, 16
      %v281 = vld [vmem:[%s280] sm:$0xf]
      %v282 = vld [vmem:[%s280 + $0x4] sm:$0xf]
      %v283 = vld [vmem:[%s280 + $0x8] sm:$0xf]
      %v284 = vld [vmem:[%s280 + $0xc] sm:$0xf]
      %v285 = vcombine.low %v237, %v251
      %v286 = vcombine.low %v265, %v279
      %v288 = vunpack.c.l.s4 1983009808
      %v289 = vunpack.c.0.s8 %v288
      %v290 = vlaneseq
      %v291 = vshrl.u32 %v290, 7
      %v292 = vsub.s32 %v289, %v291
      %v293 = vrot.slane %v285, %v292
      %v295 = vunpack.c.l.s4 1983009808
      %v296 = vunpack.c.0.s8 %v295
      %v297 = vlaneseq
      %v298 = vshrl.u32 %v297, 7
      %v299 = vsub.s32 %v296, %v298
      %v300 = vrot.slane %v286, %v299
      %v301 = vcombine.low %v293, %v300
      %v306 = vunpack.c.l.b16 %v281
      %v307 = vunpack.c.l.b16 %v282
      %v308 = vunpack.c.l.b16 %v283
      %v309 = vunpack.c.l.b16 %v284
      %v310 = vpack.c.b16 %v307, %v306
      %v311 = vpack.c.b16 %v309, %v308
      %vm314 = vcmask 261120
      %v316 = vsel %vm314, %v301, 0
      %318 = vmatprep.subr.bf16.mxu0 0
      %319 = vmatpush1.bf16.msra.mxu0 %v310
      %320 = vmatprep.subr.bf16.mxu0 0
      %321 = vmatpush1.bf16.msra.mxu0 %v311
      %322 = vmatprep.subr.bf16.mxu0 0
      %323 = vmatpush1.bf16.msra.mxu0 0
      %324 = vmatprep.subr.bf16.mxu0 0
      %325 = vmatpush1.bf16.msra.mxu0 0
      %326 = vmatprep.subr.bf16.mxu0 0
      %327 = vmatpush1.bf16.msra.mxu0 0
      %328 = vmatprep.subr.bf16.mxu0 0
      %329 = vmatpush1.bf16.msra.mxu0 0
      %330 = vmatprep.subr.bf16.mxu0 0
      %331 = vmatpush1.bf16.msra.mxu0 0
      %332 = vmatprep.subr.bf16.mxu0 0
      %333 = vmatpush1.bf16.msra.mxu0 0
      %334 = vmatprep.subr.bf16.mxu0 0
      %335 = vmatpush1.bf16.msra.mxu0 0
      %336 = vmatprep.subr.bf16.mxu0 0
      %337 = vmatpush1.bf16.msra.mxu0 0
      %338 = vmatprep.subr.bf16.mxu0 0
      %339 = vmatpush1.bf16.msra.mxu0 0
      %340 = vmatprep.subr.bf16.mxu0 0
      %341 = vmatpush1.bf16.msra.mxu0 0
      %342 = vmatprep.subr.bf16.mxu0 0
      %343 = vmatpush1.bf16.msra.mxu0 0
      %344 = vmatprep.subr.bf16.mxu0 0
      %345 = vmatpush1.bf16.msra.mxu0 0
      %346 = vmatprep.subr.bf16.mxu0 0
      %347 = vmatpush1.bf16.msra.mxu0 0
      %348 = vmatprep.subr.bf16.mxu0 0
      %349 = vmatpush1.bf16.msra.mxu0 0
      %350 = vmatprep.mubr.bf16.mxu0 0
      %351 = vmatmul.mubr.bf16.gmra.mrb[0].mxu0 %v316
      %v352 = vpop.f32.mrb[0].mxu0
      %v353 = vadd.f32 0.0, %v352
      %v354 = vpop.f32.mrb[0].mxu0
      %v355 = vpop.f32.mrb[0].mxu0
      %v356 = vadd.f32 0.0, %v355
      %v357 = vpop.f32.mrb[0].mxu0
      %358 = vdwg.mxu0
      %v359 = vcombine.low %v172, %v173
      %v360 = vcombine.low %v174, %v175
      %v362 = vunpack.c.l.s4 1983009808
      %v363 = vunpack.c.0.s8 %v362
      %v364 = vlaneseq
      %v365 = vshrl.u32 %v364, 7
      %v366 = vsub.s32 %v363, %v365
      %v367 = vrot.slane %v359, %v366
      %v369 = vunpack.c.l.s4 1983009808
      %v370 = vunpack.c.0.s8 %v369
      %v371 = vlaneseq
      %v372 = vshrl.u32 %v371, 7
      %v373 = vsub.s32 %v370, %v372
      %v374 = vrot.slane %v360, %v373
      %v375 = vcombine.low %v367, %v374
      %v380 = vunpack.c.l.b16 %v177
      %v381 = vunpack.c.l.b16 %v178
      %v382 = vunpack.c.l.b16 %v179
      %v383 = vunpack.c.l.b16 %v180
      %v384 = vpack.c.b16 %v381, %v380
      %v385 = vpack.c.b16 %v383, %v382
      %v389 = vsel %vm314, %v375, 0
      %391 = vmatprep.subr.bf16.mxu0 0
      %392 = vmatpush1.bf16.msra.mxu0 %v384
      %393 = vmatprep.subr.bf16.mxu0 0
      %394 = vmatpush1.bf16.msra.mxu0 %v385
      %395 = vmatprep.subr.bf16.mxu0 0
      %396 = vmatpush1.bf16.msra.mxu0 0
      %397 = vmatprep.subr.bf16.mxu0 0
      %398 = vmatpush1.bf16.msra.mxu0 0
      %399 = vmatprep.subr.bf16.mxu0 0
      %400 = vmatpush1.bf16.msra.mxu0 0
      %401 = vmatprep.subr.bf16.mxu0 0
      %402 = vmatpush1.bf16.msra.mxu0 0
      %403 = vmatprep.subr.bf16.mxu0 0
      %404 = vmatpush1.bf16.msra.mxu0 0
      %405 = vmatprep.subr.bf16.mxu0 0
      %406 = vmatpush1.bf16.msra.mxu0 0
      %407 = vmatprep.subr.bf16.mxu0 0
      %408 = vmatpush1.bf16.msra.mxu0 0
      %409 = vmatprep.subr.bf16.mxu0 0
      %410 = vmatpush1.bf16.msra.mxu0 0
      %411 = vmatprep.subr.bf16.mxu0 0
      %412 = vmatpush1.bf16.msra.mxu0 0
      %413 = vmatprep.subr.bf16.mxu0 0
      %414 = vmatpush1.bf16.msra.mxu0 0
      %415 = vmatprep.subr.bf16.mxu0 0
      %416 = vmatpush1.bf16.msra.mxu0 0
      %417 = vmatprep.subr.bf16.mxu0 0
      %418 = vmatpush1.bf16.msra.mxu0 0
      %419 = vmatprep.subr.bf16.mxu0 0
      %420 = vmatpush1.bf16.msra.mxu0 0
      %421 = vmatprep.subr.bf16.mxu0 0
      %422 = vmatpush1.bf16.msra.mxu0 0
      %423 = vmatprep.mubr.bf16.mxu0 0
      %424 = vmatmul.mubr.bf16.gmra.mrb[0].mxu0 %v389
      %v425 = vpop.f32.mrb[0].mxu0
      %v426 = vadd.f32 %v353, %v425
      %v427 = vpop.f32.mrb[0].mxu0
      %v428 = vpop.f32.mrb[0].mxu0
      %v429 = vadd.f32 %v356, %v428
      %v430 = vpop.f32.mrb[0].mxu0
      %431 = vdwg.mxu0
      %s432 = scalar_lea.vmem %s1, 32
      %v433 = vld [vmem:[%s432] sm:$0xf]
      %v434 = vld [vmem:[%s432 + $0x4] sm:$0xf]
      %v435 = vld [vmem:[%s432 + $0x8] sm:$0xf]
      %v436 = vld [vmem:[%s432 + $0xc] sm:$0xf]
      %v438 = vcombine.low %v173, %v174
      %v439 = vcombine.low %v175, %v176
      %v441 = vunpack.c.l.s4 1983009808
      %v442 = vunpack.c.0.s8 %v441
      %v443 = vlaneseq
      %v444 = vshrl.u32 %v443, 7
      %v445 = vsub.s32 %v442, %v444
      %v446 = vrot.slane %v438, %v445
      %v448 = vunpack.c.l.s4 1983009808
      %v449 = vunpack.c.0.s8 %v448
      %v450 = vlaneseq
      %v451 = vshrl.u32 %v450, 7
      %v452 = vsub.s32 %v449, %v451
      %v453 = vrot.slane %v439, %v452
      %v454 = vcombine.low %v446, %v453
      %v459 = vunpack.c.l.b16 %v433
      %v460 = vunpack.c.l.b16 %v434
      %v461 = vunpack.c.l.b16 %v435
      %v462 = vunpack.c.l.b16 %v436
      %v463 = vpack.c.b16 %v460, %v459
      %v464 = vpack.c.b16 %v462, %v461
      %v468 = vsel %vm314, %v454, 0
      %470 = vmatprep.subr.bf16.mxu0 0
      %471 = vmatpush1.bf16.msra.mxu0 %v463
      %472 = vmatprep.subr.bf16.mxu0 0
      %473 = vmatpush1.bf16.msra.mxu0 %v464
      %474 = vmatprep.subr.bf16.mxu0 0
      %475 = vmatpush1.bf16.msra.mxu0 0
      %476 = vmatprep.subr.bf16.mxu0 0
      %477 = vmatpush1.bf16.msra.mxu0 0
      %478 = vmatprep.subr.bf16.mxu0 0
      %479 = vmatpush1.bf16.msra.mxu0 0
      %480 = vmatprep.subr.bf16.mxu0 0
      %481 = vmatpush1.bf16.msra.mxu0 0
      %482 = vmatprep.subr.bf16.mxu0 0
      %483 = vmatpush1.bf16.msra.mxu0 0
      %484 = vmatprep.subr.bf16.mxu0 0
      %485 = vmatpush1.bf16.msra.mxu0 0
      %486 = vmatprep.subr.bf16.mxu0 0
      %487 = vmatpush1.bf16.msra.mxu0 0
      %488 = vmatprep.subr.bf16.mxu0 0
      %489 = vmatpush1.bf16.msra.mxu0 0
      %490 = vmatprep.subr.bf16.mxu0 0
      %491 = vmatpush1.bf16.msra.mxu0 0
      %492 = vmatprep.subr.bf16.mxu0 0
      %493 = vmatpush1.bf16.msra.mxu0 0
      %494 = vmatprep.subr.bf16.mxu0 0
      %495 = vmatpush1.bf16.msra.mxu0 0
      %496 = vmatprep.subr.bf16.mxu0 0
      %497 = vmatpush1.bf16.msra.mxu0 0
      %498 = vmatprep.subr.bf16.mxu0 0
      %499 = vmatpush1.bf16.msra.mxu0 0
      %500 = vmatprep.subr.bf16.mxu0 0
      %501 = vmatpush1.bf16.msra.mxu0 0
      %502 = vmatprep.mubr.bf16.mxu0 0
      %503 = vmatmul.mubr.bf16.gmra.mrb[0].mxu0 %v468
      %v504 = vpop.f32.mrb[0].mxu0
      %v505 = vadd.f32 0.0, %v504
      %v506 = vpop.f32.mrb[0].mxu0
      %v507 = vpop.f32.mrb[0].mxu0
      %v508 = vadd.f32 0.0, %v507
      %v509 = vpop.f32.mrb[0].mxu0
      %510 = vdwg.mxu0
      %v511 = vadd.f32 %v426, %v505
      %v512 = vadd.f32 %v429, %v508
      %v514 = vunpack.c.l.s4 1983009808
      %v515 = vunpack.c.0.s8 %v514
      %v516 = vlaneseq
      %v517 = vshrl.u32 %v516, 7
      %v518 = vsub.s32 %v515, %v517
      %v519 = vrot.slane %v176, %v518
      %v520 = vcombine.high %v519, %v519
      %v522 = vshrl.u32 %v519, 16
      %v524 = vrot.slane %v522, 6
      %v525 = vshll.u32 %v519, 16
      %v527 = vrot.slane %v525, 7
      %v528 = vor.u32 %v524, %v527
      %v529 = vrot.slane %v528, 2
      %v531 = vshll.u32 %v520, 16
      %v533 = vrot.slane %v531, 7
      %v534 = vsel %vm223, %v529, %v533
      %s535 = scalar_lea.vmem %s1, 48
      %v536 = vld [vmem:[%s535] sm:$0xf]
      %v537 = vld [vmem:[%s535 + $0x4] sm:$0xf]
      %v538 = vld [vmem:[%s535 + $0x8] sm:$0xf]
      %v539 = vld [vmem:[%s535 + $0xc] sm:$0xf]
      %v540 = vcombine.low %v251, %v265
      %v541 = vcombine.low %v279, %v534
      %v543 = vunpack.c.l.s4 1983009808
      %v544 = vunpack.c.0.s8 %v543
      %v545 = vlaneseq
      %v546 = vshrl.u32 %v545, 7
      %v547 = vsub.s32 %v544, %v546
      %v548 = vrot.slane %v540, %v547
      %v550 = vunpack.c.l.s4 1983009808
      %v551 = vunpack.c.0.s8 %v550
      %v552 = vlaneseq
      %v553 = vshrl.u32 %v552, 7
      %v554 = vsub.s32 %v551, %v553
      %v555 = vrot.slane %v541, %v554
      %v556 = vcombine.low %v548, %v555
      %v561 = vunpack.c.l.b16 %v536
      %v562 = vunpack.c.l.b16 %v537
      %v563 = vunpack.c.l.b16 %v538
      %v564 = vunpack.c.l.b16 %v539
      %v565 = vpack.c.b16 %v562, %v561
      %v566 = vpack.c.b16 %v564, %v563
      %v570 = vsel %vm314, %v556, 0
      %572 = vmatprep.subr.bf16.mxu0 0
      %573 = vmatpush1.bf16.msra.mxu0 %v565
      %574 = vmatprep.subr.bf16.mxu0 0
      %575 = vmatpush1.bf16.msra.mxu0 %v566
      %576 = vmatprep.subr.bf16.mxu0 0
      %577 = vmatpush1.bf16.msra.mxu0 0
      %578 = vmatprep.subr.bf16.mxu0 0
      %579 = vmatpush1.bf16.msra.mxu0 0
      %580 = vmatprep.subr.bf16.mxu0 0
      %581 = vmatpush1.bf16.msra.mxu0 0
      %582 = vmatprep.subr.bf16.mxu0 0
      %583 = vmatpush1.bf16.msra.mxu0 0
      %584 = vmatprep.subr.bf16.mxu0 0
      %585 = vmatpush1.bf16.msra.mxu0 0
      %586 = vmatprep.subr.bf16.mxu0 0
      %587 = vmatpush1.bf16.msra.mxu0 0
      %588 = vmatprep.subr.bf16.mxu0 0
      %589 = vmatpush1.bf16.msra.mxu0 0
      %590 = vmatprep.subr.bf16.mxu0 0
      %591 = vmatpush1.bf16.msra.mxu0 0
      %592 = vmatprep.subr.bf16.mxu0 0
      %593 = vmatpush1.bf16.msra.mxu0 0
      %594 = vmatprep.subr.bf16.mxu0 0
      %595 = vmatpush1.bf16.msra.mxu0 0
      %596 = vmatprep.subr.bf16.mxu0 0
      %597 = vmatpush1.bf16.msra.mxu0 0
      %598 = vmatprep.subr.bf16.mxu0 0
      %599 = vmatpush1.bf16.msra.mxu0 0
      %600 = vmatprep.subr.bf16.mxu0 0
      %601 = vmatpush1.bf16.msra.mxu0 0
      %602 = vmatprep.subr.bf16.mxu0 0
      %603 = vmatpush1.bf16.msra.mxu0 0
      %604 = vmatprep.mubr.bf16.mxu0 0
      %605 = vmatmul.mubr.bf16.gmra.mrb[0].mxu0 %v570
      %v606 = vpop.f32.mrb[0].mxu0
      %v607 = vadd.f32 0.0, %v606
      %v608 = vpop.f32.mrb[0].mxu0
      %v609 = vpop.f32.mrb[0].mxu0
      %v610 = vadd.f32 0.0, %v609
      %v611 = vpop.f32.mrb[0].mxu0
      %612 = vdwg.mxu0
      %v613 = vadd.f32 %v511, %v607
      %v614 = vadd.f32 %v512, %v610
      %v615 = vld [vmem:[%s2] sm:$0x1]
      %v617 = vlaneseq
      %v618 = vshrl.u32 %v617, 7
      %v619 = vsub.s32 0, %v618
      %v620 = vrot.slane %v615, %v619
      %v622 = vadd.f32 %v613, %v620
      %v623 = vadd.f32 %v614, %v620
      %v624 = vmax.f32 %v622, 0.0
      %v625 = vmax.f32 %v623, 0.0
      %v628 = vcombine.high %v624, %v624
      %v629 = vcombine.high %v625, %v625
      %v632 = vpack.c.bf16 %v624, %v624
      %v633 = vpack.c.bf16 %v628, %v628
      %v634 = vpack.c.bf16 %v625, %v625
      %v635 = vpack.c.bf16 %v629, %v629
      %vm636 = vcmask 123904
      %637 = vst.msk [vmem:[%s170] sm:$0x3] %vm636, %v632
      %638 = vst.msk [vmem:[%s170 + $0x2] sm:$0x3] %vm636, %v633
      %639 = vst.msk [vmem:[%s170 + $0x4] sm:$0x3] %vm636, %v634
      %640 = vst.msk [vmem:[%s170 + $0x6] sm:$0x3] %vm636, %v635
      %p641 = scmp.lt.s32.totalorder %s14, 1
      %s642 = scalar_select %p641, %s14, 1
      %s643 = smul.addr %s642, 4
      %s644 = smul.addr %s643, 2
      %s645 = scalar_lea.vmem %s3, %s644
      // Predicated region
      $region33: #{backbone_v1_forward.5} parent=31 // pred_check
        %p646 = pneg %p100
      $region34: #{backbone_v1_forward.5} parent=31 // pred_check_branch
        %648 = sbr.rel (%p646) target = $region36
      $region35: #{backbone_v1_forward.5} parent=31 // pred_region
        _
      $region36: #{backbone_v1_forward.5} parent=31 // pred_fallthru
        _
    $region32: #{backbone_v1_forward.5} parent=5 // pred_fallthru
      _
    %p649 = scmp.le.s32.totalorder 2, %s9
    // Predicated region
    $region37: #{backbone_v1_forward.5} parent=5 // pred_check
      %p650 = pneg %p649
    $region38: #{backbone_v1_forward.5} parent=5 // pred_check_branch
      %652 = sbr.rel (%p650) target = $region40
    $region39: #{backbone_v1_forward.5} parent=5 // pred_region
      %s653 = ssub.s32 %s9, 2
      // Predicated region
      $region41: #{backbone_v1_forward.5} parent=39 // pred_check
        %p654 = pneg %p106
      $region42: #{backbone_v1_forward.5} parent=39 // pred_check_branch
        %656 = sbr.rel (%p654) target = $region44
      $region43: #{backbone_v1_forward.5} parent=39 // pred_region
        %p657 = scmp.lt.s32.totalorder %s15, 1
        %s658 = scalar_select %p657, %s15, 1
        %s659 = smul.addr %s658, 4
        %s660 = smul.addr %s659, 2
        %s661 = scalar_lea.vmem %s3, %s660
      $region44: #{backbone_v1_forward.5} parent=39 // pred_fallthru
        _
    $region40: #{backbone_v1_forward.5} parent=5 // pred_fallthru
      _
  $region6: #{backbone_v1_forward.5} parent=0 // loop_footer
    %s13 = sadd.s32 1, %s9
  $region7: #{backbone_v1_forward.5} parent=0 // loop_footer_branch
    %8 = sbr.rel target = $region3
  $region8: #{backbone_v1_forward.5} parent=0 // loop_exit
    _

// kernel: backbone_v1_forward.6
$region0: #{backbone_v1_forward.6}
  #allocation0 [shape = 'u32[]', space=smem, size = 0x4, offset = 0x4, fixed_abs, tag = 'smem constant byte address 0x4 - core index']
  #allocation1 [shape = 'u32[144,128]{1,0:T(1,128)}', space=vmem, size = 0x12000, scoped, tag = 'internal scratch']
  %s0 = inlined_call_operand.vmem [shape: bf16[2,3,3,64], index: 0, kind: input, shape index: {}]
  %s1 = inlined_call_operand.vmem [shape: bf16[4,64,32], index: 1, kind: input, shape index: {}]
  %s2 = inlined_call_operand.vmem [shape: f32[1,32], index: 2, kind: input, shape index: {}]
  %s3 = inlined_call_operand.vmem [shape: bf16[2,2,2,32], index: 3, kind: output, shape index: {}]
  %s4 = sld [smem:[#allocation0]]
  $region45: #{backbone_v1_forward.6} parent=0
    _
  %s6 = ssub.s32 1, %s4
  %s7 = scalar_select 0, %s6, %s4
  loop: start=0, step=1, limit=4
  $region2: #{backbone_v1_forward.6} parent=0 // loop_pre_header
    _
  $region3: #{backbone_v1_forward.6} parent=0 // loop_header
    %s9 = sphi 0, %s13
    %p10 = scmp.ge.s32.totalorder %s9, 4
    %s19 = sphi 0, %s21
    %s22 = sphi 0, %s19
    %s23 = sphi 0, %s22
    %s39 = sphi 0, %s23
    %s43 = sphi 0, %s43
    %s45 = sphi 0, %s43
    %s46 = sphi 0, %s45
    %s60 = sphi 0, %s46
    %s64 = sphi 0, %s64
    %s66 = sphi 0, %s64
    %s67 = sphi 0, %s66
    %s81 = sphi 0, %s67
    %s87 = sphi 0, %s89
    %s90 = sphi 0, %s87
    %s91 = sphi 0, %s90
    %s107 = sphi 0, %s91
  $region4: #{backbone_v1_forward.6} parent=0 // loop_header_branch
    %12 = sbr.rel (%p10) target = $region8
  $region5: #{backbone_v1_forward.6} parent=0 // loop_body
    %s14 = ssub.s32 %s9, 1
    %s15 = ssub.s32 %s9, 2
    %s16 = sadd.s32 %s9, 1
    %s17 = ssub.s32 %s9, %s16
    %p18 = scmp.eq.s32.totalorder %s17, 0
    %s20 = sadd.s32 %s19, 1
    %s21 = scalar_select %p18, %s19, %s20
    %p24 = pneg %p18
    %p25 = scmp.eq.s32.totalorder %s9, 1
    %p26 = por %p24, %p25
    %p27 = scmp.ne.s32.totalorder %s19, %s22
    %p28 = scmp.eq.s32.totalorder %s9, 0
    %p29 = por %p27, %p28
    %p30 = scmp.ne.s32.totalorder %s19, %s22
    %p31 = scmp.eq.s32.totalorder %s14, 1
    %p32 = por %p30, %p31
    %p33 = scmp.ne.s32.totalorder %s22, %s23
    %p34 = scmp.eq.s32.totalorder %s14, 0
    %p35 = por %p33, %p34
    %p36 = scmp.ne.s32.totalorder %s22, %s23
    %p37 = scmp.eq.s32.totalorder %s15, 1
    %p38 = por %p36, %p37
    %p40 = scmp.ne.s32.totalorder %s23, %s39
    %p41 = scmp.eq.s32.totalorder %s15, 0
    %p42 = por %p40, %p41
    %s44 = sadd.s32 %s43, 1
    %p47 = scmp.eq.s32.totalorder %s9, 1
    %p48 = scmp.ne.s32.totalorder %s43, %s45
    %p49 = scmp.eq.s32.totalorder %s9, 0
    %p50 = por %p48, %p49
    %p51 = scmp.ne.s32.totalorder %s43, %s45
    %p52 = scmp.eq.s32.totalorder %s14, 1
    %p53 = por %p51, %p52
    %p54 = scmp.ne.s32.totalorder %s45, %s46
    %p55 = scmp.eq.s32.totalorder %s14, 0
    %p56 = por %p54, %p55
    %p57 = scmp.ne.s32.totalorder %s45, %s46
    %p58 = scmp.eq.s32.totalorder %s15, 1
    %p59 = por %p57, %p58
    %p61 = scmp.ne.s32.totalorder %s46, %s60
    %p62 = scmp.eq.s32.totalorder %s15, 0
    %p63 = por %p61, %p62
    %s65 = sadd.s32 %s64, 1
    %p68 = scmp.eq.s32.totalorder %s9, 1
    %p69 = scmp.ne.s32.totalorder %s64, %s66
    %p70 = scmp.eq.s32.totalorder %s9, 0
    %p71 = por %p69, %p70
    %p72 = scmp.ne.s32.totalorder %s64, %s66
    %p73 = scmp.eq.s32.totalorder %s14, 1
    %p74 = por %p72, %p73
    %p75 = scmp.ne.s32.totalorder %s66, %s67
    %p76 = scmp.eq.s32.totalorder %s14, 0
    %p77 = por %p75, %p76
    %p78 = scmp.ne.s32.totalorder %s66, %s67
    %p79 = scmp.eq.s32.totalorder %s15, 1
    %p80 = por %p78, %p79
    %p82 = scmp.ne.s32.totalorder %s67, %s81
    %p83 = scmp.eq.s32.totalorder %s15, 0
    %p84 = por %p82, %p83
    %s85 = ssub.s32 %s9, %s16
    %p86 = scmp.eq.s32.totalorder %s85, 0
    %s88 = sadd.s32 %s87, 1
    %s89 = scalar_select %p86, %s87, %s88
    %p92 = pneg %p86
    %p93 = scmp.eq.s32.totalorder %s9, 1
    %p94 = por %p92, %p93
    %p95 = scmp.ne.s32.totalorder %s87, %s90
    %p96 = scmp.eq.s32.totalorder %s9, 0
    %p97 = por %p95, %p96
    %p98 = scmp.ne.s32.totalorder %s87, %s90
    %p99 = scmp.eq.s32.totalorder %s14, 1
    %p100 = por %p98, %p99
    %p101 = scmp.ne.s32.totalorder %s90, %s91
    %p102 = scmp.eq.s32.totalorder %s14, 0
    %p103 = por %p101, %p102
    %p104 = scmp.ne.s32.totalorder %s90, %s91
    %p105 = scmp.eq.s32.totalorder %s15, 1
    %p106 = por %p104, %p105
    %p108 = scmp.ne.s32.totalorder %s91, %s107
    %p109 = scmp.eq.s32.totalorder %s15, 0
    %p110 = por %p108, %p109
    %p111 = scmp.le.s32.totalorder 1, %s9
    %p112 = scmp.lt.s32.totalorder %s9, 3
    %p113 = pnand %p111, %p112
    %p114 = pneg %p113
    // Predicated region
    $region9: #{backbone_v1_forward.6} parent=5 // pred_check
      _
    $region10: #{backbone_v1_forward.6} parent=5 // pred_check_branch
      %116 = sbr.rel (%p113) target = $region12
    $region11: #{backbone_v1_forward.6} parent=5 // pred_region
      %s117 = ssub.s32 %s9, 1
      // Predicated region
      $region13: #{backbone_v1_forward.6} parent=11 // pred_check
        %p118 = pneg %p56
      $region14: #{backbone_v1_forward.6} parent=11 // pred_check_branch
        %120 = sbr.rel (%p118) target = $region16
      $region15: #{backbone_v1_forward.6} parent=11 // pred_region
        _
      $region16: #{backbone_v1_forward.6} parent=11 // pred_fallthru
        _
      // Predicated region
      $region17: #{backbone_v1_forward.6} parent=11 // pred_check
        %p121 = pneg %p77
      $region18: #{backbone_v1_forward.6} parent=11 // pred_check_branch
        %123 = sbr.rel (%p121) target = $region20
      $region19: #{backbone_v1_forward.6} parent=11 // pred_region
        _
      $region20: #{backbone_v1_forward.6} parent=11 // pred_fallthru
        _
    $region12: #{backbone_v1_forward.6} parent=5 // pred_fallthru
      _
    %p124 = scmp.lt.s32.totalorder %s9, 2
    // Predicated region
    $region21: #{backbone_v1_forward.6} parent=5 // pred_check
      %p125 = pneg %p124
    $region22: #{backbone_v1_forward.6} parent=5 // pred_check_branch
      %127 = sbr.rel (%p125) target = $region24
    $region23: #{backbone_v1_forward.6} parent=5 // pred_region
      // Predicated region
      $region25: #{backbone_v1_forward.6} parent=23 // pred_check
        %p128 = pneg %p29
      $region26: #{backbone_v1_forward.6} parent=23 // pred_check_branch
        %130 = sbr.rel (%p128) target = $region28
      $region27: #{backbone_v1_forward.6} parent=23 // pred_region
        %p131 = scmp.lt.s32.totalorder %s9, 1
        %s132 = scalar_select %p131, %s9, 1
        %s133 = smul.addr %s132, 3
        %s134 = smul.addr %s133, 2
        %s135 = scalar_lea.vmem %s0, %s134
      $region28: #{backbone_v1_forward.6} parent=23 // pred_fallthru
        _
    $region24: #{backbone_v1_forward.6} parent=5 // pred_fallthru
      _
    %p136 = scmp.le.s32.totalorder 1, %s9
    %p137 = scmp.lt.s32.totalorder %s9, 3
    %p138 = pnand %p136, %p137
    %p139 = pneg %p138
    // Predicated region
    $region29: #{backbone_v1_forward.6} parent=5 // pred_check
      _
    $region30: #{backbone_v1_forward.6} parent=5 // pred_check_branch
      %141 = sbr.rel (%p138) target = $region32
    $region31: #{backbone_v1_forward.6} parent=5 // pred_region
      %s142 = ssub.s32 %s9, 1
      %p143 = scmp.lt.s32.totalorder %s14, 1
      %s144 = scalar_select %p143, %s14, 1
      %s145 = smul.addr %s144, 3
      %s146 = smul.addr %s145, 2
      %s147 = scalar_lea.vmem %s0, %s146
      %p148 = pneg %p35
      %p149 = pneg %p32
      %p150 = pneg %p56
      %p151 = pneg %p53
      %p152 = pneg %p77
      %p153 = pneg %p74
      %p154 = pneg %p103
      %p155 = pneg %p100
      %p156 = scmp.lt.s32.totalorder %s14, 1
      %s157 = scalar_select %p156, %s14, 1
      %s158 = smul.addr %s157, 2
      %s159 = scalar_lea.vmem %s3, %s158
      %p160 = scmp.lt.s32.totalorder %s14, 1
      %s161 = scalar_select %p160, %s14, 1
      %s162 = smul.addr %s161, 3
      %s163 = smul.addr %s162, 2
      %s164 = scalar_lea.vmem %s0, %s163
      %p165 = scmp.lt.s32.totalorder %s14, 1
      %s166 = scalar_select %p165, %s14, 1
      %s167 = smul.addr %s166, 2
      %s168 = scalar_lea.vmem %s3, %s167
      %v170 = vld [vmem:[%s164] sm:$0x3]
      %v171 = vld [vmem:[%s164 + $0x2] sm:$0x3]
      %v172 = vld [vmem:[%s164 + $0x4] sm:$0x3]
      %v173 = vld [vmem:[%s1] sm:$0xf]
      %v174 = vld [vmem:[%s1 + $0x4] sm:$0xf]
      %v175 = vld [vmem:[%s1 + $0x8] sm:$0xf]
      %v176 = vld [vmem:[%s1 + $0xc] sm:$0xf]
      %v177 = vld [vmem:[%s1 + $0x10] sm:$0xf]
      %v178 = vld [vmem:[%s1 + $0x14] sm:$0xf]
      %v179 = vld [vmem:[%s1 + $0x18] sm:$0xf]
      %v180 = vld [vmem:[%s1 + $0x1c] sm:$0xf]
      %v184 = vunpack.c.l.s4 1966171168
      %v185 = vunpack.c.0.s8 %v184
      %v186 = vlaneseq
      %v187 = vshrl.u32 %v186, 7
      %v188 = vsub.s32 %v185, %v187
      %v189 = vrot.slane %v170, %v188
      %v190 = vcombine.high %v189, %v189
      %v192 = vunpack.c.l.s4 1966171168
      %v193 = vunpack.c.0.s8 %v192
      %v194 = vlaneseq
      %v195 = vshrl.u32 %v194, 7
      %v196 = vsub.s32 %v193, %v195
      %v197 = vrot.slane %v171, %v196
      %v198 = vcombine.high %v197, %v197
      %vm199 = vsmask.f32 256
      %vm200 = vsmask.f32 1284
      %vm201 = vmor %vm199, %vm200
      %vm202 = vsmask.f32 2312
      %vm203 = vmor %vm201, %vm202
      %vm204 = vsmask.f32 3340
      %vm205 = vmor %vm203, %vm204
      %vm206 = vsmask.f32 4368
      %vm207 = vmor %vm205, %vm206
      %vm208 = vsmask.f32 5396
      %vm209 = vmor %vm207, %vm208
      %vm210 = vsmask.f32 6424
      %vm211 = vmor %vm209, %vm210
      %vm212 = vsmask.f32 7452
      %vm213 = vmor %vm211, %vm212
      %v215 = vshrl.u32 %v189, 16
      %v217 = vrot.slane %v215, 7
      %v218 = vrot.slane %v217, 1
      %v220 = vshll.u32 %v190, 16
      %v222 = vsel %vm213, %v218, %v220
      %v224 = vshrl.u32 %v197, 16
      %v226 = vrot.slane %v224, 7
      %v227 = vrot.slane %v226, 1
      %v229 = vshll.u32 %v198, 16
      %v231 = vsel %vm213, %v227, %v229
      %s232 = scalar_lea.vmem %s1, 32
      %v233 = vld [vmem:[%s232] sm:$0xf]
      %v234 = vld [vmem:[%s232 + $0x4] sm:$0xf]
      %v235 = vld [vmem:[%s232 + $0x8] sm:$0xf]
      %v236 = vld [vmem:[%s232 + $0xc] sm:$0xf]
      %v237 = vld [vmem:[%s232 + $0x10] sm:$0xf]
      %v238 = vld [vmem:[%s232 + $0x14] sm:$0xf]
      %v239 = vld [vmem:[%s232 + $0x18] sm:$0xf]
      %v240 = vld [vmem:[%s232 + $0x1c] sm:$0xf]
      %v241 = vcombine.low %v222, %v231
      %v243 = vunpack.c.l.s4 1966171168
      %v244 = vunpack.c.0.s8 %v243
      %v245 = vlaneseq
      %v246 = vshrl.u32 %v245, 7
      %v247 = vsub.s32 %v244, %v246
      %v248 = vrot.slane %v241, %v247
      %v250 = vunpack.c.l.s4 1966171168
      %v251 = vunpack.c.0.s8 %v250
      %v252 = vlaneseq
      %v253 = vshrl.u32 %v252, 7
      %v254 = vsub.s32 %v251, %v253
      %v255 = vrot.slane %v248, %v254
      %v264 = vunpack.c.l.b16 %v233
      %v265 = vunpack.c.l.b16 %v234
      %v266 = vunpack.c.l.b16 %v235
      %v267 = vunpack.c.l.b16 %v236
      %v268 = vunpack.c.l.b16 %v237
      %v269 = vunpack.c.l.b16 %v238
      %v270 = vunpack.c.l.b16 %v239
      %v271 = vunpack.c.l.b16 %v240
      %v272 = vpack.c.b16 %v265, %v264
      %v273 = vpack.c.b16 %v267, %v266
      %v274 = vpack.c.b16 %v269, %v268
      %v275 = vpack.c.b16 %v271, %v270
      %vm280 = vcmask 523264
      %v282 = vsel %vm280, %v255, 0
      %284 = vmatprep.subr.bf16.mxu0 0
      %285 = vmatpush1.bf16.msra.mxu0 %v272
      %286 = vmatprep.subr.bf16.mxu0 0
      %287 = vmatpush1.bf16.msra.mxu0 %v273
      %288 = vmatprep.subr.bf16.mxu0 0
      %289 = vmatpush1.bf16.msra.mxu0 %v274
      %290 = vmatprep.subr.bf16.mxu0 0
      %291 = vmatpush1.bf16.msra.mxu0 %v275
      %292 = vmatprep.subr.bf16.mxu0 0
      %293 = vmatpush1.bf16.msra.mxu0 0
      %294 = vmatprep.subr.bf16.mxu0 0
      %295 = vmatpush1.bf16.msra.mxu0 0
      %296 = vmatprep.subr.bf16.mxu0 0
      %297 = vmatpush1.bf16.msra.mxu0 0
      %298 = vmatprep.subr.bf16.mxu0 0
      %299 = vmatpush1.bf16.msra.mxu0 0
      %300 = vmatprep.subr.bf16.mxu0 0
      %301 = vmatpush1.bf16.msra.mxu0 0
      %302 = vmatprep.subr.bf16.mxu0 0
      %303 = vmatpush1.bf16.msra.mxu0 0
      %304 = vmatprep.subr.bf16.mxu0 0
      %305 = vmatpush1.bf16.msra.mxu0 0
      %306 = vmatprep.subr.bf16.mxu0 0
      %307 = vmatpush1.bf16.msra.mxu0 0
      %308 = vmatprep.subr.bf16.mxu0 0
      %309 = vmatpush1.bf16.msra.mxu0 0
      %310 = vmatprep.subr.bf16.mxu0 0
      %311 = vmatpush1.bf16.msra.mxu0 0
      %312 = vmatprep.subr.bf16.mxu0 0
      %313 = vmatpush1.bf16.msra.mxu0 0
      %314 = vmatprep.subr.bf16.mxu0 0
      %315 = vmatpush1.bf16.msra.mxu0 0
      %316 = vmatprep.mubr.bf16.mxu0 0
      %317 = vmatmul.mubr.bf16.gmra.mrb[0].mxu0 %v282
      %v318 = vpop.f32.mrb[0].mxu0
      %v319 = vadd.f32 0.0, %v318
      %v320 = vpop.f32.mrb[0].mxu0
      %v321 = vpop.f32.mrb[0].mxu0
      %v322 = vpop.f32.mrb[0].mxu0
      %323 = vdwg.mxu0
      %v324 = vcombine.low %v170, %v171
      %v326 = vunpack.c.l.s4 1966171168
      %v327 = vunpack.c.0.s8 %v326
      %v328 = vlaneseq
      %v329 = vshrl.u32 %v328, 7
      %v330 = vsub.s32 %v327, %v329
      %v331 = vrot.slane %v324, %v330
      %v333 = vunpack.c.l.s4 1966171168
      %v334 = vunpack.c.0.s8 %v333
      %v335 = vlaneseq
      %v336 = vshrl.u32 %v335, 7
      %v337 = vsub.s32 %v334, %v336
      %v338 = vrot.slane %v331, %v337
      %v347 = vunpack.c.l.b16 %v173
      %v348 = vunpack.c.l.b16 %v174
      %v349 = vunpack.c.l.b16 %v175
      %v350 = vunpack.c.l.b16 %v176
      %v351 = vunpack.c.l.b16 %v177
      %v352 = vunpack.c.l.b16 %v178
      %v353 = vunpack.c.l.b16 %v179
      %v354 = vunpack.c.l.b16 %v180
      %v355 = vpack.c.b16 %v348, %v347
      %v356 = vpack.c.b16 %v350, %v349
      %v357 = vpack.c.b16 %v352, %v351
      %v358 = vpack.c.b16 %v354, %v353
      %v364 = vsel %vm280, %v338, 0
      %366 = vmatprep.subr.bf16.mxu0 0
      %367 = vmatpush1.bf16.msra.mxu0 %v355
      %368 = vmatprep.subr.bf16.mxu0 0
      %369 = vmatpush1.bf16.msra.mxu0 %v356
      %370 = vmatprep.subr.bf16.mxu0 0
      %371 = vmatpush1.bf16.msra.mxu0 %v357
      %372 = vmatprep.subr.bf16.mxu0 0
      %373 = vmatpush1.bf16.msra.mxu0 %v358
      %374 = vmatprep.subr.bf16.mxu0 0
      %375 = vmatpush1.bf16.msra.mxu0 0
      %376 = vmatprep.subr.bf16.mxu0 0
      %377 = vmatpush1.bf16.msra.mxu0 0
      %378 = vmatprep.subr.bf16.mxu0 0
      %379 = vmatpush1.bf16.msra.mxu0 0
      %380 = vmatprep.subr.bf16.mxu0 0
      %381 = vmatpush1.bf16.msra.mxu0 0
      %382 = vmatprep.subr.bf16.mxu0 0
      %383 = vmatpush1.bf16.msra.mxu0 0
      %384 = vmatprep.subr.bf16.mxu0 0
      %385 = vmatpush1.bf16.msra.mxu0 0
      %386 = vmatprep.subr.bf16.mxu0 0
      %387 = vmatpush1.bf16.msra.mxu0 0
      %388 = vmatprep.subr.bf16.mxu0 0
      %389 = vmatpush1.bf16.msra.mxu0 0
      %390 = vmatprep.subr.bf16.mxu0 0
      %391 = vmatpush1.bf16.msra.mxu0 0
      %392 = vmatprep.subr.bf16.mxu0 0
      %393 = vmatpush1.bf16.msra.mxu0 0
      %394 = vmatprep.subr.bf16.mxu0 0
      %395 = vmatpush1.bf16.msra.mxu0 0
      %396 = vmatprep.subr.bf16.mxu0 0
      %397 = vmatpush1.bf16.msra.mxu0 0
      %398 = vmatprep.mubr.bf16.mxu0 0
      %399 = vmatmul.mubr.bf16.gmra.mrb[0].mxu0 %v364
      %v400 = vpop.f32.mrb[0].mxu0
      %v401 = vadd.f32 %v319, %v400
      %v402 = vpop.f32.mrb[0].mxu0
      %v403 = vpop.f32.mrb[0].mxu0
      %v404 = vpop.f32.mrb[0].mxu0
      %405 = vdwg.mxu0
      %s406 = scalar_lea.vmem %s1, 64
      %v407 = vld [vmem:[%s406] sm:$0xf]
      %v408 = vld [vmem:[%s406 + $0x4] sm:$0xf]
      %v409 = vld [vmem:[%s406 + $0x8] sm:$0xf]
      %v410 = vld [vmem:[%s406 + $0xc] sm:$0xf]
      %v411 = vld [vmem:[%s406 + $0x10] sm:$0xf]
      %v412 = vld [vmem:[%s406 + $0x14] sm:$0xf]
      %v413 = vld [vmem:[%s406 + $0x18] sm:$0xf]
      %v414 = vld [vmem:[%s406 + $0x1c] sm:$0xf]
      %v416 = vcombine.low %v171, %v172
      %v418 = vunpack.c.l.s4 1966171168
      %v419 = vunpack.c.0.s8 %v418
      %v420 = vlaneseq
      %v421 = vshrl.u32 %v420, 7
      %v422 = vsub.s32 %v419, %v421
      %v423 = vrot.slane %v416, %v422
      %v425 = vunpack.c.l.s4 1966171168
      %v426 = vunpack.c.0.s8 %v425
      %v427 = vlaneseq
      %v428 = vshrl.u32 %v427, 7
      %v429 = vsub.s32 %v426, %v428
      %v430 = vrot.slane %v423, %v429
      %v439 = vunpack.c.l.b16 %v407
      %v440 = vunpack.c.l.b16 %v408
      %v441 = vunpack.c.l.b16 %v409
      %v442 = vunpack.c.l.b16 %v410
      %v443 = vunpack.c.l.b16 %v411
      %v444 = vunpack.c.l.b16 %v412
      %v445 = vunpack.c.l.b16 %v413
      %v446 = vunpack.c.l.b16 %v414
      %v447 = vpack.c.b16 %v440, %v439
      %v448 = vpack.c.b16 %v442, %v441
      %v449 = vpack.c.b16 %v444, %v443
      %v450 = vpack.c.b16 %v446, %v445
      %v456 = vsel %vm280, %v430, 0
      %458 = vmatprep.subr.bf16.mxu0 0
      %459 = vmatpush1.bf16.msra.mxu0 %v447
      %460 = vmatprep.subr.bf16.mxu0 0
      %461 = vmatpush1.bf16.msra.mxu0 %v448
      %462 = vmatprep.subr.bf16.mxu0 0
      %463 = vmatpush1.bf16.msra.mxu0 %v449
      %464 = vmatprep.subr.bf16.mxu0 0
      %465 = vmatpush1.bf16.msra.mxu0 %v450
      %466 = vmatprep.subr.bf16.mxu0 0
      %467 = vmatpush1.bf16.msra.mxu0 0
      %468 = vmatprep.subr.bf16.mxu0 0
      %469 = vmatpush1.bf16.msra.mxu0 0
      %470 = vmatprep.subr.bf16.mxu0 0
      %471 = vmatpush1.bf16.msra.mxu0 0
      %472 = vmatprep.subr.bf16.mxu0 0
      %473 = vmatpush1.bf16.msra.mxu0 0
      %474 = vmatprep.subr.bf16.mxu0 0
      %475 = vmatpush1.bf16.msra.mxu0 0
      %476 = vmatprep.subr.bf16.mxu0 0
      %477 = vmatpush1.bf16.msra.mxu0 0
      %478 = vmatprep.subr.bf16.mxu0 0
      %479 = vmatpush1.bf16.msra.mxu0 0
      %480 = vmatprep.subr.bf16.mxu0 0
      %481 = vmatpush1.bf16.msra.mxu0 0
      %482 = vmatprep.subr.bf16.mxu0 0
      %483 = vmatpush1.bf16.msra.mxu0 0
      %484 = vmatprep.subr.bf16.mxu0 0
      %485 = vmatpush1.bf16.msra.mxu0 0
      %486 = vmatprep.subr.bf16.mxu0 0
      %487 = vmatpush1.bf16.msra.mxu0 0
      %488 = vmatprep.subr.bf16.mxu0 0
      %489 = vmatpush1.bf16.msra.mxu0 0
      %490 = vmatprep.mubr.bf16.mxu0 0
      %491 = vmatmul.mubr.bf16.gmra.mrb[0].mxu0 %v456
      %v492 = vpop.f32.mrb[0].mxu0
      %v493 = vadd.f32 0.0, %v492
      %v494 = vpop.f32.mrb[0].mxu0
      %v495 = vpop.f32.mrb[0].mxu0
      %v496 = vpop.f32.mrb[0].mxu0
      %497 = vdwg.mxu0
      %v498 = vadd.f32 %v401, %v493
      %v500 = vunpack.c.l.s4 1966171168
      %v501 = vunpack.c.0.s8 %v500
      %v502 = vlaneseq
      %v503 = vshrl.u32 %v502, 7
      %v504 = vsub.s32 %v501, %v503
      %v505 = vrot.slane %v172, %v504
      %v506 = vcombine.high %v505, %v505
      %v508 = vshrl.u32 %v505, 16
      %v510 = vrot.slane %v508, 7
      %v511 = vrot.slane %v510, 1
      %v513 = vshll.u32 %v506, 16
      %v515 = vsel %vm213, %v511, %v513
      %s516 = scalar_lea.vmem %s1, 96
      %v517 = vld [vmem:[%s516] sm:$0xf]
      %v518 = vld [vmem:[%s516 + $0x4] sm:$0xf]
      %v519 = vld [vmem:[%s516 + $0x8] sm:$0xf]
      %v520 = vld [vmem:[%s516 + $0xc] sm:$0xf]
      %v521 = vld [vmem:[%s516 + $0x10] sm:$0xf]
      %v522 = vld [vmem:[%s516 + $0x14] sm:$0xf]
      %v523 = vld [vmem:[%s516 + $0x18] sm:$0xf]
      %v524 = vld [vmem:[%s516 + $0x1c] sm:$0xf]
      %v525 = vcombine.low %v231, %v515
      %v527 = vunpack.c.l.s4 1966171168
      %v528 = vunpack.c.0.s8 %v527
      %v529 = vlaneseq
      %v530 = vshrl.u32 %v529, 7
      %v531 = vsub.s32 %v528, %v530
      %v532 = vrot.slane %v525, %v531
      %v534 = vunpack.c.l.s4 1966171168
      %v535 = vunpack.c.0.s8 %v534
      %v536 = vlaneseq
      %v537 = vshrl.u32 %v536, 7
      %v538 = vsub.s32 %v535, %v537
      %v539 = vrot.slane %v532, %v538
      %v548 = vunpack.c.l.b16 %v517
      %v549 = vunpack.c.l.b16 %v518
      %v550 = vunpack.c.l.b16 %v519
      %v551 = vunpack.c.l.b16 %v520
      %v552 = vunpack.c.l.b16 %v521
      %v553 = vunpack.c.l.b16 %v522
      %v554 = vunpack.c.l.b16 %v523
      %v555 = vunpack.c.l.b16 %v524
      %v556 = vpack.c.b16 %v549, %v548
      %v557 = vpack.c.b16 %v551, %v550
      %v558 = vpack.c.b16 %v553, %v552
      %v559 = vpack.c.b16 %v555, %v554
      %v565 = vsel %vm280, %v539, 0
      %567 = vmatprep.subr.bf16.mxu0 0
      %568 = vmatpush1.bf16.msra.mxu0 %v556
      %569 = vmatprep.subr.bf16.mxu0 0
      %570 = vmatpush1.bf16.msra.mxu0 %v557
      %571 = vmatprep.subr.bf16.mxu0 0
      %572 = vmatpush1.bf16.msra.mxu0 %v558
      %573 = vmatprep.subr.bf16.mxu0 0
      %574 = vmatpush1.bf16.msra.mxu0 %v559
      %575 = vmatprep.subr.bf16.mxu0 0
      %576 = vmatpush1.bf16.msra.mxu0 0
      %577 = vmatprep.subr.bf16.mxu0 0
      %578 = vmatpush1.bf16.msra.mxu0 0
      %579 = vmatprep.subr.bf16.mxu0 0
      %580 = vmatpush1.bf16.msra.mxu0 0
      %581 = vmatprep.subr.bf16.mxu0 0
      %582 = vmatpush1.bf16.msra.mxu0 0
      %583 = vmatprep.subr.bf16.mxu0 0
      %584 = vmatpush1.bf16.msra.mxu0 0
      %585 = vmatprep.subr.bf16.mxu0 0
      %586 = vmatpush1.bf16.msra.mxu0 0
      %587 = vmatprep.subr.bf16.mxu0 0
      %588 = vmatpush1.bf16.msra.mxu0 0
      %589 = vmatprep.subr.bf16.mxu0 0
      %590 = vmatpush1.bf16.msra.mxu0 0
      %591 = vmatprep.subr.bf16.mxu0 0
      %592 = vmatpush1.bf16.msra.mxu0 0
      %593 = vmatprep.subr.bf16.mxu0 0
      %594 = vmatpush1.bf16.msra.mxu0 0
      %595 = vmatprep.subr.bf16.mxu0 0
      %596 = vmatpush1.bf16.msra.mxu0 0
      %597 = vmatprep.subr.bf16.mxu0 0
      %598 = vmatpush1.bf16.msra.mxu0 0
      %599 = vmatprep.mubr.bf16.mxu0 0
      %600 = vmatmul.mubr.bf16.gmra.mrb[0].mxu0 %v565
      %v601 = vpop.f32.mrb[0].mxu0
      %v602 = vadd.f32 0.0, %v601
      %v603 = vpop.f32.mrb[0].mxu0
      %v604 = vpop.f32.mrb[0].mxu0
      %v605 = vpop.f32.mrb[0].mxu0
      %606 = vdwg.mxu0
      %v607 = vadd.f32 %v498, %v602
      %v608 = vld [vmem:[%s2] sm:$0x1]
      %v610 = vlaneseq
      %v611 = vshrl.u32 %v610, 7
      %v612 = vsub.s32 0, %v611
      %v613 = vrot.slane %v608, %v612
      %v615 = vadd.f32 %v607, %v613
      %v616 = vmax.f32 %v615, 0.0
      %v619 = vunpack.c.l.s4 1983009808
      %v620 = vunpack.c.0.s8 %v619
      %v621 = vlaneseq
      %v622 = vshrl.u32 %v621, 7
      %v623 = vsub.s32 %v620, %v622
      %v624 = vrot.slane %v616, %v623
      %v625 = vcombine.high %v624, %v624
      %v628 = vpack.c.bf16 %v624, %v624
      %v629 = vpack.c.bf16 %v625, %v625
      %vm630 = vcmask 253952
      %631 = vst.msk [vmem:[%s168] sm:$0x1] %vm630, %v628
      %632 = vst.msk [vmem:[%s168 + $0x1] sm:$0x1] %vm630, %v629
      %p633 = scmp.lt.s32.totalorder %s14, 1
      %s634 = scalar_select %p633, %s14, 1
      %s635 = smul.addr %s634, 2
      %s636 = scalar_lea.vmem %s3, %s635
      // Predicated region
      $region33: #{backbone_v1_forward.6} parent=31 // pred_check
        %p637 = pneg %p100
      $region34: #{backbone_v1_forward.6} parent=31 // pred_check_branch
        %639 = sbr.rel (%p637) target = $region36
      $region35: #{backbone_v1_forward.6} parent=31 // pred_region
        _
      $region36: #{backbone_v1_forward.6} parent=31 // pred_fallthru
        _
    $region32: #{backbone_v1_forward.6} parent=5 // pred_fallthru
      _
    %p640 = scmp.le.s32.totalorder 2, %s9
    // Predicated region
    $region37: #{backbone_v1_forward.6} parent=5 // pred_check
      %p641 = pneg %p640
    $region38: #{backbone_v1_forward.6} parent=5 // pred_check_branch
      %643 = sbr.rel (%p641) target = $region40
    $region39: #{backbone_v1_forward.6} parent=5 // pred_region
      %s644 = ssub.s32 %s9, 2
      // Predicated region
      $region41: #{backbone_v1_forward.6} parent=39 // pred_check
        %p645 = pneg %p106
      $region42: #{backbone_v1_forward.6} parent=39 // pred_check_branch
        %647 = sbr.rel (%p645) target = $region44
      $region43: #{backbone_v1_forward.6} parent=39 // pred_region
        %p648 = scmp.lt.s32.totalorder %s15, 1
        %s649 = scalar_select %p648, %s15, 1
        %s650 = smul.addr %s649, 2
        %s651 = scalar_lea.vmem %s3, %s650
      $region44: #{backbone_v1_forward.6} parent=39 // pred_fallthru
        _
    $region40: #{backbone_v1_forward.6} parent=5 // pred_fallthru
      _
  $region6: #{backbone_v1_forward.6} parent=0 // loop_footer
    %s13 = sadd.s32 1, %s9
  $region7: #{backbone_v1_forward.6} parent=0 // loop_footer_branch
    %8 = sbr.rel target = $region3
  $region8: #{backbone_v1_forward.6} parent=0 // loop_exit
    _

// kernel: backbone_v1_forward.7
$region0: #{backbone_v1_forward.7}
  #allocation0 [shape = 'u32[]', space=smem, size = 0x4, offset = 0x4, fixed_abs, tag = 'smem constant byte address 0x4 - core index']
  #allocation1 [shape = 'u32[144,128]{1,0:T(1,128)}', space=vmem, size = 0x12000, scoped, tag = 'internal scratch']
  %s0 = inlined_call_operand.vmem [shape: bf16[2,4,4,32], index: 0, kind: input, shape index: {}]
  %s1 = inlined_call_operand.vmem [shape: bf16[9,32,64], index: 1, kind: input, shape index: {}]
  %s2 = inlined_call_operand.vmem [shape: f32[1,64], index: 2, kind: input, shape index: {}]
  %s3 = inlined_call_operand.hbm [shape: f32[2,2,2,64], index: 3, kind: output, shape index: {}]
  %s4 = sld [smem:[#allocation0]]
  $region45: #{backbone_v1_forward.7} parent=0
    _
  %s6 = ssub.s32 1, %s4
  %s7 = scalar_select 0, %s6, %s4
  $region1: #{backbone_v1_forward.7} parent=0
    #allocation2 [shape = 'u8[4096]{0}', space=vmem, size = 0x1000, scoped, tag = 'output window, operand 0']
    #allocation3 [shape = 's32[2]{0}', space=sflag, size = 0x8, scoped, tag = 'scoped memory for backbone_v1_forward.7']
    %8 = vsyncpa [#allocation3], 0
    %s9 = scalar_lea.sflag [#allocation3], 1
    %10 = vsyncpa %s9, 0
    loop: start=0, step=1, limit=4
    $region2: #{backbone_v1_forward.7} parent=1 // loop_pre_header
      _
    $region3: #{backbone_v1_forward.7} parent=1 // loop_header
      %s12 = sphi 0, %s16
      %p13 = scmp.ge.s32.totalorder %s12, 4
      %s22 = sphi 0, %s24
      %s25 = sphi 0, %s22
      %s26 = sphi 0, %s25
      %s42 = sphi 0, %s26
      %s46 = sphi 0, %s46
      %s48 = sphi 0, %s46
      %s49 = sphi 0, %s48
      %s63 = sphi 0, %s49
      %s67 = sphi 0, %s67
      %s69 = sphi 0, %s67
      %s70 = sphi 0, %s69
      %s84 = sphi 0, %s70
      %s90 = sphi 0, %s92
      %s93 = sphi 0, %s90
      %s94 = sphi 0, %s93
      %s110 = sphi 0, %s94
    $region4: #{backbone_v1_forward.7} parent=1 // loop_header_branch
      %15 = sbr.rel (%p13) target = $region8
    $region5: #{backbone_v1_forward.7} parent=1 // loop_body
      %s17 = ssub.s32 %s12, 1
      %s18 = ssub.s32 %s12, 2
      %s19 = sadd.s32 %s12, 1
      %s20 = ssub.s32 %s12, %s19
      %p21 = scmp.eq.s32.totalorder %s20, 0
      %s23 = sadd.s32 %s22, 1
      %s24 = scalar_select %p21, %s22, %s23
      %p27 = pneg %p21
      %p28 = scmp.eq.s32.totalorder %s12, 1
      %p29 = por %p27, %p28
      %p30 = scmp.ne.s32.totalorder %s22, %s25
      %p31 = scmp.eq.s32.totalorder %s12, 0
      %p32 = por %p30, %p31
      %p33 = scmp.ne.s32.totalorder %s22, %s25
      %p34 = scmp.eq.s32.totalorder %s17, 1
      %p35 = por %p33, %p34
      %p36 = scmp.ne.s32.totalorder %s25, %s26
      %p37 = scmp.eq.s32.totalorder %s17, 0
      %p38 = por %p36, %p37
      %p39 = scmp.ne.s32.totalorder %s25, %s26
      %p40 = scmp.eq.s32.totalorder %s18, 1
      %p41 = por %p39, %p40
      %p43 = scmp.ne.s32.totalorder %s26, %s42
      %p44 = scmp.eq.s32.totalorder %s18, 0
      %p45 = por %p43, %p44
      %s47 = sadd.s32 %s46, 1
      %p50 = scmp.eq.s32.totalorder %s12, 1
      %p51 = scmp.ne.s32.totalorder %s46, %s48
      %p52 = scmp.eq.s32.totalorder %s12, 0
      %p53 = por %p51, %p52
      %p54 = scmp.ne.s32.totalorder %s46, %s48
      %p55 = scmp.eq.s32.totalorder %s17, 1
      %p56 = por %p54, %p55
      %p57 = scmp.ne.s32.totalorder %s48, %s49
      %p58 = scmp.eq.s32.totalorder %s17, 0
      %p59 = por %p57, %p58
      %p60 = scmp.ne.s32.totalorder %s48, %s49
      %p61 = scmp.eq.s32.totalorder %s18, 1
      %p62 = por %p60, %p61
      %p64 = scmp.ne.s32.totalorder %s49, %s63
      %p65 = scmp.eq.s32.totalorder %s18, 0
      %p66 = por %p64, %p65
      %s68 = sadd.s32 %s67, 1
      %p71 = scmp.eq.s32.totalorder %s12, 1
      %p72 = scmp.ne.s32.totalorder %s67, %s69
      %p73 = scmp.eq.s32.totalorder %s12, 0
      %p74 = por %p72, %p73
      %p75 = scmp.ne.s32.totalorder %s67, %s69
      %p76 = scmp.eq.s32.totalorder %s17, 1
      %p77 = por %p75, %p76
      %p78 = scmp.ne.s32.totalorder %s69, %s70
      %p79 = scmp.eq.s32.totalorder %s17, 0
      %p80 = por %p78, %p79
      %p81 = scmp.ne.s32.totalorder %s69, %s70
      %p82 = scmp.eq.s32.totalorder %s18, 1
      %p83 = por %p81, %p82
      %p85 = scmp.ne.s32.totalorder %s70, %s84
      %p86 = scmp.eq.s32.totalorder %s18, 0
      %p87 = por %p85, %p86
      %s88 = ssub.s32 %s12, %s19
      %p89 = scmp.eq.s32.totalorder %s88, 0
      %s91 = sadd.s32 %s90, 1
      %s92 = scalar_select %p89, %s90, %s91
      %p95 = pneg %p89
      %p96 = scmp.eq.s32.totalorder %s12, 1
      %p97 = por %p95, %p96
      %p98 = scmp.ne.s32.totalorder %s90, %s93
      %p99 = scmp.eq.s32.totalorder %s12, 0
      %p100 = por %p98, %p99
      %p101 = scmp.ne.s32.totalorder %s90, %s93
      %p102 = scmp.eq.s32.totalorder %s17, 1
      %p103 = por %p101, %p102
      %p104 = scmp.ne.s32.totalorder %s93, %s94
      %p105 = scmp.eq.s32.totalorder %s17, 0
      %p106 = por %p104, %p105
      %p107 = scmp.ne.s32.totalorder %s93, %s94
      %p108 = scmp.eq.s32.totalorder %s18, 1
      %p109 = por %p107, %p108
      %p111 = scmp.ne.s32.totalorder %s94, %s110
      %p112 = scmp.eq.s32.totalorder %s18, 0
      %p113 = por %p111, %p112
      %p114 = scmp.le.s32.totalorder 1, %s12
      %p115 = scmp.lt.s32.totalorder %s12, 3
      %p116 = pnand %p114, %p115
      %p117 = pneg %p116
      // Predicated region
      $region9: #{backbone_v1_forward.7} parent=5 // pred_check
        _
      $region10: #{backbone_v1_forward.7} parent=5 // pred_check_branch
        %119 = sbr.rel (%p116) target = $region12
      $region11: #{backbone_v1_forward.7} parent=5 // pred_region
        %s120 = ssub.s32 %s12, 1
        // Predicated region
        $region13: #{backbone_v1_forward.7} parent=11 // pred_check
          %p121 = pneg %p59
        $region14: #{backbone_v1_forward.7} parent=11 // pred_check_branch
          %123 = sbr.rel (%p121) target = $region16
        $region15: #{backbone_v1_forward.7} parent=11 // pred_region
          _
        $region16: #{backbone_v1_forward.7} parent=11 // pred_fallthru
          _
        // Predicated region
        $region17: #{backbone_v1_forward.7} parent=11 // pred_check
          %p124 = pneg %p80
        $region18: #{backbone_v1_forward.7} parent=11 // pred_check_branch
          %126 = sbr.rel (%p124) target = $region20
        $region19: #{backbone_v1_forward.7} parent=11 // pred_region
          _
        $region20: #{backbone_v1_forward.7} parent=11 // pred_fallthru
          _
      $region12: #{backbone_v1_forward.7} parent=5 // pred_fallthru
        _
      %p127 = scmp.lt.s32.totalorder %s12, 2
      // Predicated region
      $region21: #{backbone_v1_forward.7} parent=5 // pred_check
        %p128 = pneg %p127
      $region22: #{backbone_v1_forward.7} parent=5 // pred_check_branch
        %130 = sbr.rel (%p128) target = $region24
      $region23: #{backbone_v1_forward.7} parent=5 // pred_region
        // Predicated region
        $region25: #{backbone_v1_forward.7} parent=23 // pred_check
          %p131 = pneg %p32
        $region26: #{backbone_v1_forward.7} parent=23 // pred_check_branch
          %133 = sbr.rel (%p131) target = $region28
        $region27: #{backbone_v1_forward.7} parent=23 // pred_region
          %p134 = scmp.lt.s32.totalorder %s12, 1
          %s135 = scalar_select %p134, %s12, 1
          %s136 = smul.addr %s135, 4
          %s137 = smul.addr %s136, 2
          %s138 = scalar_lea.vmem %s0, %s137
        $region28: #{backbone_v1_forward.7} parent=23 // pred_fallthru
          _
      $region24: #{backbone_v1_forward.7} parent=5 // pred_fallthru
        _
      %p139 = scmp.le.s32.totalorder 1, %s12
      %p140 = scmp.lt.s32.totalorder %s12, 3
      %p141 = pnand %p139, %p140
      %p142 = pneg %p141
      // Predicated region
      $region29: #{backbone_v1_forward.7} parent=5 // pred_check
        _
      $region30: #{backbone_v1_forward.7} parent=5 // pred_check_branch
        %144 = sbr.rel (%p141) target = $region32
      $region31: #{backbone_v1_forward.7} parent=5 // pred_region
        %s145 = ssub.s32 %s12, 1
        %p146 = scmp.lt.s32.totalorder %s17, 1
        %s147 = scalar_select %p146, %s17, 1
        %s148 = smul.addr %s147, 4
        %s149 = smul.addr %s148, 2
        %s150 = scalar_lea.vmem %s0, %s149
        %p151 = pneg %p38
        %p152 = pneg %p35
        %p153 = pneg %p59
        %p154 = pneg %p56
        %p155 = pneg %p80
        %p156 = pneg %p77
        %p157 = pneg %p106
        %p158 = pneg %p103
        %s159 = sand.u32 %s93, 1
        %s160 = scalar_lea.sflag [#allocation3], %s159
        %s161 = sand.u32 %s93, 1
        %s162 = smul.addr %s161, 4
        %s163 = scalar_lea.vmem [#allocation2], %s162
        %p164 = scmp.lt.s32.totalorder %s17, 1
        %s165 = scalar_select %p164, %s17, 1
        %s166 = smul.addr %s165, 4
        %s167 = smul.addr %s166, 2
        %s168 = scalar_lea.vmem %s0, %s167
        %v170 = vld [vmem:[%s168] sm:$0x3]
        %v171 = vld [vmem:[%s168 + $0x2] sm:$0x3]
        %v172 = vld [vmem:[%s168 + $0x4] sm:$0x3]
        %v173 = vld [vmem:[%s168 + $0x6] sm:$0x3]
        %v174 = vld [vmem:[%s1] sm:$0xf]
        %v175 = vld [vmem:[%s1 + $0x4] sm:$0xf]
        %v176 = vld [vmem:[%s1 + $0x8] sm:$0xf]
        %v177 = vld [vmem:[%s1 + $0xc] sm:$0xf]
        %v181 = vunpack.c.l.s4 1966171168
        %v182 = vunpack.c.0.s8 %v181
        %v183 = vlaneseq
        %v184 = vshrl.u32 %v183, 7
        %v185 = vsub.s32 %v182, %v184
        %v186 = vrot.slane %v170, %v185
        %v187 = vcombine.high %v186, %v186
        %v189 = vunpack.c.l.s4 1966171168
        %v190 = vunpack.c.0.s8 %v189
        %v191 = vlaneseq
        %v192 = vshrl.u32 %v191, 7
        %v193 = vsub.s32 %v190, %v192
        %v194 = vrot.slane %v171, %v193
        %v195 = vcombine.high %v194, %v194
        %vm196 = vsmask.f32 256
        %vm197 = vsmask.f32 1284
        %vm198 = vmor %vm196, %vm197
        %vm199 = vsmask.f32 2312
        %vm200 = vmor %vm198, %vm199
        %vm201 = vsmask.f32 3340
        %vm202 = vmor %vm200, %vm201
        %vm203 = vsmask.f32 4368
        %vm204 = vmor %vm202, %vm203
        %vm205 = vsmask.f32 5396
        %vm206 = vmor %vm204, %vm205
        %vm207 = vsmask.f32 6424
        %vm208 = vmor %vm206, %vm207
        %vm209 = vsmask.f32 7452
        %vm210 = vmor %vm208, %vm209
        %v212 = vshrl.u32 %v186, 16
        %v214 = vrot.slane %v212, 7
        %v215 = vrot.slane %v214, 1
        %v217 = vshll.u32 %v187, 16
        %v219 = vsel %vm210, %v215, %v217
        %v221 = vshrl.u32 %v194, 16
        %v223 = vrot.slane %v221, 7
        %v224 = vrot.slane %v223, 1
        %v226 = vshll.u32 %v195, 16
        %v228 = vsel %vm210, %v224, %v226
        %s229 = scalar_lea.vmem %s1, 16
        %v230 = vld [vmem:[%s229] sm:$0xf]
        %v231 = vld [vmem:[%s229 + $0x4] sm:$0xf]
        %v232 = vld [vmem:[%s229 + $0x8] sm:$0xf]
        %v233 = vld [vmem:[%s229 + $0xc] sm:$0xf]
        %v234 = vcombine.low %v219, %v228
        %v236 = vunpack.c.l.s4 1966171168
        %v237 = vunpack.c.0.s8 %v236
        %v238 = vlaneseq
        %v239 = vshrl.u32 %v238, 7
        %v240 = vsub.s32 %v237, %v239
        %v241 = vrot.slane %v234, %v240
        %v243 = vunpack.c.l.s4 1966171168
        %v244 = vunpack.c.0.s8 %v243
        %v245 = vlaneseq
        %v246 = vshrl.u32 %v245, 7
        %v247 = vsub.s32 %v244, %v246
        %v248 = vrot.slane %v241, %v247
        %v253 = vunpack.c.l.b16 %v230
        %v254 = vunpack.c.l.b16 %v231
        %v255 = vunpack.c.l.b16 %v232
        %v256 = vunpack.c.l.b16 %v233
        %v257 = vpack.c.b16 %v254, %v253
        %v258 = vpack.c.b16 %v256, %v255
        %vm261 = vcmask 261120
        %v263 = vsel %vm261, %v248, 0
        %265 = vmatprep.subr.bf16.mxu0 0
        %266 = vmatpush1.bf16.msra.mxu0 %v257
        %267 = vmatprep.subr.bf16.mxu0 0
        %268 = vmatpush1.bf16.msra.mxu0 %v258
        %269 = vmatprep.subr.bf16.mxu0 0
        %270 = vmatpush1.bf16.msra.mxu0 0
        %271 = vmatprep.subr.bf16.mxu0 0
        %272 = vmatpush1.bf16.msra.mxu0 0
        %273 = vmatprep.subr.bf16.mxu0 0
        %274 = vmatpush1.bf16.msra.mxu0 0
        %275 = vmatprep.subr.bf16.mxu0 0
        %276 = vmatpush1.bf16.msra.mxu0 0
        %277 = vmatprep.subr.bf16.mxu0 0
        %278 = vmatpush1.bf16.msra.mxu0 0
        %279 = vmatprep.subr.bf16.mxu0 0
        %280 = vmatpush1.bf16.msra.mxu0 0
        %281 = vmatprep.subr.bf16.mxu0 0
        %282 = vmatpush1.bf16.msra.mxu0 0
        %283 = vmatprep.subr.bf16.mxu0 0
        %284 = vmatpush1.bf16.msra.mxu0 0
        %285 = vmatprep.subr.bf16.mxu0 0
        %286 = vmatpush1.bf16.msra.mxu0 0
        %287 = vmatprep.subr.bf16.mxu0 0
        %288 = vmatpush1.bf16.msra.mxu0 0
        %289 = vmatprep.subr.bf16.mxu0 0
        %290 = vmatpush1.bf16.msra.mxu0 0
        %291 = vmatprep.subr.bf16.mxu0 0
        %292 = vmatpush1.bf16.msra.mxu0 0
        %293 = vmatprep.subr.bf16.mxu0 0
        %294 = vmatpush1.bf16.msra.mxu0 0
        %295 = vmatprep.subr.bf16.mxu0 0
        %296 = vmatpush1.bf16.msra.mxu0 0
        %297 = vmatprep.mubr.bf16.mxu0 0
        %298 = vmatmul.mubr.bf16.gmra.mrb[0].mxu0 %v263
        %v299 = vpop.f32.mrb[0].mxu0
        %v300 = vadd.f32 0.0, %v299
        %v301 = vpop.f32.mrb[0].mxu0
        %v302 = vpop.f32.mrb[0].mxu0
        %v303 = vpop.f32.mrb[0].mxu0
        %304 = vdwg.mxu0
        %v305 = vcombine.low %v170, %v171
        %v307 = vunpack.c.l.s4 1966171168
        %v308 = vunpack.c.0.s8 %v307
        %v309 = vlaneseq
        %v310 = vshrl.u32 %v309, 7
        %v311 = vsub.s32 %v308, %v310
        %v312 = vrot.slane %v305, %v311
        %v314 = vunpack.c.l.s4 1966171168
        %v315 = vunpack.c.0.s8 %v314
        %v316 = vlaneseq
        %v317 = vshrl.u32 %v316, 7
        %v318 = vsub.s32 %v315, %v317
        %v319 = vrot.slane %v312, %v318
        %v324 = vunpack.c.l.b16 %v174
        %v325 = vunpack.c.l.b16 %v175
        %v326 = vunpack.c.l.b16 %v176
        %v327 = vunpack.c.l.b16 %v177
        %v328 = vpack.c.b16 %v325, %v324
        %v329 = vpack.c.b16 %v327, %v326
        %v333 = vsel %vm261, %v319, 0
        %335 = vmatprep.subr.bf16.mxu0 0
        %336 = vmatpush1.bf16.msra.mxu0 %v328
        %337 = vmatprep.subr.bf16.mxu0 0
        %338 = vmatpush1.bf16.msra.mxu0 %v329
        %339 = vmatprep.subr.bf16.mxu0 0
        %340 = vmatpush1.bf16.msra.mxu0 0
        %341 = vmatprep.subr.bf16.mxu0 0
        %342 = vmatpush1.bf16.msra.mxu0 0
        %343 = vmatprep.subr.bf16.mxu0 0
        %344 = vmatpush1.bf16.msra.mxu0 0
        %345 = vmatprep.subr.bf16.mxu0 0
        %346 = vmatpush1.bf16.msra.mxu0 0
        %347 = vmatprep.subr.bf16.mxu0 0
        %348 = vmatpush1.bf16.msra.mxu0 0
        %349 = vmatprep.subr.bf16.mxu0 0
        %350 = vmatpush1.bf16.msra.mxu0 0
        %351 = vmatprep.subr.bf16.mxu0 0
        %352 = vmatpush1.bf16.msra.mxu0 0
        %353 = vmatprep.subr.bf16.mxu0 0
        %354 = vmatpush1.bf16.msra.mxu0 0
        %355 = vmatprep.subr.bf16.mxu0 0
        %356 = vmatpush1.bf16.msra.mxu0 0
        %357 = vmatprep.subr.bf16.mxu0 0
        %358 = vmatpush1.bf16.msra.mxu0 0
        %359 = vmatprep.subr.bf16.mxu0 0
        %360 = vmatpush1.bf16.msra.mxu0 0
        %361 = vmatprep.subr.bf16.mxu0 0
        %362 = vmatpush1.bf16.msra.mxu0 0
        %363 = vmatprep.subr.bf16.mxu0 0
        %364 = vmatpush1.bf16.msra.mxu0 0
        %365 = vmatprep.subr.bf16.mxu0 0
        %366 = vmatpush1.bf16.msra.mxu0 0
        %367 = vmatprep.mubr.bf16.mxu0 0
        %368 = vmatmul.mubr.bf16.gmra.mrb[0].mxu0 %v333
        %v369 = vpop.f32.mrb[0].mxu0
        %v370 = vadd.f32 %v300, %v369
        %v371 = vpop.f32.mrb[0].mxu0
        %v372 = vpop.f32.mrb[0].mxu0
        %v373 = vpop.f32.mrb[0].mxu0
        %374 = vdwg.mxu0
        %s375 = scalar_lea.vmem %s1, 32
        %v376 = vld [vmem:[%s375] sm:$0xf]
        %v377 = vld [vmem:[%s375 + $0x4] sm:$0xf]
        %v378 = vld [vmem:[%s375 + $0x8] sm:$0xf]
        %v379 = vld [vmem:[%s375 + $0xc] sm:$0xf]
        %v380 = vcombine.low %v187, %v195
        %v382 = vunpack.c.l.s4 1966171168
        %v383 = vunpack.c.0.s8 %v382
        %v384 = vlaneseq
        %v385 = vshrl.u32 %v384, 7
        %v386 = vsub.s32 %v383, %v385
        %v387 = vrot.slane %v380, %v386
        %v389 = vunpack.c.l.s4 1966171168
        %v390 = vunpack.c.0.s8 %v389
        %v391 = vlaneseq
        %v392 = vshrl.u32 %v391, 7
        %v393 = vsub.s32 %v390, %v392
        %v394 = vrot.slane %v387, %v393
        %v399 = vunpack.c.l.b16 %v376
        %v400 = vunpack.c.l.b16 %v377
        %v401 = vunpack.c.l.b16 %v378
        %v402 = vunpack.c.l.b16 %v379
        %v403 = vpack.c.b16 %v400, %v399
        %v404 = vpack.c.b16 %v402, %v401
        %v408 = vsel %vm261, %v394, 0
        %410 = vmatprep.subr.bf16.mxu0 0
        %411 = vmatpush1.bf16.msra.mxu0 %v403
        %412 = vmatprep.subr.bf16.mxu0 0
        %413 = vmatpush1.bf16.msra.mxu0 %v404
        %414 = vmatprep.subr.bf16.mxu0 0
        %415 = vmatpush1.bf16.msra.mxu0 0
        %416 = vmatprep.subr.bf16.mxu0 0
        %417 = vmatpush1.bf16.msra.mxu0 0
        %418 = vmatprep.subr.bf16.mxu0 0
        %419 = vmatpush1.bf16.msra.mxu0 0
        %420 = vmatprep.subr.bf16.mxu0 0
        %421 = vmatpush1.bf16.msra.mxu0 0
        %422 = vmatprep.subr.bf16.mxu0 0
        %423 = vmatpush1.bf16.msra.mxu0 0
        %424 = vmatprep.subr.bf16.mxu0 0
        %425 = vmatpush1.bf16.msra.mxu0 0
        %426 = vmatprep.subr.bf16.mxu0 0
        %427 = vmatpush1.bf16.msra.mxu0 0
        %428 = vmatprep.subr.bf16.mxu0 0
        %429 = vmatpush1.bf16.msra.mxu0 0
        %430 = vmatprep.subr.bf16.mxu0 0
        %431 = vmatpush1.bf16.msra.mxu0 0
        %432 = vmatprep.subr.bf16.mxu0 0
        %433 = vmatpush1.bf16.msra.mxu0 0
        %434 = vmatprep.subr.bf16.mxu0 0
        %435 = vmatpush1.bf16.msra.mxu0 0
        %436 = vmatprep.subr.bf16.mxu0 0
        %437 = vmatpush1.bf16.msra.mxu0 0
        %438 = vmatprep.subr.bf16.mxu0 0
        %439 = vmatpush1.bf16.msra.mxu0 0
        %440 = vmatprep.subr.bf16.mxu0 0
        %441 = vmatpush1.bf16.msra.mxu0 0
        %442 = vmatprep.mubr.bf16.mxu0 0
        %443 = vmatmul.mubr.bf16.gmra.mrb[0].mxu0 %v408
        %v444 = vpop.f32.mrb[0].mxu0
        %v445 = vadd.f32 0.0, %v444
        %v446 = vpop.f32.mrb[0].mxu0
        %v447 = vpop.f32.mrb[0].mxu0
        %v448 = vpop.f32.mrb[0].mxu0
        %449 = vdwg.mxu0
        %v450 = vadd.f32 %v370, %v445
        %s451 = scalar_lea.vmem %s1, 48
        %v452 = vld [vmem:[%s451] sm:$0xf]
        %v453 = vld [vmem:[%s451 + $0x4] sm:$0xf]
        %v454 = vld [vmem:[%s451 + $0x8] sm:$0xf]
        %v455 = vld [vmem:[%s451 + $0xc] sm:$0xf]
        %v457 = vcombine.low %v171, %v172
        %v459 = vunpack.c.l.s4 1966171168
        %v460 = vunpack.c.0.s8 %v459
        %v461 = vlaneseq
        %v462 = vshrl.u32 %v461, 7
        %v463 = vsub.s32 %v460, %v462
        %v464 = vrot.slane %v457, %v463
        %v466 = vunpack.c.l.s4 1966171168
        %v467 = vunpack.c.0.s8 %v466
        %v468 = vlaneseq
        %v469 = vshrl.u32 %v468, 7
        %v470 = vsub.s32 %v467, %v469
        %v471 = vrot.slane %v464, %v470
        %v476 = vunpack.c.l.b16 %v452
        %v477 = vunpack.c.l.b16 %v453
        %v478 = vunpack.c.l.b16 %v454
        %v479 = vunpack.c.l.b16 %v455
        %v480 = vpack.c.b16 %v477, %v476
        %v481 = vpack.c.b16 %v479, %v478
        %v485 = vsel %vm261, %v471, 0
        %487 = vmatprep.subr.bf16.mxu0 0
        %488 = vmatpush1.bf16.msra.mxu0 %v480
        %489 = vmatprep.subr.bf16.mxu0 0
        %490 = vmatpush1.bf16.msra.mxu0 %v481
        %491 = vmatprep.subr.bf16.mxu0 0
        %492 = vmatpush1.bf16.msra.mxu0 0
        %493 = vmatprep.subr.bf16.mxu0 0
        %494 = vmatpush1.bf16.msra.mxu0 0
        %495 = vmatprep.subr.bf16.mxu0 0
        %496 = vmatpush1.bf16.msra.mxu0 0
        %497 = vmatprep.subr.bf16.mxu0 0
        %498 = vmatpush1.bf16.msra.mxu0 0
        %499 = vmatprep.subr.bf16.mxu0 0
        %500 = vmatpush1.bf16.msra.mxu0 0
        %501 = vmatprep.subr.bf16.mxu0 0
        %502 = vmatpush1.bf16.msra.mxu0 0
        %503 = vmatprep.subr.bf16.mxu0 0
        %504 = vmatpush1.bf16.msra.mxu0 0
        %505 = vmatprep.subr.bf16.mxu0 0
        %506 = vmatpush1.bf16.msra.mxu0 0
        %507 = vmatprep.subr.bf16.mxu0 0
        %508 = vmatpush1.bf16.msra.mxu0 0
        %509 = vmatprep.subr.bf16.mxu0 0
        %510 = vmatpush1.bf16.msra.mxu0 0
        %511 = vmatprep.subr.bf16.mxu0 0
        %512 = vmatpush1.bf16.msra.mxu0 0
        %513 = vmatprep.subr.bf16.mxu0 0
        %514 = vmatpush1.bf16.msra.mxu0 0
        %515 = vmatprep.subr.bf16.mxu0 0
        %516 = vmatpush1.bf16.msra.mxu0 0
        %517 = vmatprep.subr.bf16.mxu0 0
        %518 = vmatpush1.bf16.msra.mxu0 0
        %519 = vmatprep.mubr.bf16.mxu0 0
        %520 = vmatmul.mubr.bf16.gmra.mrb[0].mxu0 %v485
        %v521 = vpop.f32.mrb[0].mxu0
        %v522 = vadd.f32 0.0, %v521
        %v523 = vpop.f32.mrb[0].mxu0
        %v524 = vpop.f32.mrb[0].mxu0
        %v525 = vpop.f32.mrb[0].mxu0
        %526 = vdwg.mxu0
        %v527 = vadd.f32 %v450, %v522
        %v529 = vunpack.c.l.s4 1966171168
        %v530 = vunpack.c.0.s8 %v529
        %v531 = vlaneseq
        %v532 = vshrl.u32 %v531, 7
        %v533 = vsub.s32 %v530, %v532
        %v534 = vrot.slane %v172, %v533
        %v535 = vcombine.high %v534, %v534
        %v537 = vshrl.u32 %v534, 16
        %v539 = vrot.slane %v537, 7
        %v540 = vrot.slane %v539, 1
        %v542 = vshll.u32 %v535, 16
        %v544 = vsel %vm210, %v540, %v542
        %s545 = scalar_lea.vmem %s1, 64
        %v546 = vld [vmem:[%s545] sm:$0xf]
        %v547 = vld [vmem:[%s545 + $0x4] sm:$0xf]
        %v548 = vld [vmem:[%s545 + $0x8] sm:$0xf]
        %v549 = vld [vmem:[%s545 + $0xc] sm:$0xf]
        %v550 = vcombine.low %v228, %v544
        %v552 = vunpack.c.l.s4 1966171168
        %v553 = vunpack.c.0.s8 %v552
        %v554 = vlaneseq
        %v555 = vshrl.u32 %v554, 7
        %v556 = vsub.s32 %v553, %v555
        %v557 = vrot.slane %v550, %v556
        %v559 = vunpack.c.l.s4 1966171168
        %v560 = vunpack.c.0.s8 %v559
        %v561 = vlaneseq
        %v562 = vshrl.u32 %v561, 7
        %v563 = vsub.s32 %v560, %v562
        %v564 = vrot.slane %v557, %v563
        %v569 = vunpack.c.l.b16 %v546
        %v570 = vunpack.c.l.b16 %v547
        %v571 = vunpack.c.l.b16 %v548
        %v572 = vunpack.c.l.b16 %v549
        %v573 = vpack.c.b16 %v570, %v569
        %v574 = vpack.c.b16 %v572, %v571
        %v578 = vsel %vm261, %v564, 0
        %580 = vmatprep.subr.bf16.mxu0 0
        %581 = vmatpush1.bf16.msra.mxu0 %v573
        %582 = vmatprep.subr.bf16.mxu0 0
        %583 = vmatpush1.bf16.msra.mxu0 %v574
        %584 = vmatprep.subr.bf16.mxu0 0
        %585 = vmatpush1.bf16.msra.mxu0 0
        %586 = vmatprep.subr.bf16.mxu0 0
        %587 = vmatpush1.bf16.msra.mxu0 0
        %588 = vmatprep.subr.bf16.mxu0 0
        %589 = vmatpush1.bf16.msra.mxu0 0
        %590 = vmatprep.subr.bf16.mxu0 0
        %591 = vmatpush1.bf16.msra.mxu0 0
        %592 = vmatprep.subr.bf16.mxu0 0
        %593 = vmatpush1.bf16.msra.mxu0 0
        %594 = vmatprep.subr.bf16.mxu0 0
        %595 = vmatpush1.bf16.msra.mxu0 0
        %596 = vmatprep.subr.bf16.mxu0 0
        %597 = vmatpush1.bf16.msra.mxu0 0
        %598 = vmatprep.subr.bf16.mxu0 0
        %599 = vmatpush1.bf16.msra.mxu0 0
        %600 = vmatprep.subr.bf16.mxu0 0
        %601 = vmatpush1.bf16.msra.mxu0 0
        %602 = vmatprep.subr.bf16.mxu0 0
        %603 = vmatpush1.bf16.msra.mxu0 0
        %604 = vmatprep.subr.bf16.mxu0 0
        %605 = vmatpush1.bf16.msra.mxu0 0
        %606 = vmatprep.subr.bf16.mxu0 0
        %607 = vmatpush1.bf16.msra.mxu0 0
        %608 = vmatprep.subr.bf16.mxu0 0
        %609 = vmatpush1.bf16.msra.mxu0 0
        %610 = vmatprep.subr.bf16.mxu0 0
        %611 = vmatpush1.bf16.msra.mxu0 0
        %612 = vmatprep.mubr.bf16.mxu0 0
        %613 = vmatmul.mubr.bf16.gmra.mrb[0].mxu0 %v578
        %v614 = vpop.f32.mrb[0].mxu0
        %v615 = vadd.f32 0.0, %v614
        %v616 = vpop.f32.mrb[0].mxu0
        %v617 = vpop.f32.mrb[0].mxu0
        %v618 = vpop.f32.mrb[0].mxu0
        %619 = vdwg.mxu0
        %v620 = vadd.f32 %v527, %v615
        %s621 = scalar_lea.vmem %s1, 80
        %v622 = vld [vmem:[%s621] sm:$0xf]
        %v623 = vld [vmem:[%s621 + $0x4] sm:$0xf]
        %v624 = vld [vmem:[%s621 + $0x8] sm:$0xf]
        %v625 = vld [vmem:[%s621 + $0xc] sm:$0xf]
        %v626 = vcombine.low %v195, %v535
        %v628 = vunpack.c.l.s4 1966171168
        %v629 = vunpack.c.0.s8 %v628
        %v630 = vlaneseq
        %v631 = vshrl.u32 %v630, 7
        %v632 = vsub.s32 %v629, %v631
        %v633 = vrot.slane %v626, %v632
        %v635 = vunpack.c.l.s4 1966171168
        %v636 = vunpack.c.0.s8 %v635
        %v637 = vlaneseq
        %v638 = vshrl.u32 %v637, 7
        %v639 = vsub.s32 %v636, %v638
        %v640 = vrot.slane %v633, %v639
        %v645 = vunpack.c.l.b16 %v622
        %v646 = vunpack.c.l.b16 %v623
        %v647 = vunpack.c.l.b16 %v624
        %v648 = vunpack.c.l.b16 %v625
        %v649 = vpack.c.b16 %v646, %v645
        %v650 = vpack.c.b16 %v648, %v647
        %v654 = vsel %vm261, %v640, 0
        %656 = vmatprep.subr.bf16.mxu0 0
        %657 = vmatpush1.bf16.msra.mxu0 %v649
        %658 = vmatprep.subr.bf16.mxu0 0
        %659 = vmatpush1.bf16.msra.mxu0 %v650
        %660 = vmatprep.subr.bf16.mxu0 0
        %661 = vmatpush1.bf16.msra.mxu0 0
        %662 = vmatprep.subr.bf16.mxu0 0
        %663 = vmatpush1.bf16.msra.mxu0 0
        %664 = vmatprep.subr.bf16.mxu0 0
        %665 = vmatpush1.bf16.msra.mxu0 0
        %666 = vmatprep.subr.bf16.mxu0 0
        %667 = vmatpush1.bf16.msra.mxu0 0
        %668 = vmatprep.subr.bf16.mxu0 0
        %669 = vmatpush1.bf16.msra.mxu0 0
        %670 = vmatprep.subr.bf16.mxu0 0
        %671 = vmatpush1.bf16.msra.mxu0 0
        %672 = vmatprep.subr.bf16.mxu0 0
        %673 = vmatpush1.bf16.msra.mxu0 0
        %674 = vmatprep.subr.bf16.mxu0 0
        %675 = vmatpush1.bf16.msra.mxu0 0
        %676 = vmatprep.subr.bf16.mxu0 0
        %677 = vmatpush1.bf16.msra.mxu0 0
        %678 = vmatprep.subr.bf16.mxu0 0
        %679 = vmatpush1.bf16.msra.mxu0 0
        %680 = vmatprep.subr.bf16.mxu0 0
        %681 = vmatpush1.bf16.msra.mxu0 0
        %682 = vmatprep.subr.bf16.mxu0 0
        %683 = vmatpush1.bf16.msra.mxu0 0
        %684 = vmatprep.subr.bf16.mxu0 0
        %685 = vmatpush1.bf16.msra.mxu0 0
        %686 = vmatprep.subr.bf16.mxu0 0
        %687 = vmatpush1.bf16.msra.mxu0 0
        %688 = vmatprep.mubr.bf16.mxu0 0
        %689 = vmatmul.mubr.bf16.gmra.mrb[0].mxu0 %v654
        %v690 = vpop.f32.mrb[0].mxu0
        %v691 = vadd.f32 0.0, %v690
        %v692 = vpop.f32.mrb[0].mxu0
        %v693 = vpop.f32.mrb[0].mxu0
        %v694 = vpop.f32.mrb[0].mxu0
        %695 = vdwg.mxu0
        %v696 = vadd.f32 %v620, %v691
        %s697 = scalar_lea.vmem %s1, 96
        %v698 = vld [vmem:[%s697] sm:$0xf]
        %v699 = vld [vmem:[%s697 + $0x4] sm:$0xf]
        %v700 = vld [vmem:[%s697 + $0x8] sm:$0xf]
        %v701 = vld [vmem:[%s697 + $0xc] sm:$0xf]
        %v703 = vcombine.low %v172, %v173
        %v705 = vunpack.c.l.s4 1966171168
        %v706 = vunpack.c.0.s8 %v705
        %v707 = vlaneseq
        %v708 = vshrl.u32 %v707, 7
        %v709 = vsub.s32 %v706, %v708
        %v710 = vrot.slane %v703, %v709
        %v712 = vunpack.c.l.s4 1966171168
        %v713 = vunpack.c.0.s8 %v712
        %v714 = vlaneseq
        %v715 = vshrl.u32 %v714, 7
        %v716 = vsub.s32 %v713, %v715
        %v717 = vrot.slane %v710, %v716
        %v722 = vunpack.c.l.b16 %v698
        %v723 = vunpack.c.l.b16 %v699
        %v724 = vunpack.c.l.b16 %v700
        %v725 = vunpack.c.l.b16 %v701
        %v726 = vpack.c.b16 %v723, %v722
        %v727 = vpack.c.b16 %v725, %v724
        %v731 = vsel %vm261, %v717, 0
        %733 = vmatprep.subr.bf16.mxu0 0
        %734 = vmatpush1.bf16.msra.mxu0 %v726
        %735 = vmatprep.subr.bf16.mxu0 0
        %736 = vmatpush1.bf16.msra.mxu0 %v727
        %737 = vmatprep.subr.bf16.mxu0 0
        %738 = vmatpush1.bf16.msra.mxu0 0
        %739 = vmatprep.subr.bf16.mxu0 0
        %740 = vmatpush1.bf16.msra.mxu0 0
        %741 = vmatprep.subr.bf16.mxu0 0
        %742 = vmatpush1.bf16.msra.mxu0 0
        %743 = vmatprep.subr.bf16.mxu0 0
        %744 = vmatpush1.bf16.msra.mxu0 0
        %745 = vmatprep.subr.bf16.mxu0 0
        %746 = vmatpush1.bf16.msra.mxu0 0
        %747 = vmatprep.subr.bf16.mxu0 0
        %748 = vmatpush1.bf16.msra.mxu0 0
        %749 = vmatprep.subr.bf16.mxu0 0
        %750 = vmatpush1.bf16.msra.mxu0 0
        %751 = vmatprep.subr.bf16.mxu0 0
        %752 = vmatpush1.bf16.msra.mxu0 0
        %753 = vmatprep.subr.bf16.mxu0 0
        %754 = vmatpush1.bf16.msra.mxu0 0
        %755 = vmatprep.subr.bf16.mxu0 0
        %756 = vmatpush1.bf16.msra.mxu0 0
        %757 = vmatprep.subr.bf16.mxu0 0
        %758 = vmatpush1.bf16.msra.mxu0 0
        %759 = vmatprep.subr.bf16.mxu0 0
        %760 = vmatpush1.bf16.msra.mxu0 0
        %761 = vmatprep.subr.bf16.mxu0 0
        %762 = vmatpush1.bf16.msra.mxu0 0
        %763 = vmatprep.subr.bf16.mxu0 0
        %764 = vmatpush1.bf16.msra.mxu0 0
        %765 = vmatprep.mubr.bf16.mxu0 0
        %766 = vmatmul.mubr.bf16.gmra.mrb[0].mxu0 %v731
        %v767 = vpop.f32.mrb[0].mxu0
        %v768 = vadd.f32 0.0, %v767
        %v769 = vpop.f32.mrb[0].mxu0
        %v770 = vpop.f32.mrb[0].mxu0
        %v771 = vpop.f32.mrb[0].mxu0
        %772 = vdwg.mxu0
        %v773 = vadd.f32 %v696, %v768
        %v775 = vunpack.c.l.s4 1966171168
        %v776 = vunpack.c.0.s8 %v775
        %v777 = vlaneseq
        %v778 = vshrl.u32 %v777, 7
        %v779 = vsub.s32 %v776, %v778
        %v780 = vrot.slane %v173, %v779
        %v781 = vcombine.high %v780, %v780
        %v783 = vshrl.u32 %v780, 16
        %v785 = vrot.slane %v783, 7
        %v786 = vrot.slane %v785, 1
        %v788 = vshll.u32 %v781, 16
        %v790 = vsel %vm210, %v786, %v788
        %s791 = scalar_lea.vmem %s1, 112
        %v792 = vld [vmem:[%s791] sm:$0xf]
        %v793 = vld [vmem:[%s791 + $0x4] sm:$0xf]
        %v794 = vld [vmem:[%s791 + $0x8] sm:$0xf]
        %v795 = vld [vmem:[%s791 + $0xc] sm:$0xf]
        %v796 = vcombine.low %v544, %v790
        %v798 = vunpack.c.l.s4 1966171168
        %v799 = vunpack.c.0.s8 %v798
        %v800 = vlaneseq
        %v801 = vshrl.u32 %v800, 7
        %v802 = vsub.s32 %v799, %v801
        %v803 = vrot.slane %v796, %v802
        %v805 = vunpack.c.l.s4 1966171168
        %v806 = vunpack.c.0.s8 %v805
        %v807 = vlaneseq
        %v808 = vshrl.u32 %v807, 7
        %v809 = vsub.s32 %v806, %v808
        %v810 = vrot.slane %v803, %v809
        %v815 = vunpack.c.l.b16 %v792
        %v816 = vunpack.c.l.b16 %v793
        %v817 = vunpack.c.l.b16 %v794
        %v818 = vunpack.c.l.b16 %v795
        %v819 = vpack.c.b16 %v816, %v815
        %v820 = vpack.c.b16 %v818, %v817
        %v824 = vsel %vm261, %v810, 0
        %826 = vmatprep.subr.bf16.mxu0 0
        %827 = vmatpush1.bf16.msra.mxu0 %v819
        %828 = vmatprep.subr.bf16.mxu0 0
        %829 = vmatpush1.bf16.msra.mxu0 %v820
        %830 = vmatprep.subr.bf16.mxu0 0
        %831 = vmatpush1.bf16.msra.mxu0 0
        %832 = vmatprep.subr.bf16.mxu0 0
        %833 = vmatpush1.bf16.msra.mxu0 0
        %834 = vmatprep.subr.bf16.mxu0 0
        %835 = vmatpush1.bf16.msra.mxu0 0
        %836 = vmatprep.subr.bf16.mxu0 0
        %837 = vmatpush1.bf16.msra.mxu0 0
        %838 = vmatprep.subr.bf16.mxu0 0
        %839 = vmatpush1.bf16.msra.mxu0 0
        %840 = vmatprep.subr.bf16.mxu0 0
        %841 = vmatpush1.bf16.msra.mxu0 0
        %842 = vmatprep.subr.bf16.mxu0 0
        %843 = vmatpush1.bf16.msra.mxu0 0
        %844 = vmatprep.subr.bf16.mxu0 0
        %845 = vmatpush1.bf16.msra.mxu0 0
        %846 = vmatprep.subr.bf16.mxu0 0
        %847 = vmatpush1.bf16.msra.mxu0 0
        %848 = vmatprep.subr.bf16.mxu0 0
        %849 = vmatpush1.bf16.msra.mxu0 0
        %850 = vmatprep.subr.bf16.mxu0 0
        %851 = vmatpush1.bf16.msra.mxu0 0
        %852 = vmatprep.subr.bf16.mxu0 0
        %853 = vmatpush1.bf16.msra.mxu0 0
        %854 = vmatprep.subr.bf16.mxu0 0
        %855 = vmatpush1.bf16.msra.mxu0 0
        %856 = vmatprep.subr.bf16.mxu0 0
        %857 = vmatpush1.bf16.msra.mxu0 0
        %858 = vmatprep.mubr.bf16.mxu0 0
        %859 = vmatmul.mubr.bf16.gmra.mrb[0].mxu0 %v824
        %v860 = vpop.f32.mrb[0].mxu0
        %v861 = vadd.f32 0.0, %v860
        %v862 = vpop.f32.mrb[0].mxu0
        %v863 = vpop.f32.mrb[0].mxu0
        %v864 = vpop.f32.mrb[0].mxu0
        %865 = vdwg.mxu0
        %v866 = vadd.f32 %v773, %v861
        %s867 = scalar_lea.vmem %s1, 128
        %v868 = vld [vmem:[%s867] sm:$0xf]
        %v869 = vld [vmem:[%s867 + $0x4] sm:$0xf]
        %v870 = vld [vmem:[%s867 + $0x8] sm:$0xf]
        %v871 = vld [vmem:[%s867 + $0xc] sm:$0xf]
        %v872 = vcombine.low %v535, %v781
        %v874 = vunpack.c.l.s4 1966171168
        %v875 = vunpack.c.0.s8 %v874
        %v876 = vlaneseq
        %v877 = vshrl.u32 %v876, 7
        %v878 = vsub.s32 %v875, %v877
        %v879 = vrot.slane %v872, %v878
        %v881 = vunpack.c.l.s4 1966171168
        %v882 = vunpack.c.0.s8 %v881
        %v883 = vlaneseq
        %v884 = vshrl.u32 %v883, 7
        %v885 = vsub.s32 %v882, %v884
        %v886 = vrot.slane %v879, %v885
        %v891 = vunpack.c.l.b16 %v868
        %v892 = vunpack.c.l.b16 %v869
        %v893 = vunpack.c.l.b16 %v870
        %v894 = vunpack.c.l.b16 %v871
        %v895 = vpack.c.b16 %v892, %v891
        %v896 = vpack.c.b16 %v894, %v893
        %v900 = vsel %vm261, %v886, 0
        %902 = vmatprep.subr.bf16.mxu0 0
        %903 = vmatpush1.bf16.msra.mxu0 %v895
        %904 = vmatprep.subr.bf16.mxu0 0
        %905 = vmatpush1.bf16.msra.mxu0 %v896
        %906 = vmatprep.subr.bf16.mxu0 0
        %907 = vmatpush1.bf16.msra.mxu0 0
        %908 = vmatprep.subr.bf16.mxu0 0
        %909 = vmatpush1.bf16.msra.mxu0 0
        %910 = vmatprep.subr.bf16.mxu0 0
        %911 = vmatpush1.bf16.msra.mxu0 0
        %912 = vmatprep.subr.bf16.mxu0 0
        %913 = vmatpush1.bf16.msra.mxu0 0
        %914 = vmatprep.subr.bf16.mxu0 0
        %915 = vmatpush1.bf16.msra.mxu0 0
        %916 = vmatprep.subr.bf16.mxu0 0
        %917 = vmatpush1.bf16.msra.mxu0 0
        %918 = vmatprep.subr.bf16.mxu0 0
        %919 = vmatpush1.bf16.msra.mxu0 0
        %920 = vmatprep.subr.bf16.mxu0 0
        %921 = vmatpush1.bf16.msra.mxu0 0
        %922 = vmatprep.subr.bf16.mxu0 0
        %923 = vmatpush1.bf16.msra.mxu0 0
        %924 = vmatprep.subr.bf16.mxu0 0
        %925 = vmatpush1.bf16.msra.mxu0 0
        %926 = vmatprep.subr.bf16.mxu0 0
        %927 = vmatpush1.bf16.msra.mxu0 0
        %928 = vmatprep.subr.bf16.mxu0 0
        %929 = vmatpush1.bf16.msra.mxu0 0
        %930 = vmatprep.subr.bf16.mxu0 0
        %931 = vmatpush1.bf16.msra.mxu0 0
        %932 = vmatprep.subr.bf16.mxu0 0
        %933 = vmatpush1.bf16.msra.mxu0 0
        %934 = vmatprep.mubr.bf16.mxu0 0
        %935 = vmatmul.mubr.bf16.gmra.mrb[0].mxu0 %v900
        %v936 = vpop.f32.mrb[0].mxu0
        %v937 = vadd.f32 0.0, %v936
        %v938 = vpop.f32.mrb[0].mxu0
        %v939 = vpop.f32.mrb[0].mxu0
        %v940 = vpop.f32.mrb[0].mxu0
        %941 = vdwg.mxu0
        %v942 = vadd.f32 %v866, %v937
        %v943 = vld [vmem:[%s2] sm:$0x1]
        %v945 = vlaneseq
        %v946 = vshrl.u32 %v945, 7
        %v947 = vsub.s32 0, %v946
        %v948 = vrot.slane %v943, %v947
        %v950 = vadd.f32 %v942, %v948
        %v951 = vmax.f32 %v950, 0.0
        %v954 = vunpack.c.l.s4 1983009808
        %v955 = vunpack.c.0.s8 %v954
        %v956 = vlaneseq
        %v957 = vshrl.u32 %v956, 7
        %v958 = vsub.s32 %v955, %v957
        %v959 = vrot.slane %v951, %v958
        %v960 = vcombine.high %v959, %v959
        %vm963 = vcmask 517120
        %964 = vst.msk [vmem:[%s163] sm:$0x3] %vm963, %v959
        %965 = vst.msk [vmem:[%s163 + $0x2] sm:$0x3] %vm963, %v960
        %s966 = sand.u32 %s93, 1
        %s967 = scalar_lea.sflag [#allocation3], %s966
        %s968 = sand.u32 %s93, 1
        %s969 = smul.addr %s968, 4
        %s970 = scalar_lea.vmem [#allocation2], %s969
        // Predicated region
        $region33: #{backbone_v1_forward.7} parent=31 // pred_check
          %p971 = pneg %p103
        $region34: #{backbone_v1_forward.7} parent=31 // pred_check_branch
          %973 = sbr.rel (%p971) target = $region36
        $region35: #{backbone_v1_forward.7} parent=31 // pred_region
          %s975 = ssub.s32 64, 64
          %976 = vsyncadd %s967, %s975
          %s977 = smul.addr %s17, 2
          %s978 = smul.addr %s977, 32
          %s979 = scalar_lea.hbm %s3, %s978
          %s980 = sshll.u32 %s970, 4
          %s981 = int_to_ptr.vmem [resolvable:$true] %s980
          %986 = dma.vmem_to_hbm [thread:$0]  %s981, 64, %s979, %s967, 32, 32, 2
        $region36: #{backbone_v1_forward.7} parent=31 // pred_fallthru
          _
      $region32: #{backbone_v1_forward.7} parent=5 // pred_fallthru
        _
      %p987 = scmp.le.s32.totalorder 2, %s12
      // Predicated region
      $region37: #{backbone_v1_forward.7} parent=5 // pred_check
        %p988 = pneg %p987
      $region38: #{backbone_v1_forward.7} parent=5 // pred_check_branch
        %990 = sbr.rel (%p988) target = $region40
      $region39: #{backbone_v1_forward.7} parent=5 // pred_region
        %s991 = ssub.s32 %s12, 2
        // Predicated region
        $region41: #{backbone_v1_forward.7} parent=39 // pred_check
          %p992 = pneg %p109
        $region42: #{backbone_v1_forward.7} parent=39 // pred_check_branch
          %994 = sbr.rel (%p992) target = $region44
        $region43: #{backbone_v1_forward.7} parent=39 // pred_region
          %s995 = sand.u32 %s94, 1
          %s996 = scalar_lea.sflag [#allocation3], %s995
          %s997 = sand.u32 %s94, 1
          %s998 = smul.addr %s997, 4
          %s999 = scalar_lea.vmem [#allocation2], %s998
          %1000 = dma.done %s996, 64
        $region44: #{backbone_v1_forward.7} parent=39 // pred_fallthru
          _
      $region40: #{backbone_v1_forward.7} parent=5 // pred_fallthru
        _
    $region6: #{backbone_v1_forward.7} parent=1 // loop_footer
      %s16 = sadd.s32 1, %s12
    $region7: #{backbone_v1_forward.7} parent=1 // loop_footer_branch
      %11 = sbr.rel target = $region3
    $region8: #{backbone_v1_forward.7} parent=1 // loop_exit
      _
    %1001 = vsyncpa [#allocation3], 1
    %s1002 = scalar_lea.sflag [#allocation3], 1
    %1003 = vsyncpa %s1002, 1

</llo_original>
